<compile_context>
chip_gen: v7x
topology: tpu7x:2x2x1
jax: 0.10.0
libtpu: 0.0.40
codegen_flags: <defaults>
</compile_context>

<pallas_src>
import functools

import jax
import jax.numpy as jnp
import numpy as np
from jax.experimental import pallas as pl
from jax.experimental.pallas import tpu as pltpu


# ----------------------------------------------------------------------------
# Kernel 1: fused input projection for both directions.
#   gates = x @ [W_ih_f | W_ih_b] + [b_f | b_b]    -> split into fwd/bwd halves
# ----------------------------------------------------------------------------
def _input_proj_kernel(H4, x_ref, w_ref, b_ref, gf_ref, gb_ref):
    g = jnp.dot(x_ref[...].astype(jnp.bfloat16), w_ref[...],
                preferred_element_type=jnp.float32) + b_ref[...]
    gf_ref[...] = g[:, :H4]
    gb_ref[...] = g[:, H4:]


def input_projection(x2d, wih, b_in, *, tile_rows=512):
    TB, IN = x2d.shape
    H8 = wih.shape[1]
    H4 = H8 // 2
    tm = TB if TB <= tile_rows else tile_rows
    grid = (pl.cdiv(TB, tm),)
    gf, gb = pl.pallas_call(
        functools.partial(_input_proj_kernel, H4),
        grid=grid,
        in_specs=[
            pl.BlockSpec((tm, IN), lambda r: (r, 0)),     # x rows
            pl.BlockSpec((IN, H8), lambda r: (0, 0)),     # stacked W_ih (bf16)
            pl.BlockSpec((1, H8), lambda r: (0, 0)),      # stacked bias (f32)
        ],
        out_specs=[
            pl.BlockSpec((tm, H4), lambda r: (r, 0)),
            pl.BlockSpec((tm, H4), lambda r: (r, 0)),
        ],
        out_shape=[
            jax.ShapeDtypeStruct((TB, H4), jnp.float32),
            jax.ShapeDtypeStruct((TB, H4), jnp.float32),
        ],
        compiler_params=pltpu.CompilerParams(
            dimension_semantics=("parallel",)),
    )(x2d, wih, b_in)
    return gf, gb


# ----------------------------------------------------------------------------
# Kernel 2: bidirectional LSTM recurrence over time chunks.
# grid = (T // CHUNK,) sequential ("arbitrary").  At grid step c the body
# advances forward times [c*CHUNK, ..) and backward times [T-1-c*CHUNK, ..)
# with a short unrolled loop; h/c states persist in VMEM scratch.
# ----------------------------------------------------------------------------
def _lstm_recurrent_kernel(H, CHUNK,
                           gf_ref, gb_ref, whh_f_ref, whh_b_ref,
                           out_f_ref, out_b_ref,
                           h_f, c_f, h_b, c_b):
    c_idx = pl.program_id(0)

    @pl.when(c_idx == 0)
    def _():
        h_f[...] = jnp.zeros_like(h_f)
        c_f[...] = jnp.zeros_like(c_f)
        h_b[...] = jnp.zeros_like(h_b)
        c_b[...] = jnp.zeros_like(c_b)

    def cell(pre_gates, h_prev, c_prev, whh_ref):
        # Only the recurrent matmul remains in the serial loop (input projection
        # already folded into pre_gates, bias included).
        gates = pre_gates + jnp.dot(h_prev.astype(jnp.bfloat16), whh_ref[...],
                                    preferred_element_type=jnp.float32)
        i = jax.nn.sigmoid(gates[:, 0 * H:1 * H])
        f = jax.nn.sigmoid(gates[:, 1 * H:2 * H])
        g = jnp.tanh(gates[:, 2 * H:3 * H])
        o = jax.nn.sigmoid(gates[:, 3 * H:4 * H])
        c_new = f * c_prev + i * g
        h_new = o * jnp.tanh(c_new)
        return h_new, c_new

    # Short static unrolled loop over the chunk.  The backward direction's
    # block was fetched in reversed chunk order, so within the block it walks
    # local indices CHUNK-1 .. 0 (i.e. global time T-1-t).
    for k in range(CHUNK):
        hf, cf = cell(gf_ref[k], h_f[...], c_f[...], whh_f_ref)
        h_f[...] = hf
        c_f[...] = cf
        out_f_ref[k] = hf

        kb = CHUNK - 1 - k
        hb, cb = cell(gb_ref[kb], h_b[...], c_b[...], whh_b_ref)
        h_b[...] = hb
        c_b[...] = cb
        out_b_ref[kb] = hb


def lstm_recurrence(gates_f, gates_b, whh_f, whh_b, *, chunk=8):
    T, B, H4 = gates_f.shape
    H = H4 // 4
    chunk = min(chunk, T)
    while T % chunk:          # largest divisor of T not exceeding `chunk`
        chunk -= 1
    nc = T // chunk
    kernel = functools.partial(_lstm_recurrent_kernel, H, chunk)
    out_f, out_b = pl.pallas_call(
        kernel,
        grid=(nc,),
        in_specs=[
            pl.BlockSpec((chunk, B, H4), lambda c: (c, 0, 0)),           # fwd pre-gates
            pl.BlockSpec((chunk, B, H4), lambda c: (nc - 1 - c, 0, 0)),  # bwd pre-gates (reversed chunks)
            pl.BlockSpec((H, H4), lambda c: (0, 0)),                     # W_hh fwd (bf16)
            pl.BlockSpec((H, H4), lambda c: (0, 0)),                     # W_hh bwd (bf16)
        ],
        out_specs=[
            pl.BlockSpec((chunk, B, H), lambda c: (c, 0, 0)),
            pl.BlockSpec((chunk, B, H), lambda c: (nc - 1 - c, 0, 0)),
        ],
        out_shape=[
            jax.ShapeDtypeStruct((T, B, H), jnp.float32),
            jax.ShapeDtypeStruct((T, B, H), jnp.float32),
        ],
        scratch_shapes=[
            pltpu.VMEM((B, H), jnp.float32),  # h forward
            pltpu.VMEM((B, H), jnp.float32),  # c forward
            pltpu.VMEM((B, H), jnp.float32),  # h backward
            pltpu.VMEM((B, H), jnp.float32),  # c backward
        ],
        compiler_params=pltpu.CompilerParams(
            dimension_semantics=("arbitrary",)),
    )(gates_f, gates_b, whh_f, whh_b)
    return out_f, out_b


# ----------------------------------------------------------------------------
# Kernel 3: embedding Linear without materializing the concat:
#   y = h_f @ W_emb[:H] + h_b @ W_emb[H:] + b
# Row-tiled over T*B with a "parallel" grid.
# ----------------------------------------------------------------------------
def _embedding_kernel(xf_ref, xb_ref, wf_ref, wb_ref, b_ref, o_ref):
    acc = jnp.dot(xf_ref[...].astype(jnp.bfloat16), wf_ref[...],
                  preferred_element_type=jnp.float32)
    acc = acc + jnp.dot(xb_ref[...].astype(jnp.bfloat16), wb_ref[...],
                        preferred_element_type=jnp.float32)
    o_ref[...] = acc + b_ref[...]


def embedding_linear(hf2d, hb2d, w_emb_f, w_emb_b, b_emb, *, tile_rows=512):
    TB, H = hf2d.shape
    OUT = w_emb_f.shape[1]
    tm = TB if TB <= tile_rows else tile_rows
    grid = (pl.cdiv(TB, tm),)
    return pl.pallas_call(
        _embedding_kernel,
        grid=grid,
        in_specs=[
            pl.BlockSpec((tm, H), lambda r: (r, 0)),
            pl.BlockSpec((tm, H), lambda r: (r, 0)),
            pl.BlockSpec((H, OUT), lambda r: (0, 0)),
            pl.BlockSpec((H, OUT), lambda r: (0, 0)),
            pl.BlockSpec((1, OUT), lambda r: (0, 0)),
        ],
        out_specs=pl.BlockSpec((tm, OUT), lambda r: (r, 0)),
        out_shape=jax.ShapeDtypeStruct((TB, OUT), jnp.float32),
        compiler_params=pltpu.CompilerParams(
            dimension_semantics=("parallel",)),
    )(hf2d, hb2d, w_emb_f, w_emb_b, b_emb)


# ----------------------------------------------------------------------------
# Weight preparation (one-time): stack/transpose + cast matmul weights to bf16.
# ----------------------------------------------------------------------------
def prepare_kernel_params(p):
    H = p["whh_f"].shape[0]
    return dict(
        wih=jnp.concatenate([p["wih_f"], p["wih_b"]], axis=1).astype(jnp.bfloat16),  # (IN, 8H)
        b_in=jnp.concatenate([p["b_f"], p["b_b"]], axis=1),                           # (1, 8H) f32
        whh_f=p["whh_f"].astype(jnp.bfloat16),
        whh_b=p["whh_b"].astype(jnp.bfloat16),
        w_emb_f=p["w_emb"][:H].astype(jnp.bfloat16),
        w_emb_b=p["w_emb"][H:].astype(jnp.bfloat16),
        b_emb=p["b_emb"],
    )


# ----------------------------------------------------------------------------
# Full module forward
# ----------------------------------------------------------------------------
def bidirectional_lstm_forward(x, params, *, chunk=8):
    T, B, IN = x.shape
    H = params["whh_f"].shape[0]
    kp = prepare_kernel_params(params)

    # 1) hoisted input projection for both directions (one big matmul)
    gf, gb = input_projection(x.reshape(T * B, IN), kp["wih"], kp["b_in"])
    # 2) serial recurrence (chunked over time)
    out_f, out_b = lstm_recurrence(gf.reshape(T, B, 4 * H),
                                   gb.reshape(T, B, 4 * H),
                                   kp["whh_f"], kp["whh_b"], chunk=chunk)
    # 3) embedding linear, concat-free
    out = embedding_linear(out_f.reshape(T * B, H), out_b.reshape(T * B, H),
                           kp["w_emb_f"], kp["w_emb_b"], kp["b_emb"])
    return out.reshape(T, B, -1)                                   # (T, B, OUT)


# ----------------------------------------------------------------------------
# Deterministic parameter init (PyTorch-style uniform(-1/sqrt(H), 1/sqrt(H)))
# ----------------------------------------------------------------------------
def init_params(key, in_size, hidden_size, out_size):
    H = hidden_size
    k = 1.0 / np.sqrt(H)
    keys = jax.random.split(key, 12)

    def u(k_, shape):
        return jax.random.uniform(k_, shape, jnp.float32, -k, k)

    # Stored pre-transposed for x @ W layout; gate order [i, f, g, o].
    params = dict(
        wih_f=u(keys[0], (in_size, 4 * H)),
        whh_f=u(keys[1], (H, 4 * H)),
        b_f=u(keys[2], (1, 4 * H)) + u(keys[3], (1, 4 * H)),   # b_ih + b_hh
        wih_b=u(keys[4], (in_size, 4 * H)),
        whh_b=u(keys[5], (H, 4 * H)),
        b_b=u(keys[6], (1, 4 * H)) + u(keys[7], (1, 4 * H)),
        w_emb=u(keys[8], (2 * H, out_size)),
        b_emb=u(keys[9], (1, out_size)),
    )
    return params


# ----------------------------------------------------------------------------
# Pure-JAX f32 reference (mirrors PyTorch semantics) for verification
# ----------------------------------------------------------------------------
def reference_forward(x, params):
    T, B, _ = x.shape
    H = params["whh_f"].shape[0]

    def run_dir(xs, wih, whh, bias):
        def step(carry, x_t):
            h, c = carry
            gates = x_t @ wih + h @ whh + bias[0]
            i = jax.nn.sigmoid(gates[:, :H])
            f = jax.nn.sigmoid(gates[:, H:2 * H])
            g = jnp.tanh(gates[:, 2 * H:3 * H])
            o = jax.nn.sigmoid(gates[:, 3 * H:])
            c = f * c + i * g
            h = o * jnp.tanh(c)
            return (h, c), h
        init = (jnp.zeros((B, H), jnp.float32), jnp.zeros((B, H), jnp.float32))
        _, hs = jax.lax.scan(step, init, xs)
        return hs

    h_f = run_dir(x, params["wih_f"], params["whh_f"], params["b_f"])
    h_b = run_dir(x[::-1], params["wih_b"], params["whh_b"], params["b_b"])[::-1]
    rec = jnp.concatenate([h_f, h_b], axis=-1)
    out = rec.reshape(T * B, 2 * H) @ params["w_emb"] + params["b_emb"][0]
    return out.reshape(T, B, -1)


if __name__ == "__main__":
    T, B, IN, H, OUT = 8, 2, 16, 32, 10

    key = jax.random.PRNGKey(0)
    k_param, k_x = jax.random.split(key)
    params = init_params(k_param, IN, H, OUT)
    x = jax.random.normal(k_x, (T, B, IN), jnp.float32)

    forward = jax.jit(functools.partial(bidirectional_lstm_forward, chunk=8))
    out = jax.block_until_ready(forward(x, params))

    ref = jax.block_until_ready(reference_forward(x, params))
    assert out.shape == (T, B, OUT)
    # bf16 MXU inputs (weights + activations) with f32 accumulation vs. the f32
    # reference: tolerance relaxed accordingly.
    np.testing.assert_allclose(np.asarray(out), np.asarray(ref),
                               rtol=3e-2, atol=3e-2)

    print("KERNEL_OK")
</pallas_src>

<mosaic_0001>
module attributes {stable_mosaic.version = 11 : i64} {
  func.func @_input_proj_kernel(%arg0: i32, %arg1: memref<16x16xf32, #tpu.memory_space<vmem>>, %arg2: memref<16x256xbf16, #tpu.memory_space<vmem>>, %arg3: memref<1x256xf32, #tpu.memory_space<vmem>>, %arg4: memref<16x128xf32, #tpu.memory_space<vmem>>, %arg5: memref<16x128xf32, #tpu.memory_space<vmem>>) attributes {dimension_semantics = [#tpu.dimension_semantics<parallel>], iteration_bounds = array<i64: 1>, scalar_prefetch = 0 : i64, scratch_operands = 0 : i64, tpu.core_type = #tpu.core_type<tc>, window_params = [{transform_indices = @transform_0, window_bounds = array<i64: 16, 16>}, {pipeline_mode = #tpu.pipeline_mode<synchronous>, transform_indices = @transform_1, window_bounds = array<i64: 16, 256>}, {pipeline_mode = #tpu.pipeline_mode<synchronous>, transform_indices = @transform_2, window_bounds = array<i64: 1, 256>}, {transform_indices = @transform_3, window_bounds = array<i64: 16, 128>}, {transform_indices = @transform_4, window_bounds = array<i64: 16, 128>}]} {
    %c0 = arith.constant 0 : index
    %c0_0 = arith.constant 0 : index
    %0 = vector.load %arg1[%c0, %c0_0] : memref<16x16xf32, #tpu.memory_space<vmem>>, vector<16x16xf32>
    %1 = arith.truncf %0 : vector<16x16xf32> to vector<16x16xbf16>
    %c0_1 = arith.constant 0 : index
    %c0_2 = arith.constant 0 : index
    %2 = vector.load %arg2[%c0_1, %c0_2] : memref<16x256xbf16, #tpu.memory_space<vmem>>, vector<16x256xbf16>
    %cst = arith.constant dense<0.000000e+00> : vector<16x256xf32>
    %3 = tpu.matmul %1, %2, %cst {dimension_numbers = #tpu.dot_dimension_numbers<[1], [0], [0], [1], [0, 0, 1, 1], [], []>} : vector<16x16xbf16>, vector<16x256xbf16>, vector<16x256xf32> -> vector<16x256xf32>
    %c0_3 = arith.constant 0 : index
    %c0_4 = arith.constant 0 : index
    %4 = vector.load %arg3[%c0_3, %c0_4] : memref<1x256xf32, #tpu.memory_space<vmem>>, vector<1x256xf32>
    %5 = vector.broadcast %4 : vector<1x256xf32> to vector<16x256xf32>
    %6 = arith.addf %3, %5 : vector<16x256xf32>
    %7 = vector.extract_strided_slice %6 {offsets = [0, 0], sizes = [16, 128], strides = [1, 1]} : vector<16x256xf32> to vector<16x128xf32>
    %c0_5 = arith.constant 0 : index
    %c0_6 = arith.constant 0 : index
    %8 = vector.load %arg4[%c0_5, %c0_6] : memref<16x128xf32, #tpu.memory_space<vmem>>, vector<16x128xf32>
    tpu.vector_store %arg4[%c0_5, %c0_6], %7 {strides = array<i32>} : memref<16x128xf32, #tpu.memory_space<vmem>>, vector<16x128xf32>,
    %9 = vector.extract_strided_slice %6 {offsets = [0, 128], sizes = [16, 128], strides = [1, 1]} : vector<16x256xf32> to vector<16x128xf32>
    %c0_7 = arith.constant 0 : index
    %c0_8 = arith.constant 0 : index
    %10 = vector.load %arg5[%c0_7, %c0_8] : memref<16x128xf32, #tpu.memory_space<vmem>>, vector<16x128xf32>
    tpu.vector_store %arg5[%c0_7, %c0_8], %9 {strides = array<i32>} : memref<16x128xf32, #tpu.memory_space<vmem>>, vector<16x128xf32>,
    return
  }
  func.func @transform_0(%arg0: i32) -> (i32, i32) {
    %c0_i32 = arith.constant 0 : i32
    %c0_i32_0 = arith.constant 0 : i32
    return %arg0, %c0_i32 : i32, i32
  }
  func.func @transform_1(%arg0: i32) -> (i32, i32) {
    %c0_i32 = arith.constant 0 : i32
    %c0_i32_0 = arith.constant 0 : i32
    %c0_i32_1 = arith.constant 0 : i32
    return %c0_i32, %c0_i32_0 : i32, i32
  }
  func.func @transform_2(%arg0: i32) -> (i32, i32) {
    %c0_i32 = arith.constant 0 : i32
    %c0_i32_0 = arith.constant 0 : i32
    %c0_i32_1 = arith.constant 0 : i32
    return %c0_i32, %c0_i32_0 : i32, i32
  }
  func.func @transform_3(%arg0: i32) -> (i32, i32) {
    %c0_i32 = arith.constant 0 : i32
    %c0_i32_0 = arith.constant 0 : i32
    return %arg0, %c0_i32 : i32, i32
  }
  func.func @transform_4(%arg0: i32) -> (i32, i32) {
    %c0_i32 = arith.constant 0 : i32
    %c0_i32_0 = arith.constant 0 : i32
    return %arg0, %c0_i32 : i32, i32
  }
}

module attributes {stable_mosaic.version = 11 : i64} {
  func.func @_lstm_recurrent_kernel(%arg0: i32, %arg1: memref<8x2x128xf32, #tpu.memory_space<vmem>>, %arg2: memref<8x2x128xf32, #tpu.memory_space<vmem>>, %arg3: memref<32x128xbf16, #tpu.memory_space<vmem>>, %arg4: memref<32x128xbf16, #tpu.memory_space<vmem>>, %arg5: memref<8x2x32xf32, #tpu.memory_space<vmem>>, %arg6: memref<8x2x32xf32, #tpu.memory_space<vmem>>, %arg7: memref<2x32xf32, #tpu.memory_space<vmem>>, %arg8: memref<2x32xf32, #tpu.memory_space<vmem>>, %arg9: memref<2x32xf32, #tpu.memory_space<vmem>>, %arg10: memref<2x32xf32, #tpu.memory_space<vmem>>) attributes {dimension_semantics = [#tpu.dimension_semantics<arbitrary>], iteration_bounds = array<i64: 1>, scalar_prefetch = 0 : i64, scratch_operands = 4 : i64, tpu.core_type = #tpu.core_type<tc>, window_params = [{transform_indices = @transform_0, window_bounds = array<i64: 8, 2, 128>}, {transform_indices = @transform_1, window_bounds = array<i64: 8, 2, 128>}, {pipeline_mode = #tpu.pipeline_mode<synchronous>, transform_indices = @transform_2, window_bounds = array<i64: 32, 128>}, {pipeline_mode = #tpu.pipeline_mode<synchronous>, transform_indices = @transform_3, window_bounds = array<i64: 32, 128>}, {transform_indices = @transform_4, window_bounds = array<i64: 8, 2, 32>}, {transform_indices = @transform_5, window_bounds = array<i64: 8, 2, 32>}]} {
    %c0_i32 = arith.constant 0 : i32
    %0 = arith.cmpi eq, %arg0, %c0_i32 : i32
    %1 = arith.extui %0 : i1 to i32
    %c0_i32_0 = arith.constant 0 : i32
    %2 = arith.cmpi ne, %1, %c0_i32_0 : i32
    scf.if %2 {
      %cst_312 = arith.constant 0.000000e+00 : f32
      %611 = vector.broadcast %cst_312 : f32 to vector<2x32xf32>
      %c0_313 = arith.constant 0 : index
      %c0_314 = arith.constant 0 : index
      %612 = vector.load %arg7[%c0_313, %c0_314] : memref<2x32xf32, #tpu.memory_space<vmem>>, vector<2x32xf32>
      tpu.vector_store %arg7[%c0_313, %c0_314], %611 {strides = array<i32>} : memref<2x32xf32, #tpu.memory_space<vmem>>, vector<2x32xf32>,
      %cst_315 = arith.constant 0.000000e+00 : f32
      %613 = vector.broadcast %cst_315 : f32 to vector<2x32xf32>
      %c0_316 = arith.constant 0 : index
      %c0_317 = arith.constant 0 : index
      %614 = vector.load %arg8[%c0_316, %c0_317] : memref<2x32xf32, #tpu.memory_space<vmem>>, vector<2x32xf32>
      tpu.vector_store %arg8[%c0_316, %c0_317], %613 {strides = array<i32>} : memref<2x32xf32, #tpu.memory_space<vmem>>, vector<2x32xf32>,
      %cst_318 = arith.constant 0.000000e+00 : f32
      %615 = vector.broadcast %cst_318 : f32 to vector<2x32xf32>
      %c0_319 = arith.constant 0 : index
      %c0_320 = arith.constant 0 : index
      %616 = vector.load %arg9[%c0_319, %c0_320] : memref<2x32xf32, #tpu.memory_space<vmem>>, vector<2x32xf32>
      tpu.vector_store %arg9[%c0_319, %c0_320], %615 {strides = array<i32>} : memref<2x32xf32, #tpu.memory_space<vmem>>, vector<2x32xf32>,
      %cst_321 = arith.constant 0.000000e+00 : f32
      %617 = vector.broadcast %cst_321 : f32 to vector<2x32xf32>
      %c0_322 = arith.constant 0 : index
      %c0_323 = arith.constant 0 : index
      %618 = vector.load %arg10[%c0_322, %c0_323] : memref<2x32xf32, #tpu.memory_space<vmem>>, vector<2x32xf32>
      tpu.vector_store %arg10[%c0_322, %c0_323], %617 {strides = array<i32>} : memref<2x32xf32, #tpu.memory_space<vmem>>, vector<2x32xf32>,
    } else {
    }
    %c0 = arith.constant 0 : index
    %c0_1 = arith.constant 0 : index
    %c0_2 = arith.constant 0 : index
    %3 = vector.load %arg1[%c0, %c0_1, %c0_2] : memref<8x2x128xf32, #tpu.memory_space<vmem>>, vector<1x2x128xf32>
    %4 = vector.shape_cast %3 : vector<1x2x128xf32> to vector<2x128xf32>
    %c0_3 = arith.constant 0 : index
    %c0_4 = arith.constant 0 : index
    %5 = vector.load %arg7[%c0_3, %c0_4] : memref<2x32xf32, #tpu.memory_space<vmem>>, vector<2x32xf32>
    %c0_5 = arith.constant 0 : index
    %c0_6 = arith.constant 0 : index
    %6 = vector.load %arg8[%c0_5, %c0_6] : memref<2x32xf32, #tpu.memory_space<vmem>>, vector<2x32xf32>
    %7 = arith.truncf %5 : vector<2x32xf32> to vector<2x32xbf16>
    %c0_7 = arith.constant 0 : index
    %c0_8 = arith.constant 0 : index
    %8 = vector.load %arg3[%c0_7, %c0_8] : memref<32x128xbf16, #tpu.memory_space<vmem>>, vector<32x128xbf16>
    %cst = arith.constant dense<0.000000e+00> : vector<2x128xf32>
    %9 = tpu.matmul %7, %8, %cst {dimension_numbers = #tpu.dot_dimension_numbers<[1], [0], [0], [1], [0, 0, 1, 1], [], []>} : vector<2x32xbf16>, vector<32x128xbf16>, vector<2x128xf32> -> vector<2x128xf32>
    %10 = arith.addf %4, %9 : vector<2x128xf32>
    %11 = vector.extract_strided_slice %10 {offsets = [0, 0], sizes = [2, 32], strides = [1, 1]} : vector<2x128xf32> to vector<2x32xf32>
    %12 = arith.negf %11 : vector<2x32xf32>
    %13 = math.exp %12 : vector<2x32xf32>
    %cst_9 = arith.constant 1.000000e+00 : f32
    %14 = vector.broadcast %cst_9 : f32 to vector<2x32xf32>
    %15 = arith.addf %14, %13 : vector<2x32xf32>
    %16 = arith.divf %14, %15 : vector<2x32xf32>
    %17 = vector.extract_strided_slice %10 {offsets = [0, 32], sizes = [2, 32], strides = [1, 1]} : vector<2x128xf32> to vector<2x32xf32>
    %18 = arith.negf %17 : vector<2x32xf32>
    %19 = math.exp %18 : vector<2x32xf32>
    %cst_10 = arith.constant 1.000000e+00 : f32
    %20 = vector.broadcast %cst_10 : f32 to vector<2x32xf32>
    %21 = arith.addf %20, %19 : vector<2x32xf32>
    %22 = arith.divf %20, %21 : vector<2x32xf32>
    %23 = vector.extract_strided_slice %10 {offsets = [0, 64], sizes = [2, 32], strides = [1, 1]} : vector<2x128xf32> to vector<2x32xf32>
    %24 = math.tanh %23 : vector<2x32xf32>
    %25 = vector.extract_strided_slice %10 {offsets = [0, 96], sizes = [2, 32], strides = [1, 1]} : vector<2x128xf32> to vector<2x32xf32>
    %26 = arith.negf %25 : vector<2x32xf32>
    %27 = math.exp %26 : vector<2x32xf32>
    %cst_11 = arith.constant 1.000000e+00 : f32
    %28 = vector.broadcast %cst_11 : f32 to vector<2x32xf32>
    %29 = arith.addf %28, %27 : vector<2x32xf32>
    %30 = arith.divf %28, %29 : vector<2x32xf32>
    %31 = arith.mulf %22, %6 : vector<2x32xf32>
    %32 = arith.mulf %16, %24 : vector<2x32xf32>
    %33 = arith.addf %31, %32 : vector<2x32xf32>
    %34 = math.tanh %33 : vector<2x32xf32>
    %35 = arith.mulf %30, %34 : vector<2x32xf32>
    %c0_12 = arith.constant 0 : index
    %c0_13 = arith.constant 0 : index
    %36 = vector.load %arg7[%c0_12, %c0_13] : memref<2x32xf32, #tpu.memory_space<vmem>>, vector<2x32xf32>
    tpu.vector_store %arg7[%c0_12, %c0_13], %35 {strides = array<i32>} : memref<2x32xf32, #tpu.memory_space<vmem>>, vector<2x32xf32>,
    %c0_14 = arith.constant 0 : index
    %c0_15 = arith.constant 0 : index
    %37 = vector.load %arg8[%c0_14, %c0_15] : memref<2x32xf32, #tpu.memory_space<vmem>>, vector<2x32xf32>
    tpu.vector_store %arg8[%c0_14, %c0_15], %33 {strides = array<i32>} : memref<2x32xf32, #tpu.memory_space<vmem>>, vector<2x32xf32>,
    %c0_16 = arith.constant 0 : index
    %c0_17 = arith.constant 0 : index
    %c0_18 = arith.constant 0 : index
    %38 = vector.load %arg5[%c0_16, %c0_17, %c0_18] : memref<8x2x32xf32, #tpu.memory_space<vmem>>, vector<1x2x32xf32>
    %39 = vector.shape_cast %38 : vector<1x2x32xf32> to vector<2x32xf32>
    %40 = vector.shape_cast %35 : vector<2x32xf32> to vector<1x2x32xf32>
    tpu.vector_store %arg5[%c0_16, %c0_17, %c0_18], %40 {strides = array<i32>} : memref<8x2x32xf32, #tpu.memory_space<vmem>>, vector<1x2x32xf32>,
    %c7 = arith.constant 7 : index
    %c0_19 = arith.constant 0 : index
    %c0_20 = arith.constant 0 : index
    %41 = vector.load %arg2[%c7, %c0_19, %c0_20] : memref<8x2x128xf32, #tpu.memory_space<vmem>>, vector<1x2x128xf32>
    %42 = vector.shape_cast %41 : vector<1x2x128xf32> to vector<2x128xf32>
    %c0_21 = arith.constant 0 : index
    %c0_22 = arith.constant 0 : index
    %43 = vector.load %arg9[%c0_21, %c0_22] : memref<2x32xf32, #tpu.memory_space<vmem>>, vector<2x32xf32>
    %c0_23 = arith.constant 0 : index
    %c0_24 = arith.constant 0 : index
    %44 = vector.load %arg10[%c0_23, %c0_24] : memref<2x32xf32, #tpu.memory_space<vmem>>, vector<2x32xf32>
    %45 = arith.truncf %43 : vector<2x32xf32> to vector<2x32xbf16>
    %c0_25 = arith.constant 0 : index
    %c0_26 = arith.constant 0 : index
    %46 = vector.load %arg4[%c0_25, %c0_26] : memref<32x128xbf16, #tpu.memory_space<vmem>>, vector<32x128xbf16>
    %cst_27 = arith.constant dense<0.000000e+00> : vector<2x128xf32>
    %47 = tpu.matmul %45, %46, %cst_27 {dimension_numbers = #tpu.dot_dimension_numbers<[1], [0], [0], [1], [0, 0, 1, 1], [], []>} : vector<2x32xbf16>, vector<32x128xbf16>, vector<2x128xf32> -> vector<2x128xf32>
    %48 = arith.addf %42, %47 : vector<2x128xf32>
    %49 = vector.extract_strided_slice %48 {offsets = [0, 0], sizes = [2, 32], strides = [1, 1]} : vector<2x128xf32> to vector<2x32xf32>
    %50 = arith.negf %49 : vector<2x32xf32>
    %51 = math.exp %50 : vector<2x32xf32>
    %cst_28 = arith.constant 1.000000e+00 : f32
    %52 = vector.broadcast %cst_28 : f32 to vector<2x32xf32>
    %53 = arith.addf %52, %51 : vector<2x32xf32>
    %54 = arith.divf %52, %53 : vector<2x32xf32>
    %55 = vector.extract_strided_slice %48 {offsets = [0, 32], sizes = [2, 32], strides = [1, 1]} : vector<2x128xf32> to vector<2x32xf32>
    %56 = arith.negf %55 : vector<2x32xf32>
    %57 = math.exp %56 : vector<2x32xf32>
    %cst_29 = arith.constant 1.000000e+00 : f32
    %58 = vector.broadcast %cst_29 : f32 to vector<2x32xf32>
    %59 = arith.addf %58, %57 : vector<2x32xf32>
    %60 = arith.divf %58, %59 : vector<2x32xf32>
    %61 = vector.extract_strided_slice %48 {offsets = [0, 64], sizes = [2, 32], strides = [1, 1]} : vector<2x128xf32> to vector<2x32xf32>
    %62 = math.tanh %61 : vector<2x32xf32>
    %63 = vector.extract_strided_slice %48 {offsets = [0, 96], sizes = [2, 32], strides = [1, 1]} : vector<2x128xf32> to vector<2x32xf32>
    %64 = arith.negf %63 : vector<2x32xf32>
    %65 = math.exp %64 : vector<2x32xf32>
    %cst_30 = arith.constant 1.000000e+00 : f32
    %66 = vector.broadcast %cst_30 : f32 to vector<2x32xf32>
    %67 = arith.addf %66, %65 : vector<2x32xf32>
    %68 = arith.divf %66, %67 : vector<2x32xf32>
    %69 = arith.mulf %60, %44 : vector<2x32xf32>
    %70 = arith.mulf %54, %62 : vector<2x32xf32>
    %71 = arith.addf %69, %70 : vector<2x32xf32>
    %72 = math.tanh %71 : vector<2x32xf32>
    %73 = arith.mulf %68, %72 : vector<2x32xf32>
    %c0_31 = arith.constant 0 : index
    %c0_32 = arith.constant 0 : index
    %74 = vector.load %arg9[%c0_31, %c0_32] : memref<2x32xf32, #tpu.memory_space<vmem>>, vector<2x32xf32>
    tpu.vector_store %arg9[%c0_31, %c0_32], %73 {strides = array<i32>} : memref<2x32xf32, #tpu.memory_space<vmem>>, vector<2x32xf32>,
    %c0_33 = arith.constant 0 : index
    %c0_34 = arith.constant 0 : index
    %75 = vector.load %arg10[%c0_33, %c0_34] : memref<2x32xf32, #tpu.memory_space<vmem>>, vector<2x32xf32>
    tpu.vector_store %arg10[%c0_33, %c0_34], %71 {strides = array<i32>} : memref<2x32xf32, #tpu.memory_space<vmem>>, vector<2x32xf32>,
    %c7_35 = arith.constant 7 : index
    %c0_36 = arith.constant 0 : index
    %c0_37 = arith.constant 0 : index
    %76 = vector.load %arg6[%c7_35, %c0_36, %c0_37] : memref<8x2x32xf32, #tpu.memory_space<vmem>>, vector<1x2x32xf32>
    %77 = vector.shape_cast %76 : vector<1x2x32xf32> to vector<2x32xf32>
    %78 = vector.shape_cast %73 : vector<2x32xf32> to vector<1x2x32xf32>
    tpu.vector_store %arg6[%c7_35, %c0_36, %c0_37], %78 {strides = array<i32>} : memref<8x2x32xf32, #tpu.memory_space<vmem>>, vector<1x2x32xf32>,
    %c1 = arith.constant 1 : index
    %c0_38 = arith.constant 0 : index
    %c0_39 = arith.constant 0 : index
    %79 = vector.load %arg1[%c1, %c0_38, %c0_39] : memref<8x2x128xf32, #tpu.memory_space<vmem>>, vector<1x2x128xf32>
    %80 = vector.shape_cast %79 : vector<1x2x128xf32> to vector<2x128xf32>
    %c0_40 = arith.constant 0 : index
    %c0_41 = arith.constant 0 : index
    %81 = vector.load %arg7[%c0_40, %c0_41] : memref<2x32xf32, #tpu.memory_space<vmem>>, vector<2x32xf32>
    %c0_42 = arith.constant 0 : index
    %c0_43 = arith.constant 0 : index
    %82 = vector.load %arg8[%c0_42, %c0_43] : memref<2x32xf32, #tpu.memory_space<vmem>>, vector<2x32xf32>
    %83 = arith.truncf %81 : vector<2x32xf32> to vector<2x32xbf16>
    %c0_44 = arith.constant 0 : index
    %c0_45 = arith.constant 0 : index
    %84 = vector.load %arg3[%c0_44, %c0_45] : memref<32x128xbf16, #tpu.memory_space<vmem>>, vector<32x128xbf16>
    %cst_46 = arith.constant dense<0.000000e+00> : vector<2x128xf32>
    %85 = tpu.matmul %83, %84, %cst_46 {dimension_numbers = #tpu.dot_dimension_numbers<[1], [0], [0], [1], [0, 0, 1, 1], [], []>} : vector<2x32xbf16>, vector<32x128xbf16>, vector<2x128xf32> -> vector<2x128xf32>
    %86 = arith.addf %80, %85 : vector<2x128xf32>
    %87 = vector.extract_strided_slice %86 {offsets = [0, 0], sizes = [2, 32], strides = [1, 1]} : vector<2x128xf32> to vector<2x32xf32>
    %88 = arith.negf %87 : vector<2x32xf32>
    %89 = math.exp %88 : vector<2x32xf32>
    %cst_47 = arith.constant 1.000000e+00 : f32
    %90 = vector.broadcast %cst_47 : f32 to vector<2x32xf32>
    %91 = arith.addf %90, %89 : vector<2x32xf32>
    %92 = arith.divf %90, %91 : vector<2x32xf32>
    %93 = vector.extract_strided_slice %86 {offsets = [0, 32], sizes = [2, 32], strides = [1, 1]} : vector<2x128xf32> to vector<2x32xf32>
    %94 = arith.negf %93 : vector<2x32xf32>
    %95 = math.exp %94 : vector<2x32xf32>
    %cst_48 = arith.constant 1.000000e+00 : f32
    %96 = vector.broadcast %cst_48 : f32 to vector<2x32xf32>
    %97 = arith.addf %96, %95 : vector<2x32xf32>
    %98 = arith.divf %96, %97 : vector<2x32xf32>
    %99 = vector.extract_strided_slice %86 {offsets = [0, 64], sizes = [2, 32], strides = [1, 1]} : vector<2x128xf32> to vector<2x32xf32>
    %100 = math.tanh %99 : vector<2x32xf32>
    %101 = vector.extract_strided_slice %86 {offsets = [0, 96], sizes = [2, 32], strides = [1, 1]} : vector<2x128xf32> to vector<2x32xf32>
    %102 = arith.negf %101 : vector<2x32xf32>
    %103 = math.exp %102 : vector<2x32xf32>
    %cst_49 = arith.constant 1.000000e+00 : f32
    %104 = vector.broadcast %cst_49 : f32 to vector<2x32xf32>
    %105 = arith.addf %104, %103 : vector<2x32xf32>
    %106 = arith.divf %104, %105 : vector<2x32xf32>
    %107 = arith.mulf %98, %82 : vector<2x32xf32>
    %108 = arith.mulf %92, %100 : vector<2x32xf32>
    %109 = arith.addf %107, %108 : vector<2x32xf32>
    %110 = math.tanh %109 : vector<2x32xf32>
    %111 = arith.mulf %106, %110 : vector<2x32xf32>
    %c0_50 = arith.constant 0 : index
    %c0_51 = arith.constant 0 : index
    %112 = vector.load %arg7[%c0_50, %c0_51] : memref<2x32xf32, #tpu.memory_space<vmem>>, vector<2x32xf32>
    tpu.vector_store %arg7[%c0_50, %c0_51], %111 {strides = array<i32>} : memref<2x32xf32, #tpu.memory_space<vmem>>, vector<2x32xf32>,
    %c0_52 = arith.constant 0 : index
    %c0_53 = arith.constant 0 : index
    %113 = vector.load %arg8[%c0_52, %c0_53] : memref<2x32xf32, #tpu.memory_space<vmem>>, vector<2x32xf32>
    tpu.vector_store %arg8[%c0_52, %c0_53], %109 {strides = array<i32>} : memref<2x32xf32, #tpu.memory_space<vmem>>, vector<2x32xf32>,
    %c1_54 = arith.constant 1 : index
    %c0_55 = arith.constant 0 : index
    %c0_56 = arith.constant 0 : index
    %114 = vector.load %arg5[%c1_54, %c0_55, %c0_56] : memref<8x2x32xf32, #tpu.memory_space<vmem>>, vector<1x2x32xf32>
    %115 = vector.shape_cast %114 : vector<1x2x32xf32> to vector<2x32xf32>
    %116 = vector.shape_cast %111 : vector<2x32xf32> to vector<1x2x32xf32>
    tpu.vector_store %arg5[%c1_54, %c0_55, %c0_56], %116 {strides = array<i32>} : memref<8x2x32xf32, #tpu.memory_space<vmem>>, vector<1x2x32xf32>,
    %c6 = arith.constant 6 : index
    %c0_57 = arith.constant 0 : index
    %c0_58 = arith.constant 0 : index
    %117 = vector.load %arg2[%c6, %c0_57, %c0_58] : memref<8x2x128xf32, #tpu.memory_space<vmem>>, vector<1x2x128xf32>
    %118 = vector.shape_cast %117 : vector<1x2x128xf32> to vector<2x128xf32>
    %c0_59 = arith.constant 0 : index
    %c0_60 = arith.constant 0 : index
    %119 = vector.load %arg9[%c0_59, %c0_60] : memref<2x32xf32, #tpu.memory_space<vmem>>, vector<2x32xf32>
    %c0_61 = arith.constant 0 : index
    %c0_62 = arith.constant 0 : index
    %120 = vector.load %arg10[%c0_61, %c0_62] : memref<2x32xf32, #tpu.memory_space<vmem>>, vector<2x32xf32>
    %121 = arith.truncf %119 : vector<2x32xf32> to vector<2x32xbf16>
    %c0_63 = arith.constant 0 : index
    %c0_64 = arith.constant 0 : index
    %122 = vector.load %arg4[%c0_63, %c0_64] : memref<32x128xbf16, #tpu.memory_space<vmem>>, vector<32x128xbf16>
    %cst_65 = arith.constant dense<0.000000e+00> : vector<2x128xf32>
    %123 = tpu.matmul %121, %122, %cst_65 {dimension_numbers = #tpu.dot_dimension_numbers<[1], [0], [0], [1], [0, 0, 1, 1], [], []>} : vector<2x32xbf16>, vector<32x128xbf16>, vector<2x128xf32> -> vector<2x128xf32>
    %124 = arith.addf %118, %123 : vector<2x128xf32>
    %125 = vector.extract_strided_slice %124 {offsets = [0, 0], sizes = [2, 32], strides = [1, 1]} : vector<2x128xf32> to vector<2x32xf32>
    %126 = arith.negf %125 : vector<2x32xf32>
    %127 = math.exp %126 : vector<2x32xf32>
    %cst_66 = arith.constant 1.000000e+00 : f32
    %128 = vector.broadcast %cst_66 : f32 to vector<2x32xf32>
    %129 = arith.addf %128, %127 : vector<2x32xf32>
    %130 = arith.divf %128, %129 : vector<2x32xf32>
    %131 = vector.extract_strided_slice %124 {offsets = [0, 32], sizes = [2, 32], strides = [1, 1]} : vector<2x128xf32> to vector<2x32xf32>
    %132 = arith.negf %131 : vector<2x32xf32>
    %133 = math.exp %132 : vector<2x32xf32>
    %cst_67 = arith.constant 1.000000e+00 : f32
    %134 = vector.broadcast %cst_67 : f32 to vector<2x32xf32>
    %135 = arith.addf %134, %133 : vector<2x32xf32>
    %136 = arith.divf %134, %135 : vector<2x32xf32>
    %137 = vector.extract_strided_slice %124 {offsets = [0, 64], sizes = [2, 32], strides = [1, 1]} : vector<2x128xf32> to vector<2x32xf32>
    %138 = math.tanh %137 : vector<2x32xf32>
    %139 = vector.extract_strided_slice %124 {offsets = [0, 96], sizes = [2, 32], strides = [1, 1]} : vector<2x128xf32> to vector<2x32xf32>
    %140 = arith.negf %139 : vector<2x32xf32>
    %141 = math.exp %140 : vector<2x32xf32>
    %cst_68 = arith.constant 1.000000e+00 : f32
    %142 = vector.broadcast %cst_68 : f32 to vector<2x32xf32>
    %143 = arith.addf %142, %141 : vector<2x32xf32>
    %144 = arith.divf %142, %143 : vector<2x32xf32>
    %145 = arith.mulf %136, %120 : vector<2x32xf32>
    %146 = arith.mulf %130, %138 : vector<2x32xf32>
    %147 = arith.addf %145, %146 : vector<2x32xf32>
    %148 = math.tanh %147 : vector<2x32xf32>
    %149 = arith.mulf %144, %148 : vector<2x32xf32>
    %c0_69 = arith.constant 0 : index
    %c0_70 = arith.constant 0 : index
    %150 = vector.load %arg9[%c0_69, %c0_70] : memref<2x32xf32, #tpu.memory_space<vmem>>, vector<2x32xf32>
    tpu.vector_store %arg9[%c0_69, %c0_70], %149 {strides = array<i32>} : memref<2x32xf32, #tpu.memory_space<vmem>>, vector<2x32xf32>,
    %c0_71 = arith.constant 0 : index
    %c0_72 = arith.constant 0 : index
    %151 = vector.load %arg10[%c0_71, %c0_72] : memref<2x32xf32, #tpu.memory_space<vmem>>, vector<2x32xf32>
    tpu.vector_store %arg10[%c0_71, %c0_72], %147 {strides = array<i32>} : memref<2x32xf32, #tpu.memory_space<vmem>>, vector<2x32xf32>,
    %c6_73 = arith.constant 6 : index
    %c0_74 = arith.constant 0 : index
    %c0_75 = arith.constant 0 : index
    %152 = vector.load %arg6[%c6_73, %c0_74, %c0_75] : memref<8x2x32xf32, #tpu.memory_space<vmem>>, vector<1x2x32xf32>
    %153 = vector.shape_cast %152 : vector<1x2x32xf32> to vector<2x32xf32>
    %154 = vector.shape_cast %149 : vector<2x32xf32> to vector<1x2x32xf32>
    tpu.vector_store %arg6[%c6_73, %c0_74, %c0_75], %154 {strides = array<i32>} : memref<8x2x32xf32, #tpu.memory_space<vmem>>, vector<1x2x32xf32>,
    %c2 = arith.constant 2 : index
    %c0_76 = arith.constant 0 : index
    %c0_77 = arith.constant 0 : index
    %155 = vector.load %arg1[%c2, %c0_76, %c0_77] : memref<8x2x128xf32, #tpu.memory_space<vmem>>, vector<1x2x128xf32>
    %156 = vector.shape_cast %155 : vector<1x2x128xf32> to vector<2x128xf32>
    %c0_78 = arith.constant 0 : index
    %c0_79 = arith.constant 0 : index
    %157 = vector.load %arg7[%c0_78, %c0_79] : memref<2x32xf32, #tpu.memory_space<vmem>>, vector<2x32xf32>
    %c0_80 = arith.constant 0 : index
    %c0_81 = arith.constant 0 : index
    %158 = vector.load %arg8[%c0_80, %c0_81] : memref<2x32xf32, #tpu.memory_space<vmem>>, vector<2x32xf32>
    %159 = arith.truncf %157 : vector<2x32xf32> to vector<2x32xbf16>
    %c0_82 = arith.constant 0 : index
    %c0_83 = arith.constant 0 : index
    %160 = vector.load %arg3[%c0_82, %c0_83] : memref<32x128xbf16, #tpu.memory_space<vmem>>, vector<32x128xbf16>
    %cst_84 = arith.constant dense<0.000000e+00> : vector<2x128xf32>
    %161 = tpu.matmul %159, %160, %cst_84 {dimension_numbers = #tpu.dot_dimension_numbers<[1], [0], [0], [1], [0, 0, 1, 1], [], []>} : vector<2x32xbf16>, vector<32x128xbf16>, vector<2x128xf32> -> vector<2x128xf32>
    %162 = arith.addf %156, %161 : vector<2x128xf32>
    %163 = vector.extract_strided_slice %162 {offsets = [0, 0], sizes = [2, 32], strides = [1, 1]} : vector<2x128xf32> to vector<2x32xf32>
    %164 = arith.negf %163 : vector<2x32xf32>
    %165 = math.exp %164 : vector<2x32xf32>
    %cst_85 = arith.constant 1.000000e+00 : f32
    %166 = vector.broadcast %cst_85 : f32 to vector<2x32xf32>
    %167 = arith.addf %166, %165 : vector<2x32xf32>
    %168 = arith.divf %166, %167 : vector<2x32xf32>
    %169 = vector.extract_strided_slice %162 {offsets = [0, 32], sizes = [2, 32], strides = [1, 1]} : vector<2x128xf32> to vector<2x32xf32>
    %170 = arith.negf %169 : vector<2x32xf32>
    %171 = math.exp %170 : vector<2x32xf32>
    %cst_86 = arith.constant 1.000000e+00 : f32
    %172 = vector.broadcast %cst_86 : f32 to vector<2x32xf32>
    %173 = arith.addf %172, %171 : vector<2x32xf32>
    %174 = arith.divf %172, %173 : vector<2x32xf32>
    %175 = vector.extract_strided_slice %162 {offsets = [0, 64], sizes = [2, 32], strides = [1, 1]} : vector<2x128xf32> to vector<2x32xf32>
    %176 = math.tanh %175 : vector<2x32xf32>
    %177 = vector.extract_strided_slice %162 {offsets = [0, 96], sizes = [2, 32], strides = [1, 1]} : vector<2x128xf32> to vector<2x32xf32>
    %178 = arith.negf %177 : vector<2x32xf32>
    %179 = math.exp %178 : vector<2x32xf32>
    %cst_87 = arith.constant 1.000000e+00 : f32
    %180 = vector.broadcast %cst_87 : f32 to vector<2x32xf32>
    %181 = arith.addf %180, %179 : vector<2x32xf32>
    %182 = arith.divf %180, %181 : vector<2x32xf32>
    %183 = arith.mulf %174, %158 : vector<2x32xf32>
    %184 = arith.mulf %168, %176 : vector<2x32xf32>
    %185 = arith.addf %183, %184 : vector<2x32xf32>
    %186 = math.tanh %185 : vector<2x32xf32>
    %187 = arith.mulf %182, %186 : vector<2x32xf32>
    %c0_88 = arith.constant 0 : index
    %c0_89 = arith.constant 0 : index
    %188 = vector.load %arg7[%c0_88, %c0_89] : memref<2x32xf32, #tpu.memory_space<vmem>>, vector<2x32xf32>
    tpu.vector_store %arg7[%c0_88, %c0_89], %187 {strides = array<i32>} : memref<2x32xf32, #tpu.memory_space<vmem>>, vector<2x32xf32>,
    %c0_90 = arith.constant 0 : index
    %c0_91 = arith.constant 0 : index
    %189 = vector.load %arg8[%c0_90, %c0_91] : memref<2x32xf32, #tpu.memory_space<vmem>>, vector<2x32xf32>
    tpu.vector_store %arg8[%c0_90, %c0_91], %185 {strides = array<i32>} : memref<2x32xf32, #tpu.memory_space<vmem>>, vector<2x32xf32>,
    %c2_92 = arith.constant 2 : index
    %c0_93 = arith.constant 0 : index
    %c0_94 = arith.constant 0 : index
    %190 = vector.load %arg5[%c2_92, %c0_93, %c0_94] : memref<8x2x32xf32, #tpu.memory_space<vmem>>, vector<1x2x32xf32>
    %191 = vector.shape_cast %190 : vector<1x2x32xf32> to vector<2x32xf32>
    %192 = vector.shape_cast %187 : vector<2x32xf32> to vector<1x2x32xf32>
    tpu.vector_store %arg5[%c2_92, %c0_93, %c0_94], %192 {strides = array<i32>} : memref<8x2x32xf32, #tpu.memory_space<vmem>>, vector<1x2x32xf32>,
    %c5 = arith.constant 5 : index
    %c0_95 = arith.constant 0 : index
    %c0_96 = arith.constant 0 : index
    %193 = vector.load %arg2[%c5, %c0_95, %c0_96] : memref<8x2x128xf32, #tpu.memory_space<vmem>>, vector<1x2x128xf32>
    %194 = vector.shape_cast %193 : vector<1x2x128xf32> to vector<2x128xf32>
    %c0_97 = arith.constant 0 : index
    %c0_98 = arith.constant 0 : index
    %195 = vector.load %arg9[%c0_97, %c0_98] : memref<2x32xf32, #tpu.memory_space<vmem>>, vector<2x32xf32>
    %c0_99 = arith.constant 0 : index
    %c0_100 = arith.constant 0 : index
    %196 = vector.load %arg10[%c0_99, %c0_100] : memref<2x32xf32, #tpu.memory_space<vmem>>, vector<2x32xf32>
    %197 = arith.truncf %195 : vector<2x32xf32> to vector<2x32xbf16>
    %c0_101 = arith.constant 0 : index
    %c0_102 = arith.constant 0 : index
    %198 = vector.load %arg4[%c0_101, %c0_102] : memref<32x128xbf16, #tpu.memory_space<vmem>>, vector<32x128xbf16>
    %cst_103 = arith.constant dense<0.000000e+00> : vector<2x128xf32>
    %199 = tpu.matmul %197, %198, %cst_103 {dimension_numbers = #tpu.dot_dimension_numbers<[1], [0], [0], [1], [0, 0, 1, 1], [], []>} : vector<2x32xbf16>, vector<32x128xbf16>, vector<2x128xf32> -> vector<2x128xf32>
    %200 = arith.addf %194, %199 : vector<2x128xf32>
    %201 = vector.extract_strided_slice %200 {offsets = [0, 0], sizes = [2, 32], strides = [1, 1]} : vector<2x128xf32> to vector<2x32xf32>
    %202 = arith.negf %201 : vector<2x32xf32>
    %203 = math.exp %202 : vector<2x32xf32>
    %cst_104 = arith.constant 1.000000e+00 : f32
    %204 = vector.broadcast %cst_104 : f32 to vector<2x32xf32>
    %205 = arith.addf %204, %203 : vector<2x32xf32>
    %206 = arith.divf %204, %205 : vector<2x32xf32>
    %207 = vector.extract_strided_slice %200 {offsets = [0, 32], sizes = [2, 32], strides = [1, 1]} : vector<2x128xf32> to vector<2x32xf32>
    %208 = arith.negf %207 : vector<2x32xf32>
    %209 = math.exp %208 : vector<2x32xf32>
    %cst_105 = arith.constant 1.000000e+00 : f32
    %210 = vector.broadcast %cst_105 : f32 to vector<2x32xf32>
    %211 = arith.addf %210, %209 : vector<2x32xf32>
    %212 = arith.divf %210, %211 : vector<2x32xf32>
    %213 = vector.extract_strided_slice %200 {offsets = [0, 64], sizes = [2, 32], strides = [1, 1]} : vector<2x128xf32> to vector<2x32xf32>
    %214 = math.tanh %213 : vector<2x32xf32>
    %215 = vector.extract_strided_slice %200 {offsets = [0, 96], sizes = [2, 32], strides = [1, 1]} : vector<2x128xf32> to vector<2x32xf32>
    %216 = arith.negf %215 : vector<2x32xf32>
    %217 = math.exp %216 : vector<2x32xf32>
    %cst_106 = arith.constant 1.000000e+00 : f32
    %218 = vector.broadcast %cst_106 : f32 to vector<2x32xf32>
    %219 = arith.addf %218, %217 : vector<2x32xf32>
    %220 = arith.divf %218, %219 : vector<2x32xf32>
    %221 = arith.mulf %212, %196 : vector<2x32xf32>
    %222 = arith.mulf %206, %214 : vector<2x32xf32>
    %223 = arith.addf %221, %222 : vector<2x32xf32>
    %224 = math.tanh %223 : vector<2x32xf32>
    %225 = arith.mulf %220, %224 : vector<2x32xf32>
    %c0_107 = arith.constant 0 : index
    %c0_108 = arith.constant 0 : index
    %226 = vector.load %arg9[%c0_107, %c0_108] : memref<2x32xf32, #tpu.memory_space<vmem>>, vector<2x32xf32>
    tpu.vector_store %arg9[%c0_107, %c0_108], %225 {strides = array<i32>} : memref<2x32xf32, #tpu.memory_space<vmem>>, vector<2x32xf32>,
    %c0_109 = arith.constant 0 : index
    %c0_110 = arith.constant 0 : index
    %227 = vector.load %arg10[%c0_109, %c0_110] : memref<2x32xf32, #tpu.memory_space<vmem>>, vector<2x32xf32>
    tpu.vector_store %arg10[%c0_109, %c0_110], %223 {strides = array<i32>} : memref<2x32xf32, #tpu.memory_space<vmem>>, vector<2x32xf32>,
    %c5_111 = arith.constant 5 : index
    %c0_112 = arith.constant 0 : index
    %c0_113 = arith.constant 0 : index
    %228 = vector.load %arg6[%c5_111, %c0_112, %c0_113] : memref<8x2x32xf32, #tpu.memory_space<vmem>>, vector<1x2x32xf32>
    %229 = vector.shape_cast %228 : vector<1x2x32xf32> to vector<2x32xf32>
    %230 = vector.shape_cast %225 : vector<2x32xf32> to vector<1x2x32xf32>
    tpu.vector_store %arg6[%c5_111, %c0_112, %c0_113], %230 {strides = array<i32>} : memref<8x2x32xf32, #tpu.memory_space<vmem>>, vector<1x2x32xf32>,
    %c3 = arith.constant 3 : index
    %c0_114 = arith.constant 0 : index
    %c0_115 = arith.constant 0 : index
    %231 = vector.load %arg1[%c3, %c0_114, %c0_115] : memref<8x2x128xf32, #tpu.memory_space<vmem>>, vector<1x2x128xf32>
    %232 = vector.shape_cast %231 : vector<1x2x128xf32> to vector<2x128xf32>
    %c0_116 = arith.constant 0 : index
    %c0_117 = arith.constant 0 : index
    %233 = vector.load %arg7[%c0_116, %c0_117] : memref<2x32xf32, #tpu.memory_space<vmem>>, vector<2x32xf32>
    %c0_118 = arith.constant 0 : index
    %c0_119 = arith.constant 0 : index
    %234 = vector.load %arg8[%c0_118, %c0_119] : memref<2x32xf32, #tpu.memory_space<vmem>>, vector<2x32xf32>
    %235 = arith.truncf %233 : vector<2x32xf32> to vector<2x32xbf16>
    %c0_120 = arith.constant 0 : index
    %c0_121 = arith.constant 0 : index
    %236 = vector.load %arg3[%c0_120, %c0_121] : memref<32x128xbf16, #tpu.memory_space<vmem>>, vector<32x128xbf16>
    %cst_122 = arith.constant dense<0.000000e+00> : vector<2x128xf32>
    %237 = tpu.matmul %235, %236, %cst_122 {dimension_numbers = #tpu.dot_dimension_numbers<[1], [0], [0], [1], [0, 0, 1, 1], [], []>} : vector<2x32xbf16>, vector<32x128xbf16>, vector<2x128xf32> -> vector<2x128xf32>
    %238 = arith.addf %232, %237 : vector<2x128xf32>
    %239 = vector.extract_strided_slice %238 {offsets = [0, 0], sizes = [2, 32], strides = [1, 1]} : vector<2x128xf32> to vector<2x32xf32>
    %240 = arith.negf %239 : vector<2x32xf32>
    %241 = math.exp %240 : vector<2x32xf32>
    %cst_123 = arith.constant 1.000000e+00 : f32
    %242 = vector.broadcast %cst_123 : f32 to vector<2x32xf32>
    %243 = arith.addf %242, %241 : vector<2x32xf32>
    %244 = arith.divf %242, %243 : vector<2x32xf32>
    %245 = vector.extract_strided_slice %238 {offsets = [0, 32], sizes = [2, 32], strides = [1, 1]} : vector<2x128xf32> to vector<2x32xf32>
    %246 = arith.negf %245 : vector<2x32xf32>
    %247 = math.exp %246 : vector<2x32xf32>
    %cst_124 = arith.constant 1.000000e+00 : f32
    %248 = vector.broadcast %cst_124 : f32 to vector<2x32xf32>
    %249 = arith.addf %248, %247 : vector<2x32xf32>
    %250 = arith.divf %248, %249 : vector<2x32xf32>
    %251 = vector.extract_strided_slice %238 {offsets = [0, 64], sizes = [2, 32], strides = [1, 1]} : vector<2x128xf32> to vector<2x32xf32>
    %252 = math.tanh %251 : vector<2x32xf32>
    %253 = vector.extract_strided_slice %238 {offsets = [0, 96], sizes = [2, 32], strides = [1, 1]} : vector<2x128xf32> to vector<2x32xf32>
    %254 = arith.negf %253 : vector<2x32xf32>
    %255 = math.exp %254 : vector<2x32xf32>
    %cst_125 = arith.constant 1.000000e+00 : f32
    %256 = vector.broadcast %cst_125 : f32 to vector<2x32xf32>
    %257 = arith.addf %256, %255 : vector<2x32xf32>
    %258 = arith.divf %256, %257 : vector<2x32xf32>
    %259 = arith.mulf %250, %234 : vector<2x32xf32>
    %260 = arith.mulf %244, %252 : vector<2x32xf32>
    %261 = arith.addf %259, %260 : vector<2x32xf32>
    %262 = math.tanh %261 : vector<2x32xf32>
    %263 = arith.mulf %258, %262 : vector<2x32xf32>
    %c0_126 = arith.constant 0 : index
    %c0_127 = arith.constant 0 : index
    %264 = vector.load %arg7[%c0_126, %c0_127] : memref<2x32xf32, #tpu.memory_space<vmem>>, vector<2x32xf32>
    tpu.vector_store %arg7[%c0_126, %c0_127], %263 {strides = array<i32>} : memref<2x32xf32, #tpu.memory_space<vmem>>, vector<2x32xf32>,
    %c0_128 = arith.constant 0 : index
    %c0_129 = arith.constant 0 : index
    %265 = vector.load %arg8[%c0_128, %c0_129] : memref<2x32xf32, #tpu.memory_space<vmem>>, vector<2x32xf32>
    tpu.vector_store %arg8[%c0_128, %c0_129], %261 {strides = array<i32>} : memref<2x32xf32, #tpu.memory_space<vmem>>, vector<2x32xf32>,
    %c3_130 = arith.constant 3 : index
    %c0_131 = arith.constant 0 : index
    %c0_132 = arith.constant 0 : index
    %266 = vector.load %arg5[%c3_130, %c0_131, %c0_132] : memref<8x2x32xf32, #tpu.memory_space<vmem>>, vector<1x2x32xf32>
    %267 = vector.shape_cast %266 : vector<1x2x32xf32> to vector<2x32xf32>
    %268 = vector.shape_cast %263 : vector<2x32xf32> to vector<1x2x32xf32>
    tpu.vector_store %arg5[%c3_130, %c0_131, %c0_132], %268 {strides = array<i32>} : memref<8x2x32xf32, #tpu.memory_space<vmem>>, vector<1x2x32xf32>,
    %c4 = arith.constant 4 : index
    %c0_133 = arith.constant 0 : index
    %c0_134 = arith.constant 0 : index
    %269 = vector.load %arg2[%c4, %c0_133, %c0_134] : memref<8x2x128xf32, #tpu.memory_space<vmem>>, vector<1x2x128xf32>
    %270 = vector.shape_cast %269 : vector<1x2x128xf32> to vector<2x128xf32>
    %c0_135 = arith.constant 0 : index
    %c0_136 = arith.constant 0 : index
    %271 = vector.load %arg9[%c0_135, %c0_136] : memref<2x32xf32, #tpu.memory_space<vmem>>, vector<2x32xf32>
    %c0_137 = arith.constant 0 : index
    %c0_138 = arith.constant 0 : index
    %272 = vector.load %arg10[%c0_137, %c0_138] : memref<2x32xf32, #tpu.memory_space<vmem>>, vector<2x32xf32>
    %273 = arith.truncf %271 : vector<2x32xf32> to vector<2x32xbf16>
    %c0_139 = arith.constant 0 : index
    %c0_140 = arith.constant 0 : index
    %274 = vector.load %arg4[%c0_139, %c0_140] : memref<32x128xbf16, #tpu.memory_space<vmem>>, vector<32x128xbf16>
    %cst_141 = arith.constant dense<0.000000e+00> : vector<2x128xf32>
    %275 = tpu.matmul %273, %274, %cst_141 {dimension_numbers = #tpu.dot_dimension_numbers<[1], [0], [0], [1], [0, 0, 1, 1], [], []>} : vector<2x32xbf16>, vector<32x128xbf16>, vector<2x128xf32> -> vector<2x128xf32>
    %276 = arith.addf %270, %275 : vector<2x128xf32>
    %277 = vector.extract_strided_slice %276 {offsets = [0, 0], sizes = [2, 32], strides = [1, 1]} : vector<2x128xf32> to vector<2x32xf32>
    %278 = arith.negf %277 : vector<2x32xf32>
    %279 = math.exp %278 : vector<2x32xf32>
    %cst_142 = arith.constant 1.000000e+00 : f32
    %280 = vector.broadcast %cst_142 : f32 to vector<2x32xf32>
    %281 = arith.addf %280, %279 : vector<2x32xf32>
    %282 = arith.divf %280, %281 : vector<2x32xf32>
    %283 = vector.extract_strided_slice %276 {offsets = [0, 32], sizes = [2, 32], strides = [1, 1]} : vector<2x128xf32> to vector<2x32xf32>
    %284 = arith.negf %283 : vector<2x32xf32>
    %285 = math.exp %284 : vector<2x32xf32>
    %cst_143 = arith.constant 1.000000e+00 : f32
    %286 = vector.broadcast %cst_143 : f32 to vector<2x32xf32>
    %287 = arith.addf %286, %285 : vector<2x32xf32>
    %288 = arith.divf %286, %287 : vector<2x32xf32>
    %289 = vector.extract_strided_slice %276 {offsets = [0, 64], sizes = [2, 32], strides = [1, 1]} : vector<2x128xf32> to vector<2x32xf32>
    %290 = math.tanh %289 : vector<2x32xf32>
    %291 = vector.extract_strided_slice %276 {offsets = [0, 96], sizes = [2, 32], strides = [1, 1]} : vector<2x128xf32> to vector<2x32xf32>
    %292 = arith.negf %291 : vector<2x32xf32>
    %293 = math.exp %292 : vector<2x32xf32>
    %cst_144 = arith.constant 1.000000e+00 : f32
    %294 = vector.broadcast %cst_144 : f32 to vector<2x32xf32>
    %295 = arith.addf %294, %293 : vector<2x32xf32>
    %296 = arith.divf %294, %295 : vector<2x32xf32>
    %297 = arith.mulf %288, %272 : vector<2x32xf32>
    %298 = arith.mulf %282, %290 : vector<2x32xf32>
    %299 = arith.addf %297, %298 : vector<2x32xf32>
    %300 = math.tanh %299 : vector<2x32xf32>
    %301 = arith.mulf %296, %300 : vector<2x32xf32>
    %c0_145 = arith.constant 0 : index
    %c0_146 = arith.constant 0 : index
    %302 = vector.load %arg9[%c0_145, %c0_146] : memref<2x32xf32, #tpu.memory_space<vmem>>, vector<2x32xf32>
    tpu.vector_store %arg9[%c0_145, %c0_146], %301 {strides = array<i32>} : memref<2x32xf32, #tpu.memory_space<vmem>>, vector<2x32xf32>,
    %c0_147 = arith.constant 0 : index
    %c0_148 = arith.constant 0 : index
    %303 = vector.load %arg10[%c0_147, %c0_148] : memref<2x32xf32, #tpu.memory_space<vmem>>, vector<2x32xf32>
    tpu.vector_store %arg10[%c0_147, %c0_148], %299 {strides = array<i32>} : memref<2x32xf32, #tpu.memory_space<vmem>>, vector<2x32xf32>,
    %c4_149 = arith.constant 4 : index
    %c0_150 = arith.constant 0 : index
    %c0_151 = arith.constant 0 : index
    %304 = vector.load %arg6[%c4_149, %c0_150, %c0_151] : memref<8x2x32xf32, #tpu.memory_space<vmem>>, vector<1x2x32xf32>
    %305 = vector.shape_cast %304 : vector<1x2x32xf32> to vector<2x32xf32>
    %306 = vector.shape_cast %301 : vector<2x32xf32> to vector<1x2x32xf32>
    tpu.vector_store %arg6[%c4_149, %c0_150, %c0_151], %306 {strides = array<i32>} : memref<8x2x32xf32, #tpu.memory_space<vmem>>, vector<1x2x32xf32>,
    %c4_152 = arith.constant 4 : index
    %c0_153 = arith.constant 0 : index
    %c0_154 = arith.constant 0 : index
    %307 = vector.load %arg1[%c4_152, %c0_153, %c0_154] : memref<8x2x128xf32, #tpu.memory_space<vmem>>, vector<1x2x128xf32>
    %308 = vector.shape_cast %307 : vector<1x2x128xf32> to vector<2x128xf32>
    %c0_155 = arith.constant 0 : index
    %c0_156 = arith.constant 0 : index
    %309 = vector.load %arg7[%c0_155, %c0_156] : memref<2x32xf32, #tpu.memory_space<vmem>>, vector<2x32xf32>
    %c0_157 = arith.constant 0 : index
    %c0_158 = arith.constant 0 : index
    %310 = vector.load %arg8[%c0_157, %c0_158] : memref<2x32xf32, #tpu.memory_space<vmem>>, vector<2x32xf32>
    %311 = arith.truncf %309 : vector<2x32xf32> to vector<2x32xbf16>
    %c0_159 = arith.constant 0 : index
    %c0_160 = arith.constant 0 : index
    %312 = vector.load %arg3[%c0_159, %c0_160] : memref<32x128xbf16, #tpu.memory_space<vmem>>, vector<32x128xbf16>
    %cst_161 = arith.constant dense<0.000000e+00> : vector<2x128xf32>
    %313 = tpu.matmul %311, %312, %cst_161 {dimension_numbers = #tpu.dot_dimension_numbers<[1], [0], [0], [1], [0, 0, 1, 1], [], []>} : vector<2x32xbf16>, vector<32x128xbf16>, vector<2x128xf32> -> vector<2x128xf32>
    %314 = arith.addf %308, %313 : vector<2x128xf32>
    %315 = vector.extract_strided_slice %314 {offsets = [0, 0], sizes = [2, 32], strides = [1, 1]} : vector<2x128xf32> to vector<2x32xf32>
    %316 = arith.negf %315 : vector<2x32xf32>
    %317 = math.exp %316 : vector<2x32xf32>
    %cst_162 = arith.constant 1.000000e+00 : f32
    %318 = vector.broadcast %cst_162 : f32 to vector<2x32xf32>
    %319 = arith.addf %318, %317 : vector<2x32xf32>
    %320 = arith.divf %318, %319 : vector<2x32xf32>
    %321 = vector.extract_strided_slice %314 {offsets = [0, 32], sizes = [2, 32], strides = [1, 1]} : vector<2x128xf32> to vector<2x32xf32>
    %322 = arith.negf %321 : vector<2x32xf32>
    %323 = math.exp %322 : vector<2x32xf32>
    %cst_163 = arith.constant 1.000000e+00 : f32
    %324 = vector.broadcast %cst_163 : f32 to vector<2x32xf32>
    %325 = arith.addf %324, %323 : vector<2x32xf32>
    %326 = arith.divf %324, %325 : vector<2x32xf32>
    %327 = vector.extract_strided_slice %314 {offsets = [0, 64], sizes = [2, 32], strides = [1, 1]} : vector<2x128xf32> to vector<2x32xf32>
    %328 = math.tanh %327 : vector<2x32xf32>
    %329 = vector.extract_strided_slice %314 {offsets = [0, 96], sizes = [2, 32], strides = [1, 1]} : vector<2x128xf32> to vector<2x32xf32>
    %330 = arith.negf %329 : vector<2x32xf32>
    %331 = math.exp %330 : vector<2x32xf32>
    %cst_164 = arith.constant 1.000000e+00 : f32
    %332 = vector.broadcast %cst_164 : f32 to vector<2x32xf32>
    %333 = arith.addf %332, %331 : vector<2x32xf32>
    %334 = arith.divf %332, %333 : vector<2x32xf32>
    %335 = arith.mulf %326, %310 : vector<2x32xf32>
    %336 = arith.mulf %320, %328 : vector<2x32xf32>
    %337 = arith.addf %335, %336 : vector<2x32xf32>
    %338 = math.tanh %337 : vector<2x32xf32>
    %339 = arith.mulf %334, %338 : vector<2x32xf32>
    %c0_165 = arith.constant 0 : index
    %c0_166 = arith.constant 0 : index
    %340 = vector.load %arg7[%c0_165, %c0_166] : memref<2x32xf32, #tpu.memory_space<vmem>>, vector<2x32xf32>
    tpu.vector_store %arg7[%c0_165, %c0_166], %339 {strides = array<i32>} : memref<2x32xf32, #tpu.memory_space<vmem>>, vector<2x32xf32>,
    %c0_167 = arith.constant 0 : index
    %c0_168 = arith.constant 0 : index
    %341 = vector.load %arg8[%c0_167, %c0_168] : memref<2x32xf32, #tpu.memory_space<vmem>>, vector<2x32xf32>
    tpu.vector_store %arg8[%c0_167, %c0_168], %337 {strides = array<i32>} : memref<2x32xf32, #tpu.memory_space<vmem>>, vector<2x32xf32>,
    %c4_169 = arith.constant 4 : index
    %c0_170 = arith.constant 0 : index
    %c0_171 = arith.constant 0 : index
    %342 = vector.load %arg5[%c4_169, %c0_170, %c0_171] : memref<8x2x32xf32, #tpu.memory_space<vmem>>, vector<1x2x32xf32>
    %343 = vector.shape_cast %342 : vector<1x2x32xf32> to vector<2x32xf32>
    %344 = vector.shape_cast %339 : vector<2x32xf32> to vector<1x2x32xf32>
    tpu.vector_store %arg5[%c4_169, %c0_170, %c0_171], %344 {strides = array<i32>} : memref<8x2x32xf32, #tpu.memory_space<vmem>>, vector<1x2x32xf32>,
    %c3_172 = arith.constant 3 : index
    %c0_173 = arith.constant 0 : index
    %c0_174 = arith.constant 0 : index
    %345 = vector.load %arg2[%c3_172, %c0_173, %c0_174] : memref<8x2x128xf32, #tpu.memory_space<vmem>>, vector<1x2x128xf32>
    %346 = vector.shape_cast %345 : vector<1x2x128xf32> to vector<2x128xf32>
    %c0_175 = arith.constant 0 : index
    %c0_176 = arith.constant 0 : index
    %347 = vector.load %arg9[%c0_175, %c0_176] : memref<2x32xf32, #tpu.memory_space<vmem>>, vector<2x32xf32>
    %c0_177 = arith.constant 0 : index
    %c0_178 = arith.constant 0 : index
    %348 = vector.load %arg10[%c0_177, %c0_178] : memref<2x32xf32, #tpu.memory_space<vmem>>, vector<2x32xf32>
    %349 = arith.truncf %347 : vector<2x32xf32> to vector<2x32xbf16>
    %c0_179 = arith.constant 0 : index
    %c0_180 = arith.constant 0 : index
    %350 = vector.load %arg4[%c0_179, %c0_180] : memref<32x128xbf16, #tpu.memory_space<vmem>>, vector<32x128xbf16>
    %cst_181 = arith.constant dense<0.000000e+00> : vector<2x128xf32>
    %351 = tpu.matmul %349, %350, %cst_181 {dimension_numbers = #tpu.dot_dimension_numbers<[1], [0], [0], [1], [0, 0, 1, 1], [], []>} : vector<2x32xbf16>, vector<32x128xbf16>, vector<2x128xf32> -> vector<2x128xf32>
    %352 = arith.addf %346, %351 : vector<2x128xf32>
    %353 = vector.extract_strided_slice %352 {offsets = [0, 0], sizes = [2, 32], strides = [1, 1]} : vector<2x128xf32> to vector<2x32xf32>
    %354 = arith.negf %353 : vector<2x32xf32>
    %355 = math.exp %354 : vector<2x32xf32>
    %cst_182 = arith.constant 1.000000e+00 : f32
    %356 = vector.broadcast %cst_182 : f32 to vector<2x32xf32>
    %357 = arith.addf %356, %355 : vector<2x32xf32>
    %358 = arith.divf %356, %357 : vector<2x32xf32>
    %359 = vector.extract_strided_slice %352 {offsets = [0, 32], sizes = [2, 32], strides = [1, 1]} : vector<2x128xf32> to vector<2x32xf32>
    %360 = arith.negf %359 : vector<2x32xf32>
    %361 = math.exp %360 : vector<2x32xf32>
    %cst_183 = arith.constant 1.000000e+00 : f32
    %362 = vector.broadcast %cst_183 : f32 to vector<2x32xf32>
    %363 = arith.addf %362, %361 : vector<2x32xf32>
    %364 = arith.divf %362, %363 : vector<2x32xf32>
    %365 = vector.extract_strided_slice %352 {offsets = [0, 64], sizes = [2, 32], strides = [1, 1]} : vector<2x128xf32> to vector<2x32xf32>
    %366 = math.tanh %365 : vector<2x32xf32>
    %367 = vector.extract_strided_slice %352 {offsets = [0, 96], sizes = [2, 32], strides = [1, 1]} : vector<2x128xf32> to vector<2x32xf32>
    %368 = arith.negf %367 : vector<2x32xf32>
    %369 = math.exp %368 : vector<2x32xf32>
    %cst_184 = arith.constant 1.000000e+00 : f32
    %370 = vector.broadcast %cst_184 : f32 to vector<2x32xf32>
    %371 = arith.addf %370, %369 : vector<2x32xf32>
    %372 = arith.divf %370, %371 : vector<2x32xf32>
    %373 = arith.mulf %364, %348 : vector<2x32xf32>
    %374 = arith.mulf %358, %366 : vector<2x32xf32>
    %375 = arith.addf %373, %374 : vector<2x32xf32>
    %376 = math.tanh %375 : vector<2x32xf32>
    %377 = arith.mulf %372, %376 : vector<2x32xf32>
    %c0_185 = arith.constant 0 : index
    %c0_186 = arith.constant 0 : index
    %378 = vector.load %arg9[%c0_185, %c0_186] : memref<2x32xf32, #tpu.memory_space<vmem>>, vector<2x32xf32>
    tpu.vector_store %arg9[%c0_185, %c0_186], %377 {strides = array<i32>} : memref<2x32xf32, #tpu.memory_space<vmem>>, vector<2x32xf32>,
    %c0_187 = arith.constant 0 : index
    %c0_188 = arith.constant 0 : index
    %379 = vector.load %arg10[%c0_187, %c0_188] : memref<2x32xf32, #tpu.memory_space<vmem>>, vector<2x32xf32>
    tpu.vector_store %arg10[%c0_187, %c0_188], %375 {strides = array<i32>} : memref<2x32xf32, #tpu.memory_space<vmem>>, vector<2x32xf32>,
    %c3_189 = arith.constant 3 : index
    %c0_190 = arith.constant 0 : index
    %c0_191 = arith.constant 0 : index
    %380 = vector.load %arg6[%c3_189, %c0_190, %c0_191] : memref<8x2x32xf32, #tpu.memory_space<vmem>>, vector<1x2x32xf32>
    %381 = vector.shape_cast %380 : vector<1x2x32xf32> to vector<2x32xf32>
    %382 = vector.shape_cast %377 : vector<2x32xf32> to vector<1x2x32xf32>
    tpu.vector_store %arg6[%c3_189, %c0_190, %c0_191], %382 {strides = array<i32>} : memref<8x2x32xf32, #tpu.memory_space<vmem>>, vector<1x2x32xf32>,
    %c5_192 = arith.constant 5 : index
    %c0_193 = arith.constant 0 : index
    %c0_194 = arith.constant 0 : index
    %383 = vector.load %arg1[%c5_192, %c0_193, %c0_194] : memref<8x2x128xf32, #tpu.memory_space<vmem>>, vector<1x2x128xf32>
    %384 = vector.shape_cast %383 : vector<1x2x128xf32> to vector<2x128xf32>
    %c0_195 = arith.constant 0 : index
    %c0_196 = arith.constant 0 : index
    %385 = vector.load %arg7[%c0_195, %c0_196] : memref<2x32xf32, #tpu.memory_space<vmem>>, vector<2x32xf32>
    %c0_197 = arith.constant 0 : index
    %c0_198 = arith.constant 0 : index
    %386 = vector.load %arg8[%c0_197, %c0_198] : memref<2x32xf32, #tpu.memory_space<vmem>>, vector<2x32xf32>
    %387 = arith.truncf %385 : vector<2x32xf32> to vector<2x32xbf16>
    %c0_199 = arith.constant 0 : index
    %c0_200 = arith.constant 0 : index
    %388 = vector.load %arg3[%c0_199, %c0_200] : memref<32x128xbf16, #tpu.memory_space<vmem>>, vector<32x128xbf16>
    %cst_201 = arith.constant dense<0.000000e+00> : vector<2x128xf32>
    %389 = tpu.matmul %387, %388, %cst_201 {dimension_numbers = #tpu.dot_dimension_numbers<[1], [0], [0], [1], [0, 0, 1, 1], [], []>} : vector<2x32xbf16>, vector<32x128xbf16>, vector<2x128xf32> -> vector<2x128xf32>
    %390 = arith.addf %384, %389 : vector<2x128xf32>
    %391 = vector.extract_strided_slice %390 {offsets = [0, 0], sizes = [2, 32], strides = [1, 1]} : vector<2x128xf32> to vector<2x32xf32>
    %392 = arith.negf %391 : vector<2x32xf32>
    %393 = math.exp %392 : vector<2x32xf32>
    %cst_202 = arith.constant 1.000000e+00 : f32
    %394 = vector.broadcast %cst_202 : f32 to vector<2x32xf32>
    %395 = arith.addf %394, %393 : vector<2x32xf32>
    %396 = arith.divf %394, %395 : vector<2x32xf32>
    %397 = vector.extract_strided_slice %390 {offsets = [0, 32], sizes = [2, 32], strides = [1, 1]} : vector<2x128xf32> to vector<2x32xf32>
    %398 = arith.negf %397 : vector<2x32xf32>
    %399 = math.exp %398 : vector<2x32xf32>
    %cst_203 = arith.constant 1.000000e+00 : f32
    %400 = vector.broadcast %cst_203 : f32 to vector<2x32xf32>
    %401 = arith.addf %400, %399 : vector<2x32xf32>
    %402 = arith.divf %400, %401 : vector<2x32xf32>
    %403 = vector.extract_strided_slice %390 {offsets = [0, 64], sizes = [2, 32], strides = [1, 1]} : vector<2x128xf32> to vector<2x32xf32>
    %404 = math.tanh %403 : vector<2x32xf32>
    %405 = vector.extract_strided_slice %390 {offsets = [0, 96], sizes = [2, 32], strides = [1, 1]} : vector<2x128xf32> to vector<2x32xf32>
    %406 = arith.negf %405 : vector<2x32xf32>
    %407 = math.exp %406 : vector<2x32xf32>
    %cst_204 = arith.constant 1.000000e+00 : f32
    %408 = vector.broadcast %cst_204 : f32 to vector<2x32xf32>
    %409 = arith.addf %408, %407 : vector<2x32xf32>
    %410 = arith.divf %408, %409 : vector<2x32xf32>
    %411 = arith.mulf %402, %386 : vector<2x32xf32>
    %412 = arith.mulf %396, %404 : vector<2x32xf32>
    %413 = arith.addf %411, %412 : vector<2x32xf32>
    %414 = math.tanh %413 : vector<2x32xf32>
    %415 = arith.mulf %410, %414 : vector<2x32xf32>
    %c0_205 = arith.constant 0 : index
    %c0_206 = arith.constant 0 : index
    %416 = vector.load %arg7[%c0_205, %c0_206] : memref<2x32xf32, #tpu.memory_space<vmem>>, vector<2x32xf32>
    tpu.vector_store %arg7[%c0_205, %c0_206], %415 {strides = array<i32>} : memref<2x32xf32, #tpu.memory_space<vmem>>, vector<2x32xf32>,
    %c0_207 = arith.constant 0 : index
    %c0_208 = arith.constant 0 : index
    %417 = vector.load %arg8[%c0_207, %c0_208] : memref<2x32xf32, #tpu.memory_space<vmem>>, vector<2x32xf32>
    tpu.vector_store %arg8[%c0_207, %c0_208], %413 {strides = array<i32>} : memref<2x32xf32, #tpu.memory_space<vmem>>, vector<2x32xf32>,
    %c5_209 = arith.constant 5 : index
    %c0_210 = arith.constant 0 : index
    %c0_211 = arith.constant 0 : index
    %418 = vector.load %arg5[%c5_209, %c0_210, %c0_211] : memref<8x2x32xf32, #tpu.memory_space<vmem>>, vector<1x2x32xf32>
    %419 = vector.shape_cast %418 : vector<1x2x32xf32> to vector<2x32xf32>
    %420 = vector.shape_cast %415 : vector<2x32xf32> to vector<1x2x32xf32>
    tpu.vector_store %arg5[%c5_209, %c0_210, %c0_211], %420 {strides = array<i32>} : memref<8x2x32xf32, #tpu.memory_space<vmem>>, vector<1x2x32xf32>,
    %c2_212 = arith.constant 2 : index
    %c0_213 = arith.constant 0 : index
    %c0_214 = arith.constant 0 : index
    %421 = vector.load %arg2[%c2_212, %c0_213, %c0_214] : memref<8x2x128xf32, #tpu.memory_space<vmem>>, vector<1x2x128xf32>
    %422 = vector.shape_cast %421 : vector<1x2x128xf32> to vector<2x128xf32>
    %c0_215 = arith.constant 0 : index
    %c0_216 = arith.constant 0 : index
    %423 = vector.load %arg9[%c0_215, %c0_216] : memref<2x32xf32, #tpu.memory_space<vmem>>, vector<2x32xf32>
    %c0_217 = arith.constant 0 : index
    %c0_218 = arith.constant 0 : index
    %424 = vector.load %arg10[%c0_217, %c0_218] : memref<2x32xf32, #tpu.memory_space<vmem>>, vector<2x32xf32>
    %425 = arith.truncf %423 : vector<2x32xf32> to vector<2x32xbf16>
    %c0_219 = arith.constant 0 : index
    %c0_220 = arith.constant 0 : index
    %426 = vector.load %arg4[%c0_219, %c0_220] : memref<32x128xbf16, #tpu.memory_space<vmem>>, vector<32x128xbf16>
    %cst_221 = arith.constant dense<0.000000e+00> : vector<2x128xf32>
    %427 = tpu.matmul %425, %426, %cst_221 {dimension_numbers = #tpu.dot_dimension_numbers<[1], [0], [0], [1], [0, 0, 1, 1], [], []>} : vector<2x32xbf16>, vector<32x128xbf16>, vector<2x128xf32> -> vector<2x128xf32>
    %428 = arith.addf %422, %427 : vector<2x128xf32>
    %429 = vector.extract_strided_slice %428 {offsets = [0, 0], sizes = [2, 32], strides = [1, 1]} : vector<2x128xf32> to vector<2x32xf32>
    %430 = arith.negf %429 : vector<2x32xf32>
    %431 = math.exp %430 : vector<2x32xf32>
    %cst_222 = arith.constant 1.000000e+00 : f32
    %432 = vector.broadcast %cst_222 : f32 to vector<2x32xf32>
    %433 = arith.addf %432, %431 : vector<2x32xf32>
    %434 = arith.divf %432, %433 : vector<2x32xf32>
    %435 = vector.extract_strided_slice %428 {offsets = [0, 32], sizes = [2, 32], strides = [1, 1]} : vector<2x128xf32> to vector<2x32xf32>
    %436 = arith.negf %435 : vector<2x32xf32>
    %437 = math.exp %436 : vector<2x32xf32>
    %cst_223 = arith.constant 1.000000e+00 : f32
    %438 = vector.broadcast %cst_223 : f32 to vector<2x32xf32>
    %439 = arith.addf %438, %437 : vector<2x32xf32>
    %440 = arith.divf %438, %439 : vector<2x32xf32>
    %441 = vector.extract_strided_slice %428 {offsets = [0, 64], sizes = [2, 32], strides = [1, 1]} : vector<2x128xf32> to vector<2x32xf32>
    %442 = math.tanh %441 : vector<2x32xf32>
    %443 = vector.extract_strided_slice %428 {offsets = [0, 96], sizes = [2, 32], strides = [1, 1]} : vector<2x128xf32> to vector<2x32xf32>
    %444 = arith.negf %443 : vector<2x32xf32>
    %445 = math.exp %444 : vector<2x32xf32>
    %cst_224 = arith.constant 1.000000e+00 : f32
    %446 = vector.broadcast %cst_224 : f32 to vector<2x32xf32>
    %447 = arith.addf %446, %445 : vector<2x32xf32>
    %448 = arith.divf %446, %447 : vector<2x32xf32>
    %449 = arith.mulf %440, %424 : vector<2x32xf32>
    %450 = arith.mulf %434, %442 : vector<2x32xf32>
    %451 = arith.addf %449, %450 : vector<2x32xf32>
    %452 = math.tanh %451 : vector<2x32xf32>
    %453 = arith.mulf %448, %452 : vector<2x32xf32>
    %c0_225 = arith.constant 0 : index
    %c0_226 = arith.constant 0 : index
    %454 = vector.load %arg9[%c0_225, %c0_226] : memref<2x32xf32, #tpu.memory_space<vmem>>, vector<2x32xf32>
    tpu.vector_store %arg9[%c0_225, %c0_226], %453 {strides = array<i32>} : memref<2x32xf32, #tpu.memory_space<vmem>>, vector<2x32xf32>,
    %c0_227 = arith.constant 0 : index
    %c0_228 = arith.constant 0 : index
    %455 = vector.load %arg10[%c0_227, %c0_228] : memref<2x32xf32, #tpu.memory_space<vmem>>, vector<2x32xf32>
    tpu.vector_store %arg10[%c0_227, %c0_228], %451 {strides = array<i32>} : memref<2x32xf32, #tpu.memory_space<vmem>>, vector<2x32xf32>,
    %c2_229 = arith.constant 2 : index
    %c0_230 = arith.constant 0 : index
    %c0_231 = arith.constant 0 : index
    %456 = vector.load %arg6[%c2_229, %c0_230, %c0_231] : memref<8x2x32xf32, #tpu.memory_space<vmem>>, vector<1x2x32xf32>
    %457 = vector.shape_cast %456 : vector<1x2x32xf32> to vector<2x32xf32>
    %458 = vector.shape_cast %453 : vector<2x32xf32> to vector<1x2x32xf32>
    tpu.vector_store %arg6[%c2_229, %c0_230, %c0_231], %458 {strides = array<i32>} : memref<8x2x32xf32, #tpu.memory_space<vmem>>, vector<1x2x32xf32>,
    %c6_232 = arith.constant 6 : index
    %c0_233 = arith.constant 0 : index
    %c0_234 = arith.constant 0 : index
    %459 = vector.load %arg1[%c6_232, %c0_233, %c0_234] : memref<8x2x128xf32, #tpu.memory_space<vmem>>, vector<1x2x128xf32>
    %460 = vector.shape_cast %459 : vector<1x2x128xf32> to vector<2x128xf32>
    %c0_235 = arith.constant 0 : index
    %c0_236 = arith.constant 0 : index
    %461 = vector.load %arg7[%c0_235, %c0_236] : memref<2x32xf32, #tpu.memory_space<vmem>>, vector<2x32xf32>
    %c0_237 = arith.constant 0 : index
    %c0_238 = arith.constant 0 : index
    %462 = vector.load %arg8[%c0_237, %c0_238] : memref<2x32xf32, #tpu.memory_space<vmem>>, vector<2x32xf32>
    %463 = arith.truncf %461 : vector<2x32xf32> to vector<2x32xbf16>
    %c0_239 = arith.constant 0 : index
    %c0_240 = arith.constant 0 : index
    %464 = vector.load %arg3[%c0_239, %c0_240] : memref<32x128xbf16, #tpu.memory_space<vmem>>, vector<32x128xbf16>
    %cst_241 = arith.constant dense<0.000000e+00> : vector<2x128xf32>
    %465 = tpu.matmul %463, %464, %cst_241 {dimension_numbers = #tpu.dot_dimension_numbers<[1], [0], [0], [1], [0, 0, 1, 1], [], []>} : vector<2x32xbf16>, vector<32x128xbf16>, vector<2x128xf32> -> vector<2x128xf32>
    %466 = arith.addf %460, %465 : vector<2x128xf32>
    %467 = vector.extract_strided_slice %466 {offsets = [0, 0], sizes = [2, 32], strides = [1, 1]} : vector<2x128xf32> to vector<2x32xf32>
    %468 = arith.negf %467 : vector<2x32xf32>
    %469 = math.exp %468 : vector<2x32xf32>
    %cst_242 = arith.constant 1.000000e+00 : f32
    %470 = vector.broadcast %cst_242 : f32 to vector<2x32xf32>
    %471 = arith.addf %470, %469 : vector<2x32xf32>
    %472 = arith.divf %470, %471 : vector<2x32xf32>
    %473 = vector.extract_strided_slice %466 {offsets = [0, 32], sizes = [2, 32], strides = [1, 1]} : vector<2x128xf32> to vector<2x32xf32>
    %474 = arith.negf %473 : vector<2x32xf32>
    %475 = math.exp %474 : vector<2x32xf32>
    %cst_243 = arith.constant 1.000000e+00 : f32
    %476 = vector.broadcast %cst_243 : f32 to vector<2x32xf32>
    %477 = arith.addf %476, %475 : vector<2x32xf32>
    %478 = arith.divf %476, %477 : vector<2x32xf32>
    %479 = vector.extract_strided_slice %466 {offsets = [0, 64], sizes = [2, 32], strides = [1, 1]} : vector<2x128xf32> to vector<2x32xf32>
    %480 = math.tanh %479 : vector<2x32xf32>
    %481 = vector.extract_strided_slice %466 {offsets = [0, 96], sizes = [2, 32], strides = [1, 1]} : vector<2x128xf32> to vector<2x32xf32>
    %482 = arith.negf %481 : vector<2x32xf32>
    %483 = math.exp %482 : vector<2x32xf32>
    %cst_244 = arith.constant 1.000000e+00 : f32
    %484 = vector.broadcast %cst_244 : f32 to vector<2x32xf32>
    %485 = arith.addf %484, %483 : vector<2x32xf32>
    %486 = arith.divf %484, %485 : vector<2x32xf32>
    %487 = arith.mulf %478, %462 : vector<2x32xf32>
    %488 = arith.mulf %472, %480 : vector<2x32xf32>
    %489 = arith.addf %487, %488 : vector<2x32xf32>
    %490 = math.tanh %489 : vector<2x32xf32>
    %491 = arith.mulf %486, %490 : vector<2x32xf32>
    %c0_245 = arith.constant 0 : index
    %c0_246 = arith.constant 0 : index
    %492 = vector.load %arg7[%c0_245, %c0_246] : memref<2x32xf32, #tpu.memory_space<vmem>>, vector<2x32xf32>
    tpu.vector_store %arg7[%c0_245, %c0_246], %491 {strides = array<i32>} : memref<2x32xf32, #tpu.memory_space<vmem>>, vector<2x32xf32>,
    %c0_247 = arith.constant 0 : index
    %c0_248 = arith.constant 0 : index
    %493 = vector.load %arg8[%c0_247, %c0_248] : memref<2x32xf32, #tpu.memory_space<vmem>>, vector<2x32xf32>
    tpu.vector_store %arg8[%c0_247, %c0_248], %489 {strides = array<i32>} : memref<2x32xf32, #tpu.memory_space<vmem>>, vector<2x32xf32>,
    %c6_249 = arith.constant 6 : index
    %c0_250 = arith.constant 0 : index
    %c0_251 = arith.constant 0 : index
    %494 = vector.load %arg5[%c6_249, %c0_250, %c0_251] : memref<8x2x32xf32, #tpu.memory_space<vmem>>, vector<1x2x32xf32>
    %495 = vector.shape_cast %494 : vector<1x2x32xf32> to vector<2x32xf32>
    %496 = vector.shape_cast %491 : vector<2x32xf32> to vector<1x2x32xf32>
    tpu.vector_store %arg5[%c6_249, %c0_250, %c0_251], %496 {strides = array<i32>} : memref<8x2x32xf32, #tpu.memory_space<vmem>>, vector<1x2x32xf32>,
    %c1_252 = arith.constant 1 : index
    %c0_253 = arith.constant 0 : index
    %c0_254 = arith.constant 0 : index
    %497 = vector.load %arg2[%c1_252, %c0_253, %c0_254] : memref<8x2x128xf32, #tpu.memory_space<vmem>>, vector<1x2x128xf32>
    %498 = vector.shape_cast %497 : vector<1x2x128xf32> to vector<2x128xf32>
    %c0_255 = arith.constant 0 : index
    %c0_256 = arith.constant 0 : index
    %499 = vector.load %arg9[%c0_255, %c0_256] : memref<2x32xf32, #tpu.memory_space<vmem>>, vector<2x32xf32>
    %c0_257 = arith.constant 0 : index
    %c0_258 = arith.constant 0 : index
    %500 = vector.load %arg10[%c0_257, %c0_258] : memref<2x32xf32, #tpu.memory_space<vmem>>, vector<2x32xf32>
    %501 = arith.truncf %499 : vector<2x32xf32> to vector<2x32xbf16>
    %c0_259 = arith.constant 0 : index
    %c0_260 = arith.constant 0 : index
    %502 = vector.load %arg4[%c0_259, %c0_260] : memref<32x128xbf16, #tpu.memory_space<vmem>>, vector<32x128xbf16>
    %cst_261 = arith.constant dense<0.000000e+00> : vector<2x128xf32>
    %503 = tpu.matmul %501, %502, %cst_261 {dimension_numbers = #tpu.dot_dimension_numbers<[1], [0], [0], [1], [0, 0, 1, 1], [], []>} : vector<2x32xbf16>, vector<32x128xbf16>, vector<2x128xf32> -> vector<2x128xf32>
    %504 = arith.addf %498, %503 : vector<2x128xf32>
    %505 = vector.extract_strided_slice %504 {offsets = [0, 0], sizes = [2, 32], strides = [1, 1]} : vector<2x128xf32> to vector<2x32xf32>
    %506 = arith.negf %505 : vector<2x32xf32>
    %507 = math.exp %506 : vector<2x32xf32>
    %cst_262 = arith.constant 1.000000e+00 : f32
    %508 = vector.broadcast %cst_262 : f32 to vector<2x32xf32>
    %509 = arith.addf %508, %507 : vector<2x32xf32>
    %510 = arith.divf %508, %509 : vector<2x32xf32>
    %511 = vector.extract_strided_slice %504 {offsets = [0, 32], sizes = [2, 32], strides = [1, 1]} : vector<2x128xf32> to vector<2x32xf32>
    %512 = arith.negf %511 : vector<2x32xf32>
    %513 = math.exp %512 : vector<2x32xf32>
    %cst_263 = arith.constant 1.000000e+00 : f32
    %514 = vector.broadcast %cst_263 : f32 to vector<2x32xf32>
    %515 = arith.addf %514, %513 : vector<2x32xf32>
    %516 = arith.divf %514, %515 : vector<2x32xf32>
    %517 = vector.extract_strided_slice %504 {offsets = [0, 64], sizes = [2, 32], strides = [1, 1]} : vector<2x128xf32> to vector<2x32xf32>
    %518 = math.tanh %517 : vector<2x32xf32>
    %519 = vector.extract_strided_slice %504 {offsets = [0, 96], sizes = [2, 32], strides = [1, 1]} : vector<2x128xf32> to vector<2x32xf32>
    %520 = arith.negf %519 : vector<2x32xf32>
    %521 = math.exp %520 : vector<2x32xf32>
    %cst_264 = arith.constant 1.000000e+00 : f32
    %522 = vector.broadcast %cst_264 : f32 to vector<2x32xf32>
    %523 = arith.addf %522, %521 : vector<2x32xf32>
    %524 = arith.divf %522, %523 : vector<2x32xf32>
    %525 = arith.mulf %516, %500 : vector<2x32xf32>
    %526 = arith.mulf %510, %518 : vector<2x32xf32>
    %527 = arith.addf %525, %526 : vector<2x32xf32>
    %528 = math.tanh %527 : vector<2x32xf32>
    %529 = arith.mulf %524, %528 : vector<2x32xf32>
    %c0_265 = arith.constant 0 : index
    %c0_266 = arith.constant 0 : index
    %530 = vector.load %arg9[%c0_265, %c0_266] : memref<2x32xf32, #tpu.memory_space<vmem>>, vector<2x32xf32>
    tpu.vector_store %arg9[%c0_265, %c0_266], %529 {strides = array<i32>} : memref<2x32xf32, #tpu.memory_space<vmem>>, vector<2x32xf32>,
    %c0_267 = arith.constant 0 : index
    %c0_268 = arith.constant 0 : index
    %531 = vector.load %arg10[%c0_267, %c0_268] : memref<2x32xf32, #tpu.memory_space<vmem>>, vector<2x32xf32>
    tpu.vector_store %arg10[%c0_267, %c0_268], %527 {strides = array<i32>} : memref<2x32xf32, #tpu.memory_space<vmem>>, vector<2x32xf32>,
    %c1_269 = arith.constant 1 : index
    %c0_270 = arith.constant 0 : index
    %c0_271 = arith.constant 0 : index
    %532 = vector.load %arg6[%c1_269, %c0_270, %c0_271] : memref<8x2x32xf32, #tpu.memory_space<vmem>>, vector<1x2x32xf32>
    %533 = vector.shape_cast %532 : vector<1x2x32xf32> to vector<2x32xf32>
    %534 = vector.shape_cast %529 : vector<2x32xf32> to vector<1x2x32xf32>
    tpu.vector_store %arg6[%c1_269, %c0_270, %c0_271], %534 {strides = array<i32>} : memref<8x2x32xf32, #tpu.memory_space<vmem>>, vector<1x2x32xf32>,
    %c7_272 = arith.constant 7 : index
    %c0_273 = arith.constant 0 : index
    %c0_274 = arith.constant 0 : index
    %535 = vector.load %arg1[%c7_272, %c0_273, %c0_274] : memref<8x2x128xf32, #tpu.memory_space<vmem>>, vector<1x2x128xf32>
    %536 = vector.shape_cast %535 : vector<1x2x128xf32> to vector<2x128xf32>
    %c0_275 = arith.constant 0 : index
    %c0_276 = arith.constant 0 : index
    %537 = vector.load %arg7[%c0_275, %c0_276] : memref<2x32xf32, #tpu.memory_space<vmem>>, vector<2x32xf32>
    %c0_277 = arith.constant 0 : index
    %c0_278 = arith.constant 0 : index
    %538 = vector.load %arg8[%c0_277, %c0_278] : memref<2x32xf32, #tpu.memory_space<vmem>>, vector<2x32xf32>
    %539 = arith.truncf %537 : vector<2x32xf32> to vector<2x32xbf16>
    %c0_279 = arith.constant 0 : index
    %c0_280 = arith.constant 0 : index
    %540 = vector.load %arg3[%c0_279, %c0_280] : memref<32x128xbf16, #tpu.memory_space<vmem>>, vector<32x128xbf16>
    %cst_281 = arith.constant dense<0.000000e+00> : vector<2x128xf32>
    %541 = tpu.matmul %539, %540, %cst_281 {dimension_numbers = #tpu.dot_dimension_numbers<[1], [0], [0], [1], [0, 0, 1, 1], [], []>} : vector<2x32xbf16>, vector<32x128xbf16>, vector<2x128xf32> -> vector<2x128xf32>
    %542 = arith.addf %536, %541 : vector<2x128xf32>
    %543 = vector.extract_strided_slice %542 {offsets = [0, 0], sizes = [2, 32], strides = [1, 1]} : vector<2x128xf32> to vector<2x32xf32>
    %544 = arith.negf %543 : vector<2x32xf32>
    %545 = math.exp %544 : vector<2x32xf32>
    %cst_282 = arith.constant 1.000000e+00 : f32
    %546 = vector.broadcast %cst_282 : f32 to vector<2x32xf32>
    %547 = arith.addf %546, %545 : vector<2x32xf32>
    %548 = arith.divf %546, %547 : vector<2x32xf32>
    %549 = vector.extract_strided_slice %542 {offsets = [0, 32], sizes = [2, 32], strides = [1, 1]} : vector<2x128xf32> to vector<2x32xf32>
    %550 = arith.negf %549 : vector<2x32xf32>
    %551 = math.exp %550 : vector<2x32xf32>
    %cst_283 = arith.constant 1.000000e+00 : f32
    %552 = vector.broadcast %cst_283 : f32 to vector<2x32xf32>
    %553 = arith.addf %552, %551 : vector<2x32xf32>
    %554 = arith.divf %552, %553 : vector<2x32xf32>
    %555 = vector.extract_strided_slice %542 {offsets = [0, 64], sizes = [2, 32], strides = [1, 1]} : vector<2x128xf32> to vector<2x32xf32>
    %556 = math.tanh %555 : vector<2x32xf32>
    %557 = vector.extract_strided_slice %542 {offsets = [0, 96], sizes = [2, 32], strides = [1, 1]} : vector<2x128xf32> to vector<2x32xf32>
    %558 = arith.negf %557 : vector<2x32xf32>
    %559 = math.exp %558 : vector<2x32xf32>
    %cst_284 = arith.constant 1.000000e+00 : f32
    %560 = vector.broadcast %cst_284 : f32 to vector<2x32xf32>
    %561 = arith.addf %560, %559 : vector<2x32xf32>
    %562 = arith.divf %560, %561 : vector<2x32xf32>
    %563 = arith.mulf %554, %538 : vector<2x32xf32>
    %564 = arith.mulf %548, %556 : vector<2x32xf32>
    %565 = arith.addf %563, %564 : vector<2x32xf32>
    %566 = math.tanh %565 : vector<2x32xf32>
    %567 = arith.mulf %562, %566 : vector<2x32xf32>
    %c0_285 = arith.constant 0 : index
    %c0_286 = arith.constant 0 : index
    %568 = vector.load %arg7[%c0_285, %c0_286] : memref<2x32xf32, #tpu.memory_space<vmem>>, vector<2x32xf32>
    tpu.vector_store %arg7[%c0_285, %c0_286], %567 {strides = array<i32>} : memref<2x32xf32, #tpu.memory_space<vmem>>, vector<2x32xf32>,
    %c0_287 = arith.constant 0 : index
    %c0_288 = arith.constant 0 : index
    %569 = vector.load %arg8[%c0_287, %c0_288] : memref<2x32xf32, #tpu.memory_space<vmem>>, vector<2x32xf32>
    tpu.vector_store %arg8[%c0_287, %c0_288], %565 {strides = array<i32>} : memref<2x32xf32, #tpu.memory_space<vmem>>, vector<2x32xf32>,
    %c7_289 = arith.constant 7 : index
    %c0_290 = arith.constant 0 : index
    %c0_291 = arith.constant 0 : index
    %570 = vector.load %arg5[%c7_289, %c0_290, %c0_291] : memref<8x2x32xf32, #tpu.memory_space<vmem>>, vector<1x2x32xf32>
    %571 = vector.shape_cast %570 : vector<1x2x32xf32> to vector<2x32xf32>
    %572 = vector.shape_cast %567 : vector<2x32xf32> to vector<1x2x32xf32>
    tpu.vector_store %arg5[%c7_289, %c0_290, %c0_291], %572 {strides = array<i32>} : memref<8x2x32xf32, #tpu.memory_space<vmem>>, vector<1x2x32xf32>,
    %c0_292 = arith.constant 0 : index
    %c0_293 = arith.constant 0 : index
    %c0_294 = arith.constant 0 : index
    %573 = vector.load %arg2[%c0_292, %c0_293, %c0_294] : memref<8x2x128xf32, #tpu.memory_space<vmem>>, vector<1x2x128xf32>
    %574 = vector.shape_cast %573 : vector<1x2x128xf32> to vector<2x128xf32>
    %c0_295 = arith.constant 0 : index
    %c0_296 = arith.constant 0 : index
    %575 = vector.load %arg9[%c0_295, %c0_296] : memref<2x32xf32, #tpu.memory_space<vmem>>, vector<2x32xf32>
    %c0_297 = arith.constant 0 : index
    %c0_298 = arith.constant 0 : index
    %576 = vector.load %arg10[%c0_297, %c0_298] : memref<2x32xf32, #tpu.memory_space<vmem>>, vector<2x32xf32>
    %577 = arith.truncf %575 : vector<2x32xf32> to vector<2x32xbf16>
    %c0_299 = arith.constant 0 : index
    %c0_300 = arith.constant 0 : index
    %578 = vector.load %arg4[%c0_299, %c0_300] : memref<32x128xbf16, #tpu.memory_space<vmem>>, vector<32x128xbf16>
    %cst_301 = arith.constant dense<0.000000e+00> : vector<2x128xf32>
    %579 = tpu.matmul %577, %578, %cst_301 {dimension_numbers = #tpu.dot_dimension_numbers<[1], [0], [0], [1], [0, 0, 1, 1], [], []>} : vector<2x32xbf16>, vector<32x128xbf16>, vector<2x128xf32> -> vector<2x128xf32>
    %580 = arith.addf %574, %579 : vector<2x128xf32>
    %581 = vector.extract_strided_slice %580 {offsets = [0, 0], sizes = [2, 32], strides = [1, 1]} : vector<2x128xf32> to vector<2x32xf32>
    %582 = arith.negf %581 : vector<2x32xf32>
    %583 = math.exp %582 : vector<2x32xf32>
    %cst_302 = arith.constant 1.000000e+00 : f32
    %584 = vector.broadcast %cst_302 : f32 to vector<2x32xf32>
    %585 = arith.addf %584, %583 : vector<2x32xf32>
    %586 = arith.divf %584, %585 : vector<2x32xf32>
    %587 = vector.extract_strided_slice %580 {offsets = [0, 32], sizes = [2, 32], strides = [1, 1]} : vector<2x128xf32> to vector<2x32xf32>
    %588 = arith.negf %587 : vector<2x32xf32>
    %589 = math.exp %588 : vector<2x32xf32>
    %cst_303 = arith.constant 1.000000e+00 : f32
    %590 = vector.broadcast %cst_303 : f32 to vector<2x32xf32>
    %591 = arith.addf %590, %589 : vector<2x32xf32>
    %592 = arith.divf %590, %591 : vector<2x32xf32>
    %593 = vector.extract_strided_slice %580 {offsets = [0, 64], sizes = [2, 32], strides = [1, 1]} : vector<2x128xf32> to vector<2x32xf32>
    %594 = math.tanh %593 : vector<2x32xf32>
    %595 = vector.extract_strided_slice %580 {offsets = [0, 96], sizes = [2, 32], strides = [1, 1]} : vector<2x128xf32> to vector<2x32xf32>
    %596 = arith.negf %595 : vector<2x32xf32>
    %597 = math.exp %596 : vector<2x32xf32>
    %cst_304 = arith.constant 1.000000e+00 : f32
    %598 = vector.broadcast %cst_304 : f32 to vector<2x32xf32>
    %599 = arith.addf %598, %597 : vector<2x32xf32>
    %600 = arith.divf %598, %599 : vector<2x32xf32>
    %601 = arith.mulf %592, %576 : vector<2x32xf32>
    %602 = arith.mulf %586, %594 : vector<2x32xf32>
    %603 = arith.addf %601, %602 : vector<2x32xf32>
    %604 = math.tanh %603 : vector<2x32xf32>
    %605 = arith.mulf %600, %604 : vector<2x32xf32>
    %c0_305 = arith.constant 0 : index
    %c0_306 = arith.constant 0 : index
    %606 = vector.load %arg9[%c0_305, %c0_306] : memref<2x32xf32, #tpu.memory_space<vmem>>, vector<2x32xf32>
    tpu.vector_store %arg9[%c0_305, %c0_306], %605 {strides = array<i32>} : memref<2x32xf32, #tpu.memory_space<vmem>>, vector<2x32xf32>,
    %c0_307 = arith.constant 0 : index
    %c0_308 = arith.constant 0 : index
    %607 = vector.load %arg10[%c0_307, %c0_308] : memref<2x32xf32, #tpu.memory_space<vmem>>, vector<2x32xf32>
    tpu.vector_store %arg10[%c0_307, %c0_308], %603 {strides = array<i32>} : memref<2x32xf32, #tpu.memory_space<vmem>>, vector<2x32xf32>,
    %c0_309 = arith.constant 0 : index
    %c0_310 = arith.constant 0 : index
    %c0_311 = arith.constant 0 : index
    %608 = vector.load %arg6[%c0_309, %c0_310, %c0_311] : memref<8x2x32xf32, #tpu.memory_space<vmem>>, vector<1x2x32xf32>
    %609 = vector.shape_cast %608 : vector<1x2x32xf32> to vector<2x32xf32>
    %610 = vector.shape_cast %605 : vector<2x32xf32> to vector<1x2x32xf32>
    tpu.vector_store %arg6[%c0_309, %c0_310, %c0_311], %610 {strides = array<i32>} : memref<8x2x32xf32, #tpu.memory_space<vmem>>, vector<1x2x32xf32>,
    return
  }
  func.func @transform_0(%arg0: i32) -> (i32, i32, i32) {
    %c0_i32 = arith.constant 0 : i32
    %c0_i32_0 = arith.constant 0 : i32
    %c0_i32_1 = arith.constant 0 : i32
    return %arg0, %c0_i32, %c0_i32_0 : i32, i32, i32
  }
  func.func @transform_1(%arg0: i32) -> (i32, i32, i32) {
    %c0_i32 = arith.constant 0 : i32
    %0 = arith.subi %c0_i32, %arg0 : i32
    %c0_i32_0 = arith.constant 0 : i32
    %c0_i32_1 = arith.constant 0 : i32
    %c0_i32_2 = arith.constant 0 : i32
    return %0, %c0_i32_0, %c0_i32_1 : i32, i32, i32
  }
  func.func @transform_2(%arg0: i32) -> (i32, i32) {
    %c0_i32 = arith.constant 0 : i32
    %c0_i32_0 = arith.constant 0 : i32
    %c0_i32_1 = arith.constant 0 : i32
    return %c0_i32, %c0_i32_0 : i32, i32
  }
  func.func @transform_3(%arg0: i32) -> (i32, i32) {
    %c0_i32 = arith.constant 0 : i32
    %c0_i32_0 = arith.constant 0 : i32
    %c0_i32_1 = arith.constant 0 : i32
    return %c0_i32, %c0_i32_0 : i32, i32
  }
  func.func @transform_4(%arg0: i32) -> (i32, i32, i32) {
    %c0_i32 = arith.constant 0 : i32
    %c0_i32_0 = arith.constant 0 : i32
    %c0_i32_1 = arith.constant 0 : i32
    return %arg0, %c0_i32, %c0_i32_0 : i32, i32, i32
  }
  func.func @transform_5(%arg0: i32) -> (i32, i32, i32) {
    %c0_i32 = arith.constant 0 : i32
    %0 = arith.subi %c0_i32, %arg0 : i32
    %c0_i32_0 = arith.constant 0 : i32
    %c0_i32_1 = arith.constant 0 : i32
    %c0_i32_2 = arith.constant 0 : i32
    return %0, %c0_i32_0, %c0_i32_1 : i32, i32, i32
  }
}

module attributes {stable_mosaic.version = 11 : i64} {
  func.func @_embedding_kernel(%arg0: i32, %arg1: memref<16x32xf32, #tpu.memory_space<vmem>>, %arg2: memref<16x32xf32, #tpu.memory_space<vmem>>, %arg3: memref<32x10xbf16, #tpu.memory_space<vmem>>, %arg4: memref<32x10xbf16, #tpu.memory_space<vmem>>, %arg5: memref<1x10xf32, #tpu.memory_space<vmem>>, %arg6: memref<16x10xf32, #tpu.memory_space<vmem>>) attributes {dimension_semantics = [#tpu.dimension_semantics<parallel>], iteration_bounds = array<i64: 1>, scalar_prefetch = 0 : i64, scratch_operands = 0 : i64, tpu.core_type = #tpu.core_type<tc>, window_params = [{transform_indices = @transform_0, window_bounds = array<i64: 16, 32>}, {transform_indices = @transform_1, window_bounds = array<i64: 16, 32>}, {pipeline_mode = #tpu.pipeline_mode<synchronous>, transform_indices = @transform_2, window_bounds = array<i64: 32, 10>}, {pipeline_mode = #tpu.pipeline_mode<synchronous>, transform_indices = @transform_3, window_bounds = array<i64: 32, 10>}, {pipeline_mode = #tpu.pipeline_mode<synchronous>, transform_indices = @transform_4, window_bounds = array<i64: 1, 10>}, {transform_indices = @transform_5, window_bounds = array<i64: 16, 10>}]} {
    %c0 = arith.constant 0 : index
    %c0_0 = arith.constant 0 : index
    %0 = vector.load %arg1[%c0, %c0_0] : memref<16x32xf32, #tpu.memory_space<vmem>>, vector<16x32xf32>
    %1 = arith.truncf %0 : vector<16x32xf32> to vector<16x32xbf16>
    %c0_1 = arith.constant 0 : index
    %c0_2 = arith.constant 0 : index
    %2 = vector.load %arg3[%c0_1, %c0_2] : memref<32x10xbf16, #tpu.memory_space<vmem>>, vector<32x10xbf16>
    %cst = arith.constant dense<0.000000e+00> : vector<16x10xf32>
    %3 = tpu.matmul %1, %2, %cst {dimension_numbers = #tpu.dot_dimension_numbers<[1], [0], [0], [1], [0, 0, 1, 1], [], []>} : vector<16x32xbf16>, vector<32x10xbf16>, vector<16x10xf32> -> vector<16x10xf32>
    %c0_3 = arith.constant 0 : index
    %c0_4 = arith.constant 0 : index
    %4 = vector.load %arg2[%c0_3, %c0_4] : memref<16x32xf32, #tpu.memory_space<vmem>>, vector<16x32xf32>
    %5 = arith.truncf %4 : vector<16x32xf32> to vector<16x32xbf16>
    %c0_5 = arith.constant 0 : index
    %c0_6 = arith.constant 0 : index
    %6 = vector.load %arg4[%c0_5, %c0_6] : memref<32x10xbf16, #tpu.memory_space<vmem>>, vector<32x10xbf16>
    %cst_7 = arith.constant dense<0.000000e+00> : vector<16x10xf32>
    %7 = tpu.matmul %5, %6, %cst_7 {dimension_numbers = #tpu.dot_dimension_numbers<[1], [0], [0], [1], [0, 0, 1, 1], [], []>} : vector<16x32xbf16>, vector<32x10xbf16>, vector<16x10xf32> -> vector<16x10xf32>
    %8 = arith.addf %3, %7 : vector<16x10xf32>
    %c0_8 = arith.constant 0 : index
    %c0_9 = arith.constant 0 : index
    %9 = vector.load %arg5[%c0_8, %c0_9] : memref<1x10xf32, #tpu.memory_space<vmem>>, vector<1x10xf32>
    %10 = vector.broadcast %9 : vector<1x10xf32> to vector<16x10xf32>
    %11 = arith.addf %8, %10 : vector<16x10xf32>
    %c0_10 = arith.constant 0 : index
    %c0_11 = arith.constant 0 : index
    %12 = vector.load %arg6[%c0_10, %c0_11] : memref<16x10xf32, #tpu.memory_space<vmem>>, vector<16x10xf32>
    tpu.vector_store %arg6[%c0_10, %c0_11], %11 {strides = array<i32>} : memref<16x10xf32, #tpu.memory_space<vmem>>, vector<16x10xf32>,
    return
  }
  func.func @transform_0(%arg0: i32) -> (i32, i32) {
    %c0_i32 = arith.constant 0 : i32
    %c0_i32_0 = arith.constant 0 : i32
    return %arg0, %c0_i32 : i32, i32
  }
  func.func @transform_1(%arg0: i32) -> (i32, i32) {
    %c0_i32 = arith.constant 0 : i32
    %c0_i32_0 = arith.constant 0 : i32
    return %arg0, %c0_i32 : i32, i32
  }
  func.func @transform_2(%arg0: i32) -> (i32, i32) {
    %c0_i32 = arith.constant 0 : i32
    %c0_i32_0 = arith.constant 0 : i32
    %c0_i32_1 = arith.constant 0 : i32
    return %c0_i32, %c0_i32_0 : i32, i32
  }
  func.func @transform_3(%arg0: i32) -> (i32, i32) {
    %c0_i32 = arith.constant 0 : i32
    %c0_i32_0 = arith.constant 0 : i32
    %c0_i32_1 = arith.constant 0 : i32
    return %c0_i32, %c0_i32_0 : i32, i32
  }
  func.func @transform_4(%arg0: i32) -> (i32, i32) {
    %c0_i32 = arith.constant 0 : i32
    %c0_i32_0 = arith.constant 0 : i32
    %c0_i32_1 = arith.constant 0 : i32
    return %c0_i32, %c0_i32_0 : i32, i32
  }
  func.func @transform_5(%arg0: i32) -> (i32, i32) {
    %c0_i32 = arith.constant 0 : i32
    %c0_i32_0 = arith.constant 0 : i32
    return %arg0, %c0_i32 : i32, i32
  }
}

</mosaic_0001>

<llo_original>
// kernel: bidirectional_lstm_forward.3
$region0: #{bidirectional_lstm_forward.3}
  #allocation0 [shape = 'u32[]', space=smem, size = 0x4, offset = 0x4, fixed_abs, tag = 'smem constant byte address 0x4 - core index']
  #allocation1 [shape = 'u32[144,128]{1,0:T(1,128)}', space=vmem, size = 0x12000, scoped, tag = 'internal scratch']
  %s0 = inlined_call_operand.vmem [shape: f32[16,16], index: 0, kind: input, shape index: {}]
  %s1 = inlined_call_operand.vmem [shape: bf16[16,256], index: 1, kind: input, shape index: {}]
  %s2 = inlined_call_operand.vmem [shape: f32[1,256], index: 2, kind: input, shape index: {}]
  %s3 = inlined_call_operand.vmem [shape: f32[16,128], index: 3, kind: output, shape index: {0}]
  %s4 = inlined_call_operand.vmem [shape: f32[16,128], index: 4, kind: output, shape index: {1}]
  %5 = xla_tuple %s3, %s4
  %s6 = sld [smem:[#allocation0]]
  $region30: #{bidirectional_lstm_forward.3} parent=0
    _
  %s8 = ssub.s32 1, %s6
  %s9 = scalar_select 0, %s8, %s6
  // Predicated region
  $region2: #{bidirectional_lstm_forward.3} parent=0 // pred_check
    _
  $region3: #{bidirectional_lstm_forward.3} parent=0 // pred_check_branch
    %11 = sbr.rel (0) target = $region5
  $region4: #{bidirectional_lstm_forward.3} parent=0 // pred_region
    _
  $region5: #{bidirectional_lstm_forward.3} parent=0 // pred_fallthru
    _
  // Predicated region
  $region6: #{bidirectional_lstm_forward.3} parent=0 // pred_check
    _
  $region7: #{bidirectional_lstm_forward.3} parent=0 // pred_check_branch
    %13 = sbr.rel (0) target = $region9
  $region8: #{bidirectional_lstm_forward.3} parent=0 // pred_region
    _
  $region9: #{bidirectional_lstm_forward.3} parent=0 // pred_fallthru
    _
  // Predicated region
  $region10: #{bidirectional_lstm_forward.3} parent=0 // pred_check
    _
  $region11: #{bidirectional_lstm_forward.3} parent=0 // pred_check_branch
    %15 = sbr.rel (0) target = $region13
  $region12: #{bidirectional_lstm_forward.3} parent=0 // pred_region
    _
  $region13: #{bidirectional_lstm_forward.3} parent=0 // pred_fallthru
    _
  %v17 = vld [vmem:[%s0] sm:$0xff]
  %v18 = vld [vmem:[%s0 + $0x8] sm:$0xff]
  %v19 = vpack.c.bf16 %v18, %v17
  %v20 = vld [vmem:[%s1] sm:$0xff]
  %v21 = vld [vmem:[%s1 + $0x8] sm:$0xff]
  %v22 = vld [vmem:[%s2] sm:$0x3]
  %v24 = vlaneseq
  %v25 = vshrl.u32 %v24, 7
  %v26 = vsub.s32 0, %v25
  %v27 = vrot.slane %v22, %v26
  %v28 = vlaneseq
  %v29 = vshrl.u32 %v28, 7
  %v30 = vsub.s32 1, %v29
  %v31 = vrot.slane %v22, %v30
  %v36 = vunpack.c.l.b16 %v20
  %v37 = vunpack.c.h.b16 %v20
  %v38 = vunpack.c.l.b16 %v21
  %v39 = vunpack.c.h.b16 %v21
  %v40 = vpack.c.b16 %v38, %v36
  %v41 = vpack.c.b16 %v39, %v37
  %vm44 = vcmask 130048
  %v46 = vsel %vm44, %v19, 0
  %48 = vmatprep.subr.bf16.mxu0 %v41
  %49 = vmatpush1.bf16.msra.mxu0 %v40
  %50 = vmatprep.subr.bf16.mxu0 0
  %51 = vmatpush1.bf16.msra.mxu0 0
  %52 = vmatprep.subr.bf16.mxu0 0
  %53 = vmatpush1.bf16.msra.mxu0 0
  %54 = vmatprep.subr.bf16.mxu0 0
  %55 = vmatpush1.bf16.msra.mxu0 0
  %56 = vmatprep.subr.bf16.mxu0 0
  %57 = vmatpush1.bf16.msra.mxu0 0
  %58 = vmatprep.subr.bf16.mxu0 0
  %59 = vmatpush1.bf16.msra.mxu0 0
  %60 = vmatprep.subr.bf16.mxu0 0
  %61 = vmatpush1.bf16.msra.mxu0 0
  %62 = vmatprep.subr.bf16.mxu0 0
  %63 = vmatpush1.bf16.msra.mxu0 0
  %64 = vmatprep.subr.bf16.mxu0 0
  %65 = vmatpush1.bf16.msra.mxu0 0
  %66 = vmatprep.subr.bf16.mxu0 0
  %67 = vmatpush1.bf16.msra.mxu0 0
  %68 = vmatprep.subr.bf16.mxu0 0
  %69 = vmatpush1.bf16.msra.mxu0 0
  %70 = vmatprep.subr.bf16.mxu0 0
  %71 = vmatpush1.bf16.msra.mxu0 0
  %72 = vmatprep.subr.bf16.mxu0 0
  %73 = vmatpush1.bf16.msra.mxu0 0
  %74 = vmatprep.subr.bf16.mxu0 0
  %75 = vmatpush1.bf16.msra.mxu0 0
  %76 = vmatprep.subr.bf16.mxu0 0
  %77 = vmatpush1.bf16.msra.mxu0 0
  %78 = vmatprep.subr.bf16.mxu0 0
  %79 = vmatpush1.bf16.msra.mxu0 0
  %80 = vmatprep.mubr.bf16.mxu0 0
  %81 = vmatmul.mubr.bf16.gmra.mrb[0].mxu0 %v46
  %v82 = vpop.f32.mrb[0].mxu0
  %v83 = vadd.f32 %v27, %v82
  %v84 = vpop.f32.mrb[0].mxu0
  %v85 = vadd.f32 %v31, %v84
  %v86 = vpop.f32.mrb[0].mxu0
  %v87 = vadd.f32 %v27, %v86
  %v88 = vpop.f32.mrb[0].mxu0
  %v89 = vadd.f32 %v31, %v88
  %90 = vdwg.mxu0
  %91 = vst [vmem:[%s3] sm:$0xff] %v83
  %92 = vst [vmem:[%s3 + $0x8] sm:$0xff] %v87
  %93 = vst [vmem:[%s4] sm:$0xff] %v85
  %94 = vst [vmem:[%s4 + $0x8] sm:$0xff] %v89
  // Predicated region
  $region14: #{bidirectional_lstm_forward.3} parent=0 // pred_check
    _
  $region15: #{bidirectional_lstm_forward.3} parent=0 // pred_check_branch
    %96 = sbr.rel (0) target = $region17
  $region16: #{bidirectional_lstm_forward.3} parent=0 // pred_region
    _
  $region17: #{bidirectional_lstm_forward.3} parent=0 // pred_fallthru
    _
  // Predicated region
  $region18: #{bidirectional_lstm_forward.3} parent=0 // pred_check
    _
  $region19: #{bidirectional_lstm_forward.3} parent=0 // pred_check_branch
    %98 = sbr.rel (0) target = $region21
  $region20: #{bidirectional_lstm_forward.3} parent=0 // pred_region
    _
  $region21: #{bidirectional_lstm_forward.3} parent=0 // pred_fallthru
    _
  // Predicated region
  $region22: #{bidirectional_lstm_forward.3} parent=0 // pred_check
    _
  $region23: #{bidirectional_lstm_forward.3} parent=0 // pred_check_branch
    %100 = sbr.rel (0) target = $region25
  $region24: #{bidirectional_lstm_forward.3} parent=0 // pred_region
    _
  $region25: #{bidirectional_lstm_forward.3} parent=0 // pred_fallthru
    _
  // Predicated region
  $region26: #{bidirectional_lstm_forward.3} parent=0 // pred_check
    _
  $region27: #{bidirectional_lstm_forward.3} parent=0 // pred_check_branch
    %102 = sbr.rel (0) target = $region29
  $region28: #{bidirectional_lstm_forward.3} parent=0 // pred_region
    _
  $region29: #{bidirectional_lstm_forward.3} parent=0 // pred_fallthru
    _

// kernel: bidirectional_lstm_forward.5
$region0: #{bidirectional_lstm_forward.5}
  #allocation0 [shape = 'u32[]', space=smem, size = 0x4, offset = 0x4, fixed_abs, tag = 'smem constant byte address 0x4 - core index']
  #allocation1 [shape = 'u32[144,128]{1,0:T(1,128)}', space=vmem, size = 0x12000, scoped, tag = 'internal scratch']
  %s0 = inlined_call_operand.vmem [shape: f32[16,32], index: 0, kind: input, shape index: {}]
  %s1 = inlined_call_operand.vmem [shape: f32[16,32], index: 1, kind: input, shape index: {}]
  %s2 = inlined_call_operand.vmem [shape: bf16[32,10], index: 2, kind: input, shape index: {}]
  %s3 = inlined_call_operand.vmem [shape: bf16[32,10], index: 3, kind: input, shape index: {}]
  %s4 = inlined_call_operand.vmem [shape: f32[1,10], index: 4, kind: input, shape index: {}]
  %s5 = inlined_call_operand.hbm [shape: f32[16,10], index: 5, kind: output, shape index: {}]
  %s6 = sld [smem:[#allocation0]]
  $region30: #{bidirectional_lstm_forward.5} parent=0
    _
  %s8 = ssub.s32 1, %s6
  %s9 = scalar_select 0, %s8, %s6
  $region1: #{bidirectional_lstm_forward.5} parent=0
    #allocation2 [shape = 'u8[8192]{0}', space=vmem, size = 0x2000, scoped, tag = 'output window, operand 0, single buffered']
    #allocation3 [shape = 's32[1]{0}', space=sflag, size = 0x4, scoped, tag = 'scoped memory for bidirectional_lstm_forward.5']
    %10 = vsyncpa [#allocation3], 0
    // Predicated region
    $region2: #{bidirectional_lstm_forward.5} parent=1 // pred_check
      _
    $region3: #{bidirectional_lstm_forward.5} parent=1 // pred_check_branch
      %12 = sbr.rel (0) target = $region5
    $region4: #{bidirectional_lstm_forward.5} parent=1 // pred_region
      _
    $region5: #{bidirectional_lstm_forward.5} parent=1 // pred_fallthru
      _
    // Predicated region
    $region6: #{bidirectional_lstm_forward.5} parent=1 // pred_check
      _
    $region7: #{bidirectional_lstm_forward.5} parent=1 // pred_check_branch
      %14 = sbr.rel (0) target = $region9
    $region8: #{bidirectional_lstm_forward.5} parent=1 // pred_region
      _
    $region9: #{bidirectional_lstm_forward.5} parent=1 // pred_fallthru
      _
    // Predicated region
    $region10: #{bidirectional_lstm_forward.5} parent=1 // pred_check
      _
    $region11: #{bidirectional_lstm_forward.5} parent=1 // pred_check_branch
      %16 = sbr.rel (0) target = $region13
    $region12: #{bidirectional_lstm_forward.5} parent=1 // pred_region
      _
    $region13: #{bidirectional_lstm_forward.5} parent=1 // pred_fallthru
      _
    // Predicated region
    $region14: #{bidirectional_lstm_forward.5} parent=1 // pred_check
      _
    $region15: #{bidirectional_lstm_forward.5} parent=1 // pred_check_branch
      %18 = sbr.rel (0) target = $region17
    $region16: #{bidirectional_lstm_forward.5} parent=1 // pred_region
      _
    $region17: #{bidirectional_lstm_forward.5} parent=1 // pred_fallthru
      _
    // Predicated region
    $region18: #{bidirectional_lstm_forward.5} parent=1 // pred_check
      _
    $region19: #{bidirectional_lstm_forward.5} parent=1 // pred_check_branch
      %20 = sbr.rel (0) target = $region21
    $region20: #{bidirectional_lstm_forward.5} parent=1 // pred_region
      _
    $region21: #{bidirectional_lstm_forward.5} parent=1 // pred_fallthru
      _
    %v22 = vld [vmem:[%s0] sm:$0xff]
    %v23 = vld [vmem:[%s0 + $0x8] sm:$0xff]
    %v24 = vpack.c.bf16 %v23, %v22
    %v25 = vld [vmem:[%s2] sm:$0xf]
    %v26 = vld [vmem:[%s2 + $0x4] sm:$0xf]
    %v27 = vld [vmem:[%s2 + $0x8] sm:$0xf]
    %v28 = vld [vmem:[%s2 + $0xc] sm:$0xf]
    %v29 = vld [vmem:[%s1] sm:$0xff]
    %v30 = vld [vmem:[%s1 + $0x8] sm:$0xff]
    %v31 = vpack.c.bf16 %v30, %v29
    %v32 = vld [vmem:[%s3] sm:$0xf]
    %v33 = vld [vmem:[%s3 + $0x4] sm:$0xf]
    %v34 = vld [vmem:[%s3 + $0x8] sm:$0xf]
    %v35 = vld [vmem:[%s3 + $0xc] sm:$0xf]
    %v40 = vunpack.c.l.b16 %v32
    %v41 = vunpack.c.l.b16 %v33
    %v42 = vunpack.c.l.b16 %v34
    %v43 = vunpack.c.l.b16 %v35
    %v44 = vpack.c.b16 %v41, %v40
    %v45 = vpack.c.b16 %v43, %v42
    %vm48 = vcmask 261120
    %v50 = vsel %vm48, %v31, 0
    %52 = vmatprep.subr.bf16.mxu0 0
    %53 = vmatpush1.bf16.msra.mxu0 %v44
    %54 = vmatprep.subr.bf16.mxu0 0
    %55 = vmatpush1.bf16.msra.mxu0 %v45
    %56 = vmatprep.subr.bf16.mxu0 0
    %57 = vmatpush1.bf16.msra.mxu0 0
    %58 = vmatprep.subr.bf16.mxu0 0
    %59 = vmatpush1.bf16.msra.mxu0 0
    %60 = vmatprep.subr.bf16.mxu0 0
    %61 = vmatpush1.bf16.msra.mxu0 0
    %62 = vmatprep.subr.bf16.mxu0 0
    %63 = vmatpush1.bf16.msra.mxu0 0
    %64 = vmatprep.subr.bf16.mxu0 0
    %65 = vmatpush1.bf16.msra.mxu0 0
    %66 = vmatprep.subr.bf16.mxu0 0
    %67 = vmatpush1.bf16.msra.mxu0 0
    %68 = vmatprep.subr.bf16.mxu0 0
    %69 = vmatpush1.bf16.msra.mxu0 0
    %70 = vmatprep.subr.bf16.mxu0 0
    %71 = vmatpush1.bf16.msra.mxu0 0
    %72 = vmatprep.subr.bf16.mxu0 0
    %73 = vmatpush1.bf16.msra.mxu0 0
    %74 = vmatprep.subr.bf16.mxu0 0
    %75 = vmatpush1.bf16.msra.mxu0 0
    %76 = vmatprep.subr.bf16.mxu0 0
    %77 = vmatpush1.bf16.msra.mxu0 0
    %78 = vmatprep.subr.bf16.mxu0 0
    %79 = vmatpush1.bf16.msra.mxu0 0
    %80 = vmatprep.subr.bf16.mxu0 0
    %81 = vmatpush1.bf16.msra.mxu0 0
    %82 = vmatprep.subr.bf16.mxu0 0
    %83 = vmatpush1.bf16.msra.mxu0 0
    %84 = vmatprep.mubr.bf16.mxu0 0
    %85 = vmatmul.mubr.bf16.gmra.mrb[0].mxu0 %v50
    %v86 = vpop.f32.mrb[0].mxu0
    %v87 = vadd.f32 0.0, %v86
    %v88 = vpop.f32.mrb[0].mxu0
    %v89 = vpop.f32.mrb[0].mxu0
    %v90 = vadd.f32 0.0, %v89
    %v91 = vpop.f32.mrb[0].mxu0
    %92 = vdwg.mxu0
    %v97 = vunpack.c.l.b16 %v25
    %v98 = vunpack.c.l.b16 %v26
    %v99 = vunpack.c.l.b16 %v27
    %v100 = vunpack.c.l.b16 %v28
    %v101 = vpack.c.b16 %v98, %v97
    %v102 = vpack.c.b16 %v100, %v99
    %v106 = vsel %vm48, %v24, 0
    %108 = vmatprep.subr.bf16.mxu0 0
    %109 = vmatpush1.bf16.msra.mxu0 %v101
    %110 = vmatprep.subr.bf16.mxu0 0
    %111 = vmatpush1.bf16.msra.mxu0 %v102
    %112 = vmatprep.subr.bf16.mxu0 0
    %113 = vmatpush1.bf16.msra.mxu0 0
    %114 = vmatprep.subr.bf16.mxu0 0
    %115 = vmatpush1.bf16.msra.mxu0 0
    %116 = vmatprep.subr.bf16.mxu0 0
    %117 = vmatpush1.bf16.msra.mxu0 0
    %118 = vmatprep.subr.bf16.mxu0 0
    %119 = vmatpush1.bf16.msra.mxu0 0
    %120 = vmatprep.subr.bf16.mxu0 0
    %121 = vmatpush1.bf16.msra.mxu0 0
    %122 = vmatprep.subr.bf16.mxu0 0
    %123 = vmatpush1.bf16.msra.mxu0 0
    %124 = vmatprep.subr.bf16.mxu0 0
    %125 = vmatpush1.bf16.msra.mxu0 0
    %126 = vmatprep.subr.bf16.mxu0 0
    %127 = vmatpush1.bf16.msra.mxu0 0
    %128 = vmatprep.subr.bf16.mxu0 0
    %129 = vmatpush1.bf16.msra.mxu0 0
    %130 = vmatprep.subr.bf16.mxu0 0
    %131 = vmatpush1.bf16.msra.mxu0 0
    %132 = vmatprep.subr.bf16.mxu0 0
    %133 = vmatpush1.bf16.msra.mxu0 0
    %134 = vmatprep.subr.bf16.mxu0 0
    %135 = vmatpush1.bf16.msra.mxu0 0
    %136 = vmatprep.subr.bf16.mxu0 0
    %137 = vmatpush1.bf16.msra.mxu0 0
    %138 = vmatprep.subr.bf16.mxu0 0
    %139 = vmatpush1.bf16.msra.mxu0 0
    %140 = vmatprep.mubr.bf16.mxu0 0
    %141 = vmatmul.mubr.bf16.gmra.mrb[0].mxu0 %v106
    %v142 = vpop.f32.mrb[0].mxu0
    %v143 = vadd.f32 %v87, %v142
    %v144 = vpop.f32.mrb[0].mxu0
    %v145 = vpop.f32.mrb[0].mxu0
    %v146 = vadd.f32 %v90, %v145
    %v147 = vpop.f32.mrb[0].mxu0
    %148 = vdwg.mxu0
    %v149 = vld [vmem:[%s4] sm:$0x1]
    %v151 = vlaneseq
    %v152 = vshrl.u32 %v151, 7
    %v153 = vsub.s32 0, %v152
    %v154 = vrot.slane %v149, %v153
    %v156 = vadd.f32 %v143, %v154
    %v157 = vadd.f32 %v146, %v154
    %vm158 = vcmask 80896
    %159 = vst.msk [vmem:[#allocation2] sm:$0xff] %vm158, %v156
    %160 = vst.msk [vmem:[#allocation2 + $0x8] sm:$0xff] %vm158, %v157
    // Predicated region
    $region22: #{bidirectional_lstm_forward.5} parent=1 // pred_check
      _
    $region23: #{bidirectional_lstm_forward.5} parent=1 // pred_check_branch
      %162 = sbr.rel (0) target = $region25
    $region24: #{bidirectional_lstm_forward.5} parent=1 // pred_region
      %s164 = ssub.s32 256, 256
      %165 = vsyncadd [#allocation3], %s164
      %s166 = sshll.u32 [#allocation2], 4
      %s167 = int_to_ptr.vmem [resolvable:$true] %s166
      %172 = dma.vmem_to_hbm [thread:$0]  %s167, 256, %s5, [#allocation3], 128, 128, 8
    $region25: #{bidirectional_lstm_forward.5} parent=1 // pred_fallthru
      _
    // Predicated region
    $region26: #{bidirectional_lstm_forward.5} parent=1 // pred_check
      _
    $region27: #{bidirectional_lstm_forward.5} parent=1 // pred_check_branch
      %174 = sbr.rel (0) target = $region29
    $region28: #{bidirectional_lstm_forward.5} parent=1 // pred_region
      %175 = dma.done [#allocation3], 256
    $region29: #{bidirectional_lstm_forward.5} parent=1 // pred_fallthru
      _
    %176 = vsyncpa [#allocation3], 1

// kernel: bidirectional_lstm_forward.4
$region0: #{bidirectional_lstm_forward.4}
  #allocation0 [shape = 'u32[]', space=smem, size = 0x4, offset = 0x4, fixed_abs, tag = 'smem constant byte address 0x4 - core index']
  #allocation1 [shape = 'u32[144,128]{1,0:T(1,128)}', space=vmem, size = 0x12000, scoped, tag = 'internal scratch']
  #allocation2 [shape = 'f32[2,32]{1,0:T(2,128)}', space=vmem, size = 0x400, scoped, tag = 'scratch operand']
  #allocation3 [shape = 'f32[2,32]{1,0:T(2,128)}', space=vmem, size = 0x400, scoped, tag = 'scratch operand']
  #allocation4 [shape = 'f32[2,32]{1,0:T(2,128)}', space=vmem, size = 0x400, scoped, tag = 'scratch operand']
  #allocation5 [shape = 'f32[2,32]{1,0:T(2,128)}', space=vmem, size = 0x400, scoped, tag = 'scratch operand']
  %s0 = inlined_call_operand.vmem [shape: f32[8,2,128], index: 0, kind: input, shape index: {}]
  %s1 = inlined_call_operand.vmem [shape: f32[8,2,128], index: 1, kind: input, shape index: {}]
  %s2 = inlined_call_operand.vmem [shape: bf16[32,128], index: 2, kind: input, shape index: {}]
  %s3 = inlined_call_operand.vmem [shape: bf16[32,128], index: 3, kind: input, shape index: {}]
  %s4 = inlined_call_operand.vmem [shape: f32[8,2,32], index: 4, kind: output, shape index: {0}]
  %s5 = inlined_call_operand.vmem [shape: f32[8,2,32], index: 5, kind: output, shape index: {1}]
  %6 = xla_tuple %s4, %s5
  %s7 = sld [smem:[#allocation0]]
  $region38: #{bidirectional_lstm_forward.4} parent=0
    _
  %s9 = ssub.s32 1, %s7
  %s10 = scalar_select 0, %s9, %s7
  // Predicated region
  $region2: #{bidirectional_lstm_forward.4} parent=0 // pred_check
    _
  $region3: #{bidirectional_lstm_forward.4} parent=0 // pred_check_branch
    %12 = sbr.rel (0) target = $region5
  $region4: #{bidirectional_lstm_forward.4} parent=0 // pred_region
    _
  $region5: #{bidirectional_lstm_forward.4} parent=0 // pred_fallthru
    _
  // Predicated region
  $region6: #{bidirectional_lstm_forward.4} parent=0 // pred_check
    _
  $region7: #{bidirectional_lstm_forward.4} parent=0 // pred_check_branch
    %14 = sbr.rel (0) target = $region9
  $region8: #{bidirectional_lstm_forward.4} parent=0 // pred_region
    %s15 = ssub.s32 0, 0
    %s16 = smul.u32 8, %s15
    %p17 = scmp.lt.s32.totalorder %s16, 7
    %s18 = scalar_select %p17, %s16, 7
    %s19 = smul.addr %s18, 2
    %s20 = scalar_lea.vmem %s1, %s19
    %s21 = ssub.s32 0, 0
    %s22 = smul.u32 8, %s21
  $region9: #{bidirectional_lstm_forward.4} parent=0 // pred_fallthru
    _
  // Predicated region
  $region10: #{bidirectional_lstm_forward.4} parent=0 // pred_check
    _
  $region11: #{bidirectional_lstm_forward.4} parent=0 // pred_check_branch
    %24 = sbr.rel (0) target = $region13
  $region12: #{bidirectional_lstm_forward.4} parent=0 // pred_region
    _
  $region13: #{bidirectional_lstm_forward.4} parent=0 // pred_fallthru
    _
  // Predicated region
  $region14: #{bidirectional_lstm_forward.4} parent=0 // pred_check
    _
  $region15: #{bidirectional_lstm_forward.4} parent=0 // pred_check_branch
    %26 = sbr.rel (0) target = $region17
  $region16: #{bidirectional_lstm_forward.4} parent=0 // pred_region
    _
  $region17: #{bidirectional_lstm_forward.4} parent=0 // pred_fallthru
    _
  %s27 = ssub.s32 0, 0
  %s28 = smul.u32 8, %s27
  %p29 = scmp.lt.s32.totalorder %s28, 7
  %s30 = scalar_select %p29, %s28, 7
  %s31 = smul.addr %s30, 2
  %s32 = scalar_lea.vmem %s1, %s31
  %s33 = ssub.s32 0, 0
  %s34 = smul.u32 8, %s33
  %p35 = scmp.lt.s32.totalorder %s34, 7
  %s36 = scalar_select %p35, %s34, 7
  %s37 = smul.addr %s36, 2
  %s38 = scalar_lea.vmem %s5, %s37
  %s39 = ssub.s32 0, 0
  %s40 = smul.u32 8, %s39
  %p41 = scmp.lt.s32.totalorder %s40, 7
  %s42 = scalar_select %p41, %s40, 7
  %s43 = smul.addr %s42, 2
  %s44 = scalar_lea.vmem %s1, %s43
  %s45 = ssub.s32 0, 0
  %s46 = smul.u32 8, %s45
  %s47 = ssub.s32 0, 0
  %s48 = smul.u32 8, %s47
  %p49 = scmp.lt.s32.totalorder %s48, 7
  %s50 = scalar_select %p49, %s48, 7
  %s51 = smul.addr %s50, 2
  %s52 = scalar_lea.vmem %s5, %s51
  %s53 = ssub.s32 0, 0
  %s54 = smul.u32 8, %s53
  %p56 = scmp.eq.s32.totalorder 0, 0
  // Predicated region
  $region18: #{bidirectional_lstm_forward.4} parent=0 // pred_check
    %p57 = pneg %p56
  $region19: #{bidirectional_lstm_forward.4} parent=0 // pred_check_branch
    %59 = sbr.rel (%p57) target = $region21
  $region20: #{bidirectional_lstm_forward.4} parent=0 // pred_region
    %vm60 = vcmask 254976
    %61 = vst.msk [vmem:[#allocation2] sm:$0x3] %vm60, 0.0
    %62 = vst.msk [vmem:[#allocation3] sm:$0x3] %vm60, 0.0
    %63 = vst.msk [vmem:[#allocation4] sm:$0x3] %vm60, 0.0
    %64 = vst.msk [vmem:[#allocation5] sm:$0x3] %vm60, 0.0
  $region21: #{bidirectional_lstm_forward.4} parent=0 // pred_fallthru
    _
  %v65 = vld [vmem:[%s0] sm:$0x3]
  %v66 = vld [vmem:[#allocation2] sm:$0x3]
  %v67 = vld [vmem:[#allocation3] sm:$0x3]
  %v68 = vpack.c.bf16 %v66, %v66
  %v69 = vld [vmem:[%s2] sm:$0xf]
  %v70 = vld [vmem:[%s2 + $0x4] sm:$0xf]
  %v71 = vld [vmem:[%s2 + $0x8] sm:$0xf]
  %v72 = vld [vmem:[%s2 + $0xc] sm:$0xf]
  %v77 = vunpack.c.l.b16 %v69
  %v78 = vunpack.c.l.b16 %v70
  %v79 = vunpack.c.l.b16 %v71
  %v80 = vunpack.c.l.b16 %v72
  %v81 = vpack.c.b16 %v78, %v77
  %v82 = vpack.c.b16 %v80, %v79
  %vm85 = vcmask 261120
  %v87 = vsel %vm85, %v68, 0
  %89 = vmatprep.subr.bf16.mxu0 0
  %90 = vmatpush1.bf16.msra.mxu0 %v81
  %91 = vmatprep.subr.bf16.mxu0 0
  %92 = vmatpush1.bf16.msra.mxu0 %v82
  %93 = vmatprep.subr.bf16.mxu0 0
  %94 = vmatpush1.bf16.msra.mxu0 0
  %95 = vmatprep.subr.bf16.mxu0 0
  %96 = vmatpush1.bf16.msra.mxu0 0
  %97 = vmatprep.subr.bf16.mxu0 0
  %98 = vmatpush1.bf16.msra.mxu0 0
  %99 = vmatprep.subr.bf16.mxu0 0
  %100 = vmatpush1.bf16.msra.mxu0 0
  %101 = vmatprep.subr.bf16.mxu0 0
  %102 = vmatpush1.bf16.msra.mxu0 0
  %103 = vmatprep.subr.bf16.mxu0 0
  %104 = vmatpush1.bf16.msra.mxu0 0
  %105 = vmatprep.subr.bf16.mxu0 0
  %106 = vmatpush1.bf16.msra.mxu0 0
  %107 = vmatprep.subr.bf16.mxu0 0
  %108 = vmatpush1.bf16.msra.mxu0 0
  %109 = vmatprep.subr.bf16.mxu0 0
  %110 = vmatpush1.bf16.msra.mxu0 0
  %111 = vmatprep.subr.bf16.mxu0 0
  %112 = vmatpush1.bf16.msra.mxu0 0
  %113 = vmatprep.subr.bf16.mxu0 0
  %114 = vmatpush1.bf16.msra.mxu0 0
  %115 = vmatprep.subr.bf16.mxu0 0
  %116 = vmatpush1.bf16.msra.mxu0 0
  %117 = vmatprep.subr.bf16.mxu0 0
  %118 = vmatpush1.bf16.msra.mxu0 0
  %119 = vmatprep.subr.bf16.mxu0 0
  %120 = vmatpush1.bf16.msra.mxu0 0
  %121 = vmatprep.mubr.bf16.mxu0 0
  %122 = vmatmul.mubr.bf16.gmra.mrb[0].mxu0 %v87
  %v123 = vpop.f32.mrb[0].mxu0
  %v124 = vadd.f32 0.0, %v123
  %v125 = vpop.f32.mrb[0].mxu0
  %v126 = vpop.f32.mrb[0].mxu0
  %v127 = vpop.f32.mrb[0].mxu0
  %128 = vdwg.mxu0
  %v129 = vadd.f32 %v65, %v124
  %v130 = vxor.u32 %v129, 2147483648
  %v131 = vmul.f32 %v130, 1.442695
  %v132 = vpow.pop %v131
  %v133 = vadd.f32 %v132, 1.0
  %v134 = vrcp.pop %v133
  %v135 = vmul.f32 1.0, %v134
  %v136 = vtanh.pop %v129
  %138 = vrot.lane.b32.xlu0 %v67, 32
  %v139 = vpop.permute.xlu0 %138
  %v141 = vmul.f32 %v135, %v139
  %143 = vrot.lane.b32.xlu0 %v136, 64
  %v144 = vpop.permute.xlu0 %143
  %v146 = vmul.f32 %v135, %v144
  %148 = vrot.lane.b32.xlu0 %v146, 32
  %v149 = vpop.permute.xlu0 %148
  %v151 = vadd.f32 %v141, %v149
  %v152 = vtanh.pop %v151
  %154 = vrot.lane.b32.xlu0 %v152, 64
  %v155 = vpop.permute.xlu0 %154
  %v157 = vmul.f32 %v135, %v155
  %159 = vrot.lane.b32.xlu0 %v157, 32
  %v160 = vpop.permute.xlu0 %159
  %vm162 = vcmask 254976
  %163 = vst.msk [vmem:[#allocation2] sm:$0x3] %vm162, %v160
  %165 = vrot.lane.b32.xlu0 %v151, 96
  %v166 = vpop.permute.xlu0 %165
  %168 = vst.msk [vmem:[#allocation3] sm:$0x3] %vm162, %v166
  %169 = vst.msk [vmem:[%s4] sm:$0x3] %vm162, %v160
  %s170 = scalar_lea.vmem %s44, 14
  %v171 = vld [vmem:[%s170] sm:$0x3]
  %v172 = vld [vmem:[#allocation4] sm:$0x3]
  %v173 = vld [vmem:[#allocation5] sm:$0x3]
  %v174 = vpack.c.bf16 %v172, %v172
  %v175 = vld [vmem:[%s3] sm:$0xf]
  %v176 = vld [vmem:[%s3 + $0x4] sm:$0xf]
  %v177 = vld [vmem:[%s3 + $0x8] sm:$0xf]
  %v178 = vld [vmem:[%s3 + $0xc] sm:$0xf]
  %v183 = vunpack.c.l.b16 %v175
  %v184 = vunpack.c.l.b16 %v176
  %v185 = vunpack.c.l.b16 %v177
  %v186 = vunpack.c.l.b16 %v178
  %v187 = vpack.c.b16 %v184, %v183
  %v188 = vpack.c.b16 %v186, %v185
  %v192 = vsel %vm85, %v174, 0
  %194 = vmatprep.subr.bf16.mxu0 0
  %195 = vmatpush1.bf16.msra.mxu0 %v187
  %196 = vmatprep.subr.bf16.mxu0 0
  %197 = vmatpush1.bf16.msra.mxu0 %v188
  %198 = vmatprep.subr.bf16.mxu0 0
  %199 = vmatpush1.bf16.msra.mxu0 0
  %200 = vmatprep.subr.bf16.mxu0 0
  %201 = vmatpush1.bf16.msra.mxu0 0
  %202 = vmatprep.subr.bf16.mxu0 0
  %203 = vmatpush1.bf16.msra.mxu0 0
  %204 = vmatprep.subr.bf16.mxu0 0
  %205 = vmatpush1.bf16.msra.mxu0 0
  %206 = vmatprep.subr.bf16.mxu0 0
  %207 = vmatpush1.bf16.msra.mxu0 0
  %208 = vmatprep.subr.bf16.mxu0 0
  %209 = vmatpush1.bf16.msra.mxu0 0
  %210 = vmatprep.subr.bf16.mxu0 0
  %211 = vmatpush1.bf16.msra.mxu0 0
  %212 = vmatprep.subr.bf16.mxu0 0
  %213 = vmatpush1.bf16.msra.mxu0 0
  %214 = vmatprep.subr.bf16.mxu0 0
  %215 = vmatpush1.bf16.msra.mxu0 0
  %216 = vmatprep.subr.bf16.mxu0 0
  %217 = vmatpush1.bf16.msra.mxu0 0
  %218 = vmatprep.subr.bf16.mxu0 0
  %219 = vmatpush1.bf16.msra.mxu0 0
  %220 = vmatprep.subr.bf16.mxu0 0
  %221 = vmatpush1.bf16.msra.mxu0 0
  %222 = vmatprep.subr.bf16.mxu0 0
  %223 = vmatpush1.bf16.msra.mxu0 0
  %224 = vmatprep.subr.bf16.mxu0 0
  %225 = vmatpush1.bf16.msra.mxu0 0
  %226 = vmatprep.mubr.bf16.mxu0 0
  %227 = vmatmul.mubr.bf16.gmra.mrb[0].mxu0 %v192
  %v228 = vpop.f32.mrb[0].mxu0
  %v229 = vadd.f32 0.0, %v228
  %v230 = vpop.f32.mrb[0].mxu0
  %v231 = vpop.f32.mrb[0].mxu0
  %v232 = vpop.f32.mrb[0].mxu0
  %233 = vdwg.mxu0
  %v234 = vadd.f32 %v171, %v229
  %v235 = vxor.u32 %v234, 2147483648
  %v236 = vmul.f32 %v235, 1.442695
  %v237 = vpow.pop %v236
  %v238 = vadd.f32 %v237, 1.0
  %v239 = vrcp.pop %v238
  %v240 = vmul.f32 1.0, %v239
  %v241 = vtanh.pop %v234
  %243 = vrot.lane.b32.xlu0 %v173, 32
  %v244 = vpop.permute.xlu0 %243
  %v246 = vmul.f32 %v240, %v244
  %248 = vrot.lane.b32.xlu0 %v241, 64
  %v249 = vpop.permute.xlu0 %248
  %v251 = vmul.f32 %v240, %v249
  %253 = vrot.lane.b32.xlu0 %v251, 32
  %v254 = vpop.permute.xlu0 %253
  %v256 = vadd.f32 %v246, %v254
  %v257 = vtanh.pop %v256
  %259 = vrot.lane.b32.xlu0 %v257, 64
  %v260 = vpop.permute.xlu0 %259
  %v262 = vmul.f32 %v240, %v260
  %264 = vrot.lane.b32.xlu0 %v262, 32
  %v265 = vpop.permute.xlu0 %264
  %267 = vst.msk [vmem:[#allocation4] sm:$0x3] %vm162, %v265
  %269 = vrot.lane.b32.xlu0 %v256, 96
  %v270 = vpop.permute.xlu0 %269
  %272 = vst.msk [vmem:[#allocation5] sm:$0x3] %vm162, %v270
  %s273 = scalar_lea.vmem %s52, 14
  %274 = vst.msk [vmem:[%s273] sm:$0x3] %vm162, %v265
  %s275 = scalar_lea.vmem %s0, 2
  %v276 = vld [vmem:[%s275] sm:$0x3]
  %v277 = vld [vmem:[#allocation2] sm:$0x3]
  %v278 = vld [vmem:[#allocation3] sm:$0x3]
  %v279 = vpack.c.bf16 %v277, %v277
  %v280 = vld [vmem:[%s2] sm:$0xf]
  %v281 = vld [vmem:[%s2 + $0x4] sm:$0xf]
  %v282 = vld [vmem:[%s2 + $0x8] sm:$0xf]
  %v283 = vld [vmem:[%s2 + $0xc] sm:$0xf]
  %v288 = vunpack.c.l.b16 %v280
  %v289 = vunpack.c.l.b16 %v281
  %v290 = vunpack.c.l.b16 %v282
  %v291 = vunpack.c.l.b16 %v283
  %v292 = vpack.c.b16 %v289, %v288
  %v293 = vpack.c.b16 %v291, %v290
  %v297 = vsel %vm85, %v279, 0
  %299 = vmatprep.subr.bf16.mxu0 0
  %300 = vmatpush1.bf16.msra.mxu0 %v292
  %301 = vmatprep.subr.bf16.mxu0 0
  %302 = vmatpush1.bf16.msra.mxu0 %v293
  %303 = vmatprep.subr.bf16.mxu0 0
  %304 = vmatpush1.bf16.msra.mxu0 0
  %305 = vmatprep.subr.bf16.mxu0 0
  %306 = vmatpush1.bf16.msra.mxu0 0
  %307 = vmatprep.subr.bf16.mxu0 0
  %308 = vmatpush1.bf16.msra.mxu0 0
  %309 = vmatprep.subr.bf16.mxu0 0
  %310 = vmatpush1.bf16.msra.mxu0 0
  %311 = vmatprep.subr.bf16.mxu0 0
  %312 = vmatpush1.bf16.msra.mxu0 0
  %313 = vmatprep.subr.bf16.mxu0 0
  %314 = vmatpush1.bf16.msra.mxu0 0
  %315 = vmatprep.subr.bf16.mxu0 0
  %316 = vmatpush1.bf16.msra.mxu0 0
  %317 = vmatprep.subr.bf16.mxu0 0
  %318 = vmatpush1.bf16.msra.mxu0 0
  %319 = vmatprep.subr.bf16.mxu0 0
  %320 = vmatpush1.bf16.msra.mxu0 0
  %321 = vmatprep.subr.bf16.mxu0 0
  %322 = vmatpush1.bf16.msra.mxu0 0
  %323 = vmatprep.subr.bf16.mxu0 0
  %324 = vmatpush1.bf16.msra.mxu0 0
  %325 = vmatprep.subr.bf16.mxu0 0
  %326 = vmatpush1.bf16.msra.mxu0 0
  %327 = vmatprep.subr.bf16.mxu0 0
  %328 = vmatpush1.bf16.msra.mxu0 0
  %329 = vmatprep.subr.bf16.mxu0 0
  %330 = vmatpush1.bf16.msra.mxu0 0
  %331 = vmatprep.mubr.bf16.mxu0 0
  %332 = vmatmul.mubr.bf16.gmra.mrb[0].mxu0 %v297
  %v333 = vpop.f32.mrb[0].mxu0
  %v334 = vadd.f32 0.0, %v333
  %v335 = vpop.f32.mrb[0].mxu0
  %v336 = vpop.f32.mrb[0].mxu0
  %v337 = vpop.f32.mrb[0].mxu0
  %338 = vdwg.mxu0
  %v339 = vadd.f32 %v276, %v334
  %v340 = vxor.u32 %v339, 2147483648
  %v341 = vmul.f32 %v340, 1.442695
  %v342 = vpow.pop %v341
  %v343 = vadd.f32 %v342, 1.0
  %v344 = vrcp.pop %v343
  %v345 = vmul.f32 1.0, %v344
  %v346 = vtanh.pop %v339
  %348 = vrot.lane.b32.xlu0 %v278, 32
  %v349 = vpop.permute.xlu0 %348
  %v351 = vmul.f32 %v345, %v349
  %353 = vrot.lane.b32.xlu0 %v346, 64
  %v354 = vpop.permute.xlu0 %353
  %v356 = vmul.f32 %v345, %v354
  %358 = vrot.lane.b32.xlu0 %v356, 32
  %v359 = vpop.permute.xlu0 %358
  %v361 = vadd.f32 %v351, %v359
  %v362 = vtanh.pop %v361
  %364 = vrot.lane.b32.xlu0 %v362, 64
  %v365 = vpop.permute.xlu0 %364
  %v367 = vmul.f32 %v345, %v365
  %369 = vrot.lane.b32.xlu0 %v367, 32
  %v370 = vpop.permute.xlu0 %369
  %372 = vst.msk [vmem:[#allocation2] sm:$0x3] %vm162, %v370
  %374 = vrot.lane.b32.xlu0 %v361, 96
  %v375 = vpop.permute.xlu0 %374
  %377 = vst.msk [vmem:[#allocation3] sm:$0x3] %vm162, %v375
  %s378 = scalar_lea.vmem %s4, 2
  %379 = vst.msk [vmem:[%s378] sm:$0x3] %vm162, %v370
  %s380 = scalar_lea.vmem %s44, 12
  %v381 = vld [vmem:[%s380] sm:$0x3]
  %v382 = vld [vmem:[#allocation4] sm:$0x3]
  %v383 = vld [vmem:[#allocation5] sm:$0x3]
  %v384 = vpack.c.bf16 %v382, %v382
  %v385 = vld [vmem:[%s3] sm:$0xf]
  %v386 = vld [vmem:[%s3 + $0x4] sm:$0xf]
  %v387 = vld [vmem:[%s3 + $0x8] sm:$0xf]
  %v388 = vld [vmem:[%s3 + $0xc] sm:$0xf]
  %v393 = vunpack.c.l.b16 %v385
  %v394 = vunpack.c.l.b16 %v386
  %v395 = vunpack.c.l.b16 %v387
  %v396 = vunpack.c.l.b16 %v388
  %v397 = vpack.c.b16 %v394, %v393
  %v398 = vpack.c.b16 %v396, %v395
  %v402 = vsel %vm85, %v384, 0
  %404 = vmatprep.subr.bf16.mxu0 0
  %405 = vmatpush1.bf16.msra.mxu0 %v397
  %406 = vmatprep.subr.bf16.mxu0 0
  %407 = vmatpush1.bf16.msra.mxu0 %v398
  %408 = vmatprep.subr.bf16.mxu0 0
  %409 = vmatpush1.bf16.msra.mxu0 0
  %410 = vmatprep.subr.bf16.mxu0 0
  %411 = vmatpush1.bf16.msra.mxu0 0
  %412 = vmatprep.subr.bf16.mxu0 0
  %413 = vmatpush1.bf16.msra.mxu0 0
  %414 = vmatprep.subr.bf16.mxu0 0
  %415 = vmatpush1.bf16.msra.mxu0 0
  %416 = vmatprep.subr.bf16.mxu0 0
  %417 = vmatpush1.bf16.msra.mxu0 0
  %418 = vmatprep.subr.bf16.mxu0 0
  %419 = vmatpush1.bf16.msra.mxu0 0
  %420 = vmatprep.subr.bf16.mxu0 0
  %421 = vmatpush1.bf16.msra.mxu0 0
  %422 = vmatprep.subr.bf16.mxu0 0
  %423 = vmatpush1.bf16.msra.mxu0 0
  %424 = vmatprep.subr.bf16.mxu0 0
  %425 = vmatpush1.bf16.msra.mxu0 0
  %426 = vmatprep.subr.bf16.mxu0 0
  %427 = vmatpush1.bf16.msra.mxu0 0
  %428 = vmatprep.subr.bf16.mxu0 0
  %429 = vmatpush1.bf16.msra.mxu0 0
  %430 = vmatprep.subr.bf16.mxu0 0
  %431 = vmatpush1.bf16.msra.mxu0 0
  %432 = vmatprep.subr.bf16.mxu0 0
  %433 = vmatpush1.bf16.msra.mxu0 0
  %434 = vmatprep.subr.bf16.mxu0 0
  %435 = vmatpush1.bf16.msra.mxu0 0
  %436 = vmatprep.mubr.bf16.mxu0 0
  %437 = vmatmul.mubr.bf16.gmra.mrb[0].mxu0 %v402
  %v438 = vpop.f32.mrb[0].mxu0
  %v439 = vadd.f32 0.0, %v438
  %v440 = vpop.f32.mrb[0].mxu0
  %v441 = vpop.f32.mrb[0].mxu0
  %v442 = vpop.f32.mrb[0].mxu0
  %443 = vdwg.mxu0
  %v444 = vadd.f32 %v381, %v439
  %v445 = vxor.u32 %v444, 2147483648
  %v446 = vmul.f32 %v445, 1.442695
  %v447 = vpow.pop %v446
  %v448 = vadd.f32 %v447, 1.0
  %v449 = vrcp.pop %v448
  %v450 = vmul.f32 1.0, %v449
  %v451 = vtanh.pop %v444
  %453 = vrot.lane.b32.xlu0 %v383, 32
  %v454 = vpop.permute.xlu0 %453
  %v456 = vmul.f32 %v450, %v454
  %458 = vrot.lane.b32.xlu0 %v451, 64
  %v459 = vpop.permute.xlu0 %458
  %v461 = vmul.f32 %v450, %v459
  %463 = vrot.lane.b32.xlu0 %v461, 32
  %v464 = vpop.permute.xlu0 %463
  %v466 = vadd.f32 %v456, %v464
  %v467 = vtanh.pop %v466
  %469 = vrot.lane.b32.xlu0 %v467, 64
  %v470 = vpop.permute.xlu0 %469
  %v472 = vmul.f32 %v450, %v470
  %474 = vrot.lane.b32.xlu0 %v472, 32
  %v475 = vpop.permute.xlu0 %474
  %477 = vst.msk [vmem:[#allocation4] sm:$0x3] %vm162, %v475
  %479 = vrot.lane.b32.xlu0 %v466, 96
  %v480 = vpop.permute.xlu0 %479
  %482 = vst.msk [vmem:[#allocation5] sm:$0x3] %vm162, %v480
  %s483 = scalar_lea.vmem %s52, 12
  %484 = vst.msk [vmem:[%s483] sm:$0x3] %vm162, %v475
  %s485 = scalar_lea.vmem %s0, 4
  %v486 = vld [vmem:[%s485] sm:$0x3]
  %v487 = vld [vmem:[#allocation2] sm:$0x3]
  %v488 = vld [vmem:[#allocation3] sm:$0x3]
  %v489 = vpack.c.bf16 %v487, %v487
  %v490 = vld [vmem:[%s2] sm:$0xf]
  %v491 = vld [vmem:[%s2 + $0x4] sm:$0xf]
  %v492 = vld [vmem:[%s2 + $0x8] sm:$0xf]
  %v493 = vld [vmem:[%s2 + $0xc] sm:$0xf]
  %v498 = vunpack.c.l.b16 %v490
  %v499 = vunpack.c.l.b16 %v491
  %v500 = vunpack.c.l.b16 %v492
  %v501 = vunpack.c.l.b16 %v493
  %v502 = vpack.c.b16 %v499, %v498
  %v503 = vpack.c.b16 %v501, %v500
  %v507 = vsel %vm85, %v489, 0
  %509 = vmatprep.subr.bf16.mxu0 0
  %510 = vmatpush1.bf16.msra.mxu0 %v502
  %511 = vmatprep.subr.bf16.mxu0 0
  %512 = vmatpush1.bf16.msra.mxu0 %v503
  %513 = vmatprep.subr.bf16.mxu0 0
  %514 = vmatpush1.bf16.msra.mxu0 0
  %515 = vmatprep.subr.bf16.mxu0 0
  %516 = vmatpush1.bf16.msra.mxu0 0
  %517 = vmatprep.subr.bf16.mxu0 0
  %518 = vmatpush1.bf16.msra.mxu0 0
  %519 = vmatprep.subr.bf16.mxu0 0
  %520 = vmatpush1.bf16.msra.mxu0 0
  %521 = vmatprep.subr.bf16.mxu0 0
  %522 = vmatpush1.bf16.msra.mxu0 0
  %523 = vmatprep.subr.bf16.mxu0 0
  %524 = vmatpush1.bf16.msra.mxu0 0
  %525 = vmatprep.subr.bf16.mxu0 0
  %526 = vmatpush1.bf16.msra.mxu0 0
  %527 = vmatprep.subr.bf16.mxu0 0
  %528 = vmatpush1.bf16.msra.mxu0 0
  %529 = vmatprep.subr.bf16.mxu0 0
  %530 = vmatpush1.bf16.msra.mxu0 0
  %531 = vmatprep.subr.bf16.mxu0 0
  %532 = vmatpush1.bf16.msra.mxu0 0
  %533 = vmatprep.subr.bf16.mxu0 0
  %534 = vmatpush1.bf16.msra.mxu0 0
  %535 = vmatprep.subr.bf16.mxu0 0
  %536 = vmatpush1.bf16.msra.mxu0 0
  %537 = vmatprep.subr.bf16.mxu0 0
  %538 = vmatpush1.bf16.msra.mxu0 0
  %539 = vmatprep.subr.bf16.mxu0 0
  %540 = vmatpush1.bf16.msra.mxu0 0
  %541 = vmatprep.mubr.bf16.mxu0 0
  %542 = vmatmul.mubr.bf16.gmra.mrb[0].mxu0 %v507
  %v543 = vpop.f32.mrb[0].mxu0
  %v544 = vadd.f32 0.0, %v543
  %v545 = vpop.f32.mrb[0].mxu0
  %v546 = vpop.f32.mrb[0].mxu0
  %v547 = vpop.f32.mrb[0].mxu0
  %548 = vdwg.mxu0
  %v549 = vadd.f32 %v486, %v544
  %v550 = vxor.u32 %v549, 2147483648
  %v551 = vmul.f32 %v550, 1.442695
  %v552 = vpow.pop %v551
  %v553 = vadd.f32 %v552, 1.0
  %v554 = vrcp.pop %v553
  %v555 = vmul.f32 1.0, %v554
  %v556 = vtanh.pop %v549
  %558 = vrot.lane.b32.xlu0 %v488, 32
  %v559 = vpop.permute.xlu0 %558
  %v561 = vmul.f32 %v555, %v559
  %563 = vrot.lane.b32.xlu0 %v556, 64
  %v564 = vpop.permute.xlu0 %563
  %v566 = vmul.f32 %v555, %v564
  %568 = vrot.lane.b32.xlu0 %v566, 32
  %v569 = vpop.permute.xlu0 %568
  %v571 = vadd.f32 %v561, %v569
  %v572 = vtanh.pop %v571
  %574 = vrot.lane.b32.xlu0 %v572, 64
  %v575 = vpop.permute.xlu0 %574
  %v577 = vmul.f32 %v555, %v575
  %579 = vrot.lane.b32.xlu0 %v577, 32
  %v580 = vpop.permute.xlu0 %579
  %582 = vst.msk [vmem:[#allocation2] sm:$0x3] %vm162, %v580
  %584 = vrot.lane.b32.xlu0 %v571, 96
  %v585 = vpop.permute.xlu0 %584
  %587 = vst.msk [vmem:[#allocation3] sm:$0x3] %vm162, %v585
  %s588 = scalar_lea.vmem %s4, 4
  %589 = vst.msk [vmem:[%s588] sm:$0x3] %vm162, %v580
  %s590 = scalar_lea.vmem %s44, 10
  %v591 = vld [vmem:[%s590] sm:$0x3]
  %v592 = vld [vmem:[#allocation4] sm:$0x3]
  %v593 = vld [vmem:[#allocation5] sm:$0x3]
  %v594 = vpack.c.bf16 %v592, %v592
  %v595 = vld [vmem:[%s3] sm:$0xf]
  %v596 = vld [vmem:[%s3 + $0x4] sm:$0xf]
  %v597 = vld [vmem:[%s3 + $0x8] sm:$0xf]
  %v598 = vld [vmem:[%s3 + $0xc] sm:$0xf]
  %v603 = vunpack.c.l.b16 %v595
  %v604 = vunpack.c.l.b16 %v596
  %v605 = vunpack.c.l.b16 %v597
  %v606 = vunpack.c.l.b16 %v598
  %v607 = vpack.c.b16 %v604, %v603
  %v608 = vpack.c.b16 %v606, %v605
  %v612 = vsel %vm85, %v594, 0
  %614 = vmatprep.subr.bf16.mxu0 0
  %615 = vmatpush1.bf16.msra.mxu0 %v607
  %616 = vmatprep.subr.bf16.mxu0 0
  %617 = vmatpush1.bf16.msra.mxu0 %v608
  %618 = vmatprep.subr.bf16.mxu0 0
  %619 = vmatpush1.bf16.msra.mxu0 0
  %620 = vmatprep.subr.bf16.mxu0 0
  %621 = vmatpush1.bf16.msra.mxu0 0
  %622 = vmatprep.subr.bf16.mxu0 0
  %623 = vmatpush1.bf16.msra.mxu0 0
  %624 = vmatprep.subr.bf16.mxu0 0
  %625 = vmatpush1.bf16.msra.mxu0 0
  %626 = vmatprep.subr.bf16.mxu0 0
  %627 = vmatpush1.bf16.msra.mxu0 0
  %628 = vmatprep.subr.bf16.mxu0 0
  %629 = vmatpush1.bf16.msra.mxu0 0
  %630 = vmatprep.subr.bf16.mxu0 0
  %631 = vmatpush1.bf16.msra.mxu0 0
  %632 = vmatprep.subr.bf16.mxu0 0
  %633 = vmatpush1.bf16.msra.mxu0 0
  %634 = vmatprep.subr.bf16.mxu0 0
  %635 = vmatpush1.bf16.msra.mxu0 0
  %636 = vmatprep.subr.bf16.mxu0 0
  %637 = vmatpush1.bf16.msra.mxu0 0
  %638 = vmatprep.subr.bf16.mxu0 0
  %639 = vmatpush1.bf16.msra.mxu0 0
  %640 = vmatprep.subr.bf16.mxu0 0
  %641 = vmatpush1.bf16.msra.mxu0 0
  %642 = vmatprep.subr.bf16.mxu0 0
  %643 = vmatpush1.bf16.msra.mxu0 0
  %644 = vmatprep.subr.bf16.mxu0 0
  %645 = vmatpush1.bf16.msra.mxu0 0
  %646 = vmatprep.mubr.bf16.mxu0 0
  %647 = vmatmul.mubr.bf16.gmra.mrb[0].mxu0 %v612
  %v648 = vpop.f32.mrb[0].mxu0
  %v649 = vadd.f32 0.0, %v648
  %v650 = vpop.f32.mrb[0].mxu0
  %v651 = vpop.f32.mrb[0].mxu0
  %v652 = vpop.f32.mrb[0].mxu0
  %653 = vdwg.mxu0
  %v654 = vadd.f32 %v591, %v649
  %v655 = vxor.u32 %v654, 2147483648
  %v656 = vmul.f32 %v655, 1.442695
  %v657 = vpow.pop %v656
  %v658 = vadd.f32 %v657, 1.0
  %v659 = vrcp.pop %v658
  %v660 = vmul.f32 1.0, %v659
  %v661 = vtanh.pop %v654
  %663 = vrot.lane.b32.xlu0 %v593, 32
  %v664 = vpop.permute.xlu0 %663
  %v666 = vmul.f32 %v660, %v664
  %668 = vrot.lane.b32.xlu0 %v661, 64
  %v669 = vpop.permute.xlu0 %668
  %v671 = vmul.f32 %v660, %v669
  %673 = vrot.lane.b32.xlu0 %v671, 32
  %v674 = vpop.permute.xlu0 %673
  %v676 = vadd.f32 %v666, %v674
  %v677 = vtanh.pop %v676
  %679 = vrot.lane.b32.xlu0 %v677, 64
  %v680 = vpop.permute.xlu0 %679
  %v682 = vmul.f32 %v660, %v680
  %684 = vrot.lane.b32.xlu0 %v682, 32
  %v685 = vpop.permute.xlu0 %684
  %687 = vst.msk [vmem:[#allocation4] sm:$0x3] %vm162, %v685
  %689 = vrot.lane.b32.xlu0 %v676, 96
  %v690 = vpop.permute.xlu0 %689
  %692 = vst.msk [vmem:[#allocation5] sm:$0x3] %vm162, %v690
  %s693 = scalar_lea.vmem %s52, 10
  %694 = vst.msk [vmem:[%s693] sm:$0x3] %vm162, %v685
  %s695 = scalar_lea.vmem %s0, 6
  %v696 = vld [vmem:[%s695] sm:$0x3]
  %v697 = vld [vmem:[#allocation2] sm:$0x3]
  %v698 = vld [vmem:[#allocation3] sm:$0x3]
  %v699 = vpack.c.bf16 %v697, %v697
  %v700 = vld [vmem:[%s2] sm:$0xf]
  %v701 = vld [vmem:[%s2 + $0x4] sm:$0xf]
  %v702 = vld [vmem:[%s2 + $0x8] sm:$0xf]
  %v703 = vld [vmem:[%s2 + $0xc] sm:$0xf]
  %v708 = vunpack.c.l.b16 %v700
  %v709 = vunpack.c.l.b16 %v701
  %v710 = vunpack.c.l.b16 %v702
  %v711 = vunpack.c.l.b16 %v703
  %v712 = vpack.c.b16 %v709, %v708
  %v713 = vpack.c.b16 %v711, %v710
  %v717 = vsel %vm85, %v699, 0
  %719 = vmatprep.subr.bf16.mxu0 0
  %720 = vmatpush1.bf16.msra.mxu0 %v712
  %721 = vmatprep.subr.bf16.mxu0 0
  %722 = vmatpush1.bf16.msra.mxu0 %v713
  %723 = vmatprep.subr.bf16.mxu0 0
  %724 = vmatpush1.bf16.msra.mxu0 0
  %725 = vmatprep.subr.bf16.mxu0 0
  %726 = vmatpush1.bf16.msra.mxu0 0
  %727 = vmatprep.subr.bf16.mxu0 0
  %728 = vmatpush1.bf16.msra.mxu0 0
  %729 = vmatprep.subr.bf16.mxu0 0
  %730 = vmatpush1.bf16.msra.mxu0 0
  %731 = vmatprep.subr.bf16.mxu0 0
  %732 = vmatpush1.bf16.msra.mxu0 0
  %733 = vmatprep.subr.bf16.mxu0 0
  %734 = vmatpush1.bf16.msra.mxu0 0
  %735 = vmatprep.subr.bf16.mxu0 0
  %736 = vmatpush1.bf16.msra.mxu0 0
  %737 = vmatprep.subr.bf16.mxu0 0
  %738 = vmatpush1.bf16.msra.mxu0 0
  %739 = vmatprep.subr.bf16.mxu0 0
  %740 = vmatpush1.bf16.msra.mxu0 0
  %741 = vmatprep.subr.bf16.mxu0 0
  %742 = vmatpush1.bf16.msra.mxu0 0
  %743 = vmatprep.subr.bf16.mxu0 0
  %744 = vmatpush1.bf16.msra.mxu0 0
  %745 = vmatprep.subr.bf16.mxu0 0
  %746 = vmatpush1.bf16.msra.mxu0 0
  %747 = vmatprep.subr.bf16.mxu0 0
  %748 = vmatpush1.bf16.msra.mxu0 0
  %749 = vmatprep.subr.bf16.mxu0 0
  %750 = vmatpush1.bf16.msra.mxu0 0
  %751 = vmatprep.mubr.bf16.mxu0 0
  %752 = vmatmul.mubr.bf16.gmra.mrb[0].mxu0 %v717
  %v753 = vpop.f32.mrb[0].mxu0
  %v754 = vadd.f32 0.0, %v753
  %v755 = vpop.f32.mrb[0].mxu0
  %v756 = vpop.f32.mrb[0].mxu0
  %v757 = vpop.f32.mrb[0].mxu0
  %758 = vdwg.mxu0
  %v759 = vadd.f32 %v696, %v754
  %v760 = vxor.u32 %v759, 2147483648
  %v761 = vmul.f32 %v760, 1.442695
  %v762 = vpow.pop %v761
  %v763 = vadd.f32 %v762, 1.0
  %v764 = vrcp.pop %v763
  %v765 = vmul.f32 1.0, %v764
  %v766 = vtanh.pop %v759
  %768 = vrot.lane.b32.xlu0 %v698, 32
  %v769 = vpop.permute.xlu0 %768
  %v771 = vmul.f32 %v765, %v769
  %773 = vrot.lane.b32.xlu0 %v766, 64
  %v774 = vpop.permute.xlu0 %773
  %v776 = vmul.f32 %v765, %v774
  %778 = vrot.lane.b32.xlu0 %v776, 32
  %v779 = vpop.permute.xlu0 %778
  %v781 = vadd.f32 %v771, %v779
  %v782 = vtanh.pop %v781
  %784 = vrot.lane.b32.xlu0 %v782, 64
  %v785 = vpop.permute.xlu0 %784
  %v787 = vmul.f32 %v765, %v785
  %789 = vrot.lane.b32.xlu0 %v787, 32
  %v790 = vpop.permute.xlu0 %789
  %792 = vst.msk [vmem:[#allocation2] sm:$0x3] %vm162, %v790
  %794 = vrot.lane.b32.xlu0 %v781, 96
  %v795 = vpop.permute.xlu0 %794
  %797 = vst.msk [vmem:[#allocation3] sm:$0x3] %vm162, %v795
  %s798 = scalar_lea.vmem %s4, 6
  %799 = vst.msk [vmem:[%s798] sm:$0x3] %vm162, %v790
  %s800 = scalar_lea.vmem %s44, 8
  %v801 = vld [vmem:[%s800] sm:$0x3]
  %v802 = vld [vmem:[#allocation4] sm:$0x3]
  %v803 = vld [vmem:[#allocation5] sm:$0x3]
  %v804 = vpack.c.bf16 %v802, %v802
  %v805 = vld [vmem:[%s3] sm:$0xf]
  %v806 = vld [vmem:[%s3 + $0x4] sm:$0xf]
  %v807 = vld [vmem:[%s3 + $0x8] sm:$0xf]
  %v808 = vld [vmem:[%s3 + $0xc] sm:$0xf]
  %v813 = vunpack.c.l.b16 %v805
  %v814 = vunpack.c.l.b16 %v806
  %v815 = vunpack.c.l.b16 %v807
  %v816 = vunpack.c.l.b16 %v808
  %v817 = vpack.c.b16 %v814, %v813
  %v818 = vpack.c.b16 %v816, %v815
  %v822 = vsel %vm85, %v804, 0
  %824 = vmatprep.subr.bf16.mxu0 0
  %825 = vmatpush1.bf16.msra.mxu0 %v817
  %826 = vmatprep.subr.bf16.mxu0 0
  %827 = vmatpush1.bf16.msra.mxu0 %v818
  %828 = vmatprep.subr.bf16.mxu0 0
  %829 = vmatpush1.bf16.msra.mxu0 0
  %830 = vmatprep.subr.bf16.mxu0 0
  %831 = vmatpush1.bf16.msra.mxu0 0
  %832 = vmatprep.subr.bf16.mxu0 0
  %833 = vmatpush1.bf16.msra.mxu0 0
  %834 = vmatprep.subr.bf16.mxu0 0
  %835 = vmatpush1.bf16.msra.mxu0 0
  %836 = vmatprep.subr.bf16.mxu0 0
  %837 = vmatpush1.bf16.msra.mxu0 0
  %838 = vmatprep.subr.bf16.mxu0 0
  %839 = vmatpush1.bf16.msra.mxu0 0
  %840 = vmatprep.subr.bf16.mxu0 0
  %841 = vmatpush1.bf16.msra.mxu0 0
  %842 = vmatprep.subr.bf16.mxu0 0
  %843 = vmatpush1.bf16.msra.mxu0 0
  %844 = vmatprep.subr.bf16.mxu0 0
  %845 = vmatpush1.bf16.msra.mxu0 0
  %846 = vmatprep.subr.bf16.mxu0 0
  %847 = vmatpush1.bf16.msra.mxu0 0
  %848 = vmatprep.subr.bf16.mxu0 0
  %849 = vmatpush1.bf16.msra.mxu0 0
  %850 = vmatprep.subr.bf16.mxu0 0
  %851 = vmatpush1.bf16.msra.mxu0 0
  %852 = vmatprep.subr.bf16.mxu0 0
  %853 = vmatpush1.bf16.msra.mxu0 0
  %854 = vmatprep.subr.bf16.mxu0 0
  %855 = vmatpush1.bf16.msra.mxu0 0
  %856 = vmatprep.mubr.bf16.mxu0 0
  %857 = vmatmul.mubr.bf16.gmra.mrb[0].mxu0 %v822
  %v858 = vpop.f32.mrb[0].mxu0
  %v859 = vadd.f32 0.0, %v858
  %v860 = vpop.f32.mrb[0].mxu0
  %v861 = vpop.f32.mrb[0].mxu0
  %v862 = vpop.f32.mrb[0].mxu0
  %863 = vdwg.mxu0
  %v864 = vadd.f32 %v801, %v859
  %v865 = vxor.u32 %v864, 2147483648
  %v866 = vmul.f32 %v865, 1.442695
  %v867 = vpow.pop %v866
  %v868 = vadd.f32 %v867, 1.0
  %v869 = vrcp.pop %v868
  %v870 = vmul.f32 1.0, %v869
  %v871 = vtanh.pop %v864
  %873 = vrot.lane.b32.xlu0 %v803, 32
  %v874 = vpop.permute.xlu0 %873
  %v876 = vmul.f32 %v870, %v874
  %878 = vrot.lane.b32.xlu0 %v871, 64
  %v879 = vpop.permute.xlu0 %878
  %v881 = vmul.f32 %v870, %v879
  %883 = vrot.lane.b32.xlu0 %v881, 32
  %v884 = vpop.permute.xlu0 %883
  %v886 = vadd.f32 %v876, %v884
  %v887 = vtanh.pop %v886
  %889 = vrot.lane.b32.xlu0 %v887, 64
  %v890 = vpop.permute.xlu0 %889
  %v892 = vmul.f32 %v870, %v890
  %894 = vrot.lane.b32.xlu0 %v892, 32
  %v895 = vpop.permute.xlu0 %894
  %897 = vst.msk [vmem:[#allocation4] sm:$0x3] %vm162, %v895
  %899 = vrot.lane.b32.xlu0 %v886, 96
  %v900 = vpop.permute.xlu0 %899
  %902 = vst.msk [vmem:[#allocation5] sm:$0x3] %vm162, %v900
  %s903 = scalar_lea.vmem %s52, 8
  %904 = vst.msk [vmem:[%s903] sm:$0x3] %vm162, %v895
  %s905 = scalar_lea.vmem %s0, 8
  %v906 = vld [vmem:[%s905] sm:$0x3]
  %v907 = vld [vmem:[#allocation2] sm:$0x3]
  %v908 = vld [vmem:[#allocation3] sm:$0x3]
  %v909 = vpack.c.bf16 %v907, %v907
  %v910 = vld [vmem:[%s2] sm:$0xf]
  %v911 = vld [vmem:[%s2 + $0x4] sm:$0xf]
  %v912 = vld [vmem:[%s2 + $0x8] sm:$0xf]
  %v913 = vld [vmem:[%s2 + $0xc] sm:$0xf]
  %v918 = vunpack.c.l.b16 %v910
  %v919 = vunpack.c.l.b16 %v911
  %v920 = vunpack.c.l.b16 %v912
  %v921 = vunpack.c.l.b16 %v913
  %v922 = vpack.c.b16 %v919, %v918
  %v923 = vpack.c.b16 %v921, %v920
  %v927 = vsel %vm85, %v909, 0
  %929 = vmatprep.subr.bf16.mxu0 0
  %930 = vmatpush1.bf16.msra.mxu0 %v922
  %931 = vmatprep.subr.bf16.mxu0 0
  %932 = vmatpush1.bf16.msra.mxu0 %v923
  %933 = vmatprep.subr.bf16.mxu0 0
  %934 = vmatpush1.bf16.msra.mxu0 0
  %935 = vmatprep.subr.bf16.mxu0 0
  %936 = vmatpush1.bf16.msra.mxu0 0
  %937 = vmatprep.subr.bf16.mxu0 0
  %938 = vmatpush1.bf16.msra.mxu0 0
  %939 = vmatprep.subr.bf16.mxu0 0
  %940 = vmatpush1.bf16.msra.mxu0 0
  %941 = vmatprep.subr.bf16.mxu0 0
  %942 = vmatpush1.bf16.msra.mxu0 0
  %943 = vmatprep.subr.bf16.mxu0 0
  %944 = vmatpush1.bf16.msra.mxu0 0
  %945 = vmatprep.subr.bf16.mxu0 0
  %946 = vmatpush1.bf16.msra.mxu0 0
  %947 = vmatprep.subr.bf16.mxu0 0
  %948 = vmatpush1.bf16.msra.mxu0 0
  %949 = vmatprep.subr.bf16.mxu0 0
  %950 = vmatpush1.bf16.msra.mxu0 0
  %951 = vmatprep.subr.bf16.mxu0 0
  %952 = vmatpush1.bf16.msra.mxu0 0
  %953 = vmatprep.subr.bf16.mxu0 0
  %954 = vmatpush1.bf16.msra.mxu0 0
  %955 = vmatprep.subr.bf16.mxu0 0
  %956 = vmatpush1.bf16.msra.mxu0 0
  %957 = vmatprep.subr.bf16.mxu0 0
  %958 = vmatpush1.bf16.msra.mxu0 0
  %959 = vmatprep.subr.bf16.mxu0 0
  %960 = vmatpush1.bf16.msra.mxu0 0
  %961 = vmatprep.mubr.bf16.mxu0 0
  %962 = vmatmul.mubr.bf16.gmra.mrb[0].mxu0 %v927
  %v963 = vpop.f32.mrb[0].mxu0
  %v964 = vadd.f32 0.0, %v963
  %v965 = vpop.f32.mrb[0].mxu0
  %v966 = vpop.f32.mrb[0].mxu0
  %v967 = vpop.f32.mrb[0].mxu0
  %968 = vdwg.mxu0
  %v969 = vadd.f32 %v906, %v964
  %v970 = vxor.u32 %v969, 2147483648
  %v971 = vmul.f32 %v970, 1.442695
  %v972 = vpow.pop %v971
  %v973 = vadd.f32 %v972, 1.0
  %v974 = vrcp.pop %v973
  %v975 = vmul.f32 1.0, %v974
  %v976 = vtanh.pop %v969
  %978 = vrot.lane.b32.xlu0 %v908, 32
  %v979 = vpop.permute.xlu0 %978
  %v981 = vmul.f32 %v975, %v979
  %983 = vrot.lane.b32.xlu0 %v976, 64
  %v984 = vpop.permute.xlu0 %983
  %v986 = vmul.f32 %v975, %v984
  %988 = vrot.lane.b32.xlu0 %v986, 32
  %v989 = vpop.permute.xlu0 %988
  %v991 = vadd.f32 %v981, %v989
  %v992 = vtanh.pop %v991
  %994 = vrot.lane.b32.xlu0 %v992, 64
  %v995 = vpop.permute.xlu0 %994
  %v997 = vmul.f32 %v975, %v995
  %999 = vrot.lane.b32.xlu0 %v997, 32
  %v1000 = vpop.permute.xlu0 %999
  %1002 = vst.msk [vmem:[#allocation2] sm:$0x3] %vm162, %v1000
  %1004 = vrot.lane.b32.xlu0 %v991, 96
  %v1005 = vpop.permute.xlu0 %1004
  %1007 = vst.msk [vmem:[#allocation3] sm:$0x3] %vm162, %v1005
  %s1008 = scalar_lea.vmem %s4, 8
  %1009 = vst.msk [vmem:[%s1008] sm:$0x3] %vm162, %v1000
  %s1010 = scalar_lea.vmem %s44, 6
  %v1011 = vld [vmem:[%s1010] sm:$0x3]
  %v1012 = vld [vmem:[#allocation4] sm:$0x3]
  %v1013 = vld [vmem:[#allocation5] sm:$0x3]
  %v1014 = vpack.c.bf16 %v1012, %v1012
  %v1015 = vld [vmem:[%s3] sm:$0xf]
  %v1016 = vld [vmem:[%s3 + $0x4] sm:$0xf]
  %v1017 = vld [vmem:[%s3 + $0x8] sm:$0xf]
  %v1018 = vld [vmem:[%s3 + $0xc] sm:$0xf]
  %v1023 = vunpack.c.l.b16 %v1015
  %v1024 = vunpack.c.l.b16 %v1016
  %v1025 = vunpack.c.l.b16 %v1017
  %v1026 = vunpack.c.l.b16 %v1018
  %v1027 = vpack.c.b16 %v1024, %v1023
  %v1028 = vpack.c.b16 %v1026, %v1025
  %v1032 = vsel %vm85, %v1014, 0
  %1034 = vmatprep.subr.bf16.mxu0 0
  %1035 = vmatpush1.bf16.msra.mxu0 %v1027
  %1036 = vmatprep.subr.bf16.mxu0 0
  %1037 = vmatpush1.bf16.msra.mxu0 %v1028
  %1038 = vmatprep.subr.bf16.mxu0 0
  %1039 = vmatpush1.bf16.msra.mxu0 0
  %1040 = vmatprep.subr.bf16.mxu0 0
  %1041 = vmatpush1.bf16.msra.mxu0 0
  %1042 = vmatprep.subr.bf16.mxu0 0
  %1043 = vmatpush1.bf16.msra.mxu0 0
  %1044 = vmatprep.subr.bf16.mxu0 0
  %1045 = vmatpush1.bf16.msra.mxu0 0
  %1046 = vmatprep.subr.bf16.mxu0 0
  %1047 = vmatpush1.bf16.msra.mxu0 0
  %1048 = vmatprep.subr.bf16.mxu0 0
  %1049 = vmatpush1.bf16.msra.mxu0 0
  %1050 = vmatprep.subr.bf16.mxu0 0
  %1051 = vmatpush1.bf16.msra.mxu0 0
  %1052 = vmatprep.subr.bf16.mxu0 0
  %1053 = vmatpush1.bf16.msra.mxu0 0
  %1054 = vmatprep.subr.bf16.mxu0 0
  %1055 = vmatpush1.bf16.msra.mxu0 0
  %1056 = vmatprep.subr.bf16.mxu0 0
  %1057 = vmatpush1.bf16.msra.mxu0 0
  %1058 = vmatprep.subr.bf16.mxu0 0
  %1059 = vmatpush1.bf16.msra.mxu0 0
  %1060 = vmatprep.subr.bf16.mxu0 0
  %1061 = vmatpush1.bf16.msra.mxu0 0
  %1062 = vmatprep.subr.bf16.mxu0 0
  %1063 = vmatpush1.bf16.msra.mxu0 0
  %1064 = vmatprep.subr.bf16.mxu0 0
  %1065 = vmatpush1.bf16.msra.mxu0 0
  %1066 = vmatprep.mubr.bf16.mxu0 0
  %1067 = vmatmul.mubr.bf16.gmra.mrb[0].mxu0 %v1032
  %v1068 = vpop.f32.mrb[0].mxu0
  %v1069 = vadd.f32 0.0, %v1068
  %v1070 = vpop.f32.mrb[0].mxu0
  %v1071 = vpop.f32.mrb[0].mxu0
  %v1072 = vpop.f32.mrb[0].mxu0
  %1073 = vdwg.mxu0
  %v1074 = vadd.f32 %v1011, %v1069
  %v1075 = vxor.u32 %v1074, 2147483648
  %v1076 = vmul.f32 %v1075, 1.442695
  %v1077 = vpow.pop %v1076
  %v1078 = vadd.f32 %v1077, 1.0
  %v1079 = vrcp.pop %v1078
  %v1080 = vmul.f32 1.0, %v1079
  %v1081 = vtanh.pop %v1074
  %1083 = vrot.lane.b32.xlu0 %v1013, 32
  %v1084 = vpop.permute.xlu0 %1083
  %v1086 = vmul.f32 %v1080, %v1084
  %1088 = vrot.lane.b32.xlu0 %v1081, 64
  %v1089 = vpop.permute.xlu0 %1088
  %v1091 = vmul.f32 %v1080, %v1089
  %1093 = vrot.lane.b32.xlu0 %v1091, 32
  %v1094 = vpop.permute.xlu0 %1093
  %v1096 = vadd.f32 %v1086, %v1094
  %v1097 = vtanh.pop %v1096
  %1099 = vrot.lane.b32.xlu0 %v1097, 64
  %v1100 = vpop.permute.xlu0 %1099
  %v1102 = vmul.f32 %v1080, %v1100
  %1104 = vrot.lane.b32.xlu0 %v1102, 32
  %v1105 = vpop.permute.xlu0 %1104
  %1107 = vst.msk [vmem:[#allocation4] sm:$0x3] %vm162, %v1105
  %1109 = vrot.lane.b32.xlu0 %v1096, 96
  %v1110 = vpop.permute.xlu0 %1109
  %1112 = vst.msk [vmem:[#allocation5] sm:$0x3] %vm162, %v1110
  %s1113 = scalar_lea.vmem %s52, 6
  %1114 = vst.msk [vmem:[%s1113] sm:$0x3] %vm162, %v1105
  %s1115 = scalar_lea.vmem %s0, 10
  %v1116 = vld [vmem:[%s1115] sm:$0x3]
  %v1117 = vld [vmem:[#allocation2] sm:$0x3]
  %v1118 = vld [vmem:[#allocation3] sm:$0x3]
  %v1119 = vpack.c.bf16 %v1117, %v1117
  %v1120 = vld [vmem:[%s2] sm:$0xf]
  %v1121 = vld [vmem:[%s2 + $0x4] sm:$0xf]
  %v1122 = vld [vmem:[%s2 + $0x8] sm:$0xf]
  %v1123 = vld [vmem:[%s2 + $0xc] sm:$0xf]
  %v1128 = vunpack.c.l.b16 %v1120
  %v1129 = vunpack.c.l.b16 %v1121
  %v1130 = vunpack.c.l.b16 %v1122
  %v1131 = vunpack.c.l.b16 %v1123
  %v1132 = vpack.c.b16 %v1129, %v1128
  %v1133 = vpack.c.b16 %v1131, %v1130
  %v1137 = vsel %vm85, %v1119, 0
  %1139 = vmatprep.subr.bf16.mxu0 0
  %1140 = vmatpush1.bf16.msra.mxu0 %v1132
  %1141 = vmatprep.subr.bf16.mxu0 0
  %1142 = vmatpush1.bf16.msra.mxu0 %v1133
  %1143 = vmatprep.subr.bf16.mxu0 0
  %1144 = vmatpush1.bf16.msra.mxu0 0
  %1145 = vmatprep.subr.bf16.mxu0 0
  %1146 = vmatpush1.bf16.msra.mxu0 0
  %1147 = vmatprep.subr.bf16.mxu0 0
  %1148 = vmatpush1.bf16.msra.mxu0 0
  %1149 = vmatprep.subr.bf16.mxu0 0
  %1150 = vmatpush1.bf16.msra.mxu0 0
  %1151 = vmatprep.subr.bf16.mxu0 0
  %1152 = vmatpush1.bf16.msra.mxu0 0
  %1153 = vmatprep.subr.bf16.mxu0 0
  %1154 = vmatpush1.bf16.msra.mxu0 0
  %1155 = vmatprep.subr.bf16.mxu0 0
  %1156 = vmatpush1.bf16.msra.mxu0 0
  %1157 = vmatprep.subr.bf16.mxu0 0
  %1158 = vmatpush1.bf16.msra.mxu0 0
  %1159 = vmatprep.subr.bf16.mxu0 0
  %1160 = vmatpush1.bf16.msra.mxu0 0
  %1161 = vmatprep.subr.bf16.mxu0 0
  %1162 = vmatpush1.bf16.msra.mxu0 0
  %1163 = vmatprep.subr.bf16.mxu0 0
  %1164 = vmatpush1.bf16.msra.mxu0 0
  %1165 = vmatprep.subr.bf16.mxu0 0
  %1166 = vmatpush1.bf16.msra.mxu0 0
  %1167 = vmatprep.subr.bf16.mxu0 0
  %1168 = vmatpush1.bf16.msra.mxu0 0
  %1169 = vmatprep.subr.bf16.mxu0 0
  %1170 = vmatpush1.bf16.msra.mxu0 0
  %1171 = vmatprep.mubr.bf16.mxu0 0
  %1172 = vmatmul.mubr.bf16.gmra.mrb[0].mxu0 %v1137
  %v1173 = vpop.f32.mrb[0].mxu0
  %v1174 = vadd.f32 0.0, %v1173
  %v1175 = vpop.f32.mrb[0].mxu0
  %v1176 = vpop.f32.mrb[0].mxu0
  %v1177 = vpop.f32.mrb[0].mxu0
  %1178 = vdwg.mxu0
  %v1179 = vadd.f32 %v1116, %v1174
  %v1180 = vxor.u32 %v1179, 2147483648
  %v1181 = vmul.f32 %v1180, 1.442695
  %v1182 = vpow.pop %v1181
  %v1183 = vadd.f32 %v1182, 1.0
  %v1184 = vrcp.pop %v1183
  %v1185 = vmul.f32 1.0, %v1184
  %v1186 = vtanh.pop %v1179
  %1188 = vrot.lane.b32.xlu0 %v1118, 32
  %v1189 = vpop.permute.xlu0 %1188
  %v1191 = vmul.f32 %v1185, %v1189
  %1193 = vrot.lane.b32.xlu0 %v1186, 64
  %v1194 = vpop.permute.xlu0 %1193
  %v1196 = vmul.f32 %v1185, %v1194
  %1198 = vrot.lane.b32.xlu0 %v1196, 32
  %v1199 = vpop.permute.xlu0 %1198
  %v1201 = vadd.f32 %v1191, %v1199
  %v1202 = vtanh.pop %v1201
  %1204 = vrot.lane.b32.xlu0 %v1202, 64
  %v1205 = vpop.permute.xlu0 %1204
  %v1207 = vmul.f32 %v1185, %v1205
  %1209 = vrot.lane.b32.xlu0 %v1207, 32
  %v1210 = vpop.permute.xlu0 %1209
  %1212 = vst.msk [vmem:[#allocation2] sm:$0x3] %vm162, %v1210
  %1214 = vrot.lane.b32.xlu0 %v1201, 96
  %v1215 = vpop.permute.xlu0 %1214
  %1217 = vst.msk [vmem:[#allocation3] sm:$0x3] %vm162, %v1215
  %s1218 = scalar_lea.vmem %s4, 10
  %1219 = vst.msk [vmem:[%s1218] sm:$0x3] %vm162, %v1210
  %s1220 = scalar_lea.vmem %s44, 4
  %v1221 = vld [vmem:[%s1220] sm:$0x3]
  %v1222 = vld [vmem:[#allocation4] sm:$0x3]
  %v1223 = vld [vmem:[#allocation5] sm:$0x3]
  %v1224 = vpack.c.bf16 %v1222, %v1222
  %v1225 = vld [vmem:[%s3] sm:$0xf]
  %v1226 = vld [vmem:[%s3 + $0x4] sm:$0xf]
  %v1227 = vld [vmem:[%s3 + $0x8] sm:$0xf]
  %v1228 = vld [vmem:[%s3 + $0xc] sm:$0xf]
  %v1233 = vunpack.c.l.b16 %v1225
  %v1234 = vunpack.c.l.b16 %v1226
  %v1235 = vunpack.c.l.b16 %v1227
  %v1236 = vunpack.c.l.b16 %v1228
  %v1237 = vpack.c.b16 %v1234, %v1233
  %v1238 = vpack.c.b16 %v1236, %v1235
  %v1242 = vsel %vm85, %v1224, 0
  %1244 = vmatprep.subr.bf16.mxu0 0
  %1245 = vmatpush1.bf16.msra.mxu0 %v1237
  %1246 = vmatprep.subr.bf16.mxu0 0
  %1247 = vmatpush1.bf16.msra.mxu0 %v1238
  %1248 = vmatprep.subr.bf16.mxu0 0
  %1249 = vmatpush1.bf16.msra.mxu0 0
  %1250 = vmatprep.subr.bf16.mxu0 0
  %1251 = vmatpush1.bf16.msra.mxu0 0
  %1252 = vmatprep.subr.bf16.mxu0 0
  %1253 = vmatpush1.bf16.msra.mxu0 0
  %1254 = vmatprep.subr.bf16.mxu0 0
  %1255 = vmatpush1.bf16.msra.mxu0 0
  %1256 = vmatprep.subr.bf16.mxu0 0
  %1257 = vmatpush1.bf16.msra.mxu0 0
  %1258 = vmatprep.subr.bf16.mxu0 0
  %1259 = vmatpush1.bf16.msra.mxu0 0
  %1260 = vmatprep.subr.bf16.mxu0 0
  %1261 = vmatpush1.bf16.msra.mxu0 0
  %1262 = vmatprep.subr.bf16.mxu0 0
  %1263 = vmatpush1.bf16.msra.mxu0 0
  %1264 = vmatprep.subr.bf16.mxu0 0
  %1265 = vmatpush1.bf16.msra.mxu0 0
  %1266 = vmatprep.subr.bf16.mxu0 0
  %1267 = vmatpush1.bf16.msra.mxu0 0
  %1268 = vmatprep.subr.bf16.mxu0 0
  %1269 = vmatpush1.bf16.msra.mxu0 0
  %1270 = vmatprep.subr.bf16.mxu0 0
  %1271 = vmatpush1.bf16.msra.mxu0 0
  %1272 = vmatprep.subr.bf16.mxu0 0
  %1273 = vmatpush1.bf16.msra.mxu0 0
  %1274 = vmatprep.subr.bf16.mxu0 0
  %1275 = vmatpush1.bf16.msra.mxu0 0
  %1276 = vmatprep.mubr.bf16.mxu0 0
  %1277 = vmatmul.mubr.bf16.gmra.mrb[0].mxu0 %v1242
  %v1278 = vpop.f32.mrb[0].mxu0
  %v1279 = vadd.f32 0.0, %v1278
  %v1280 = vpop.f32.mrb[0].mxu0
  %v1281 = vpop.f32.mrb[0].mxu0
  %v1282 = vpop.f32.mrb[0].mxu0
  %1283 = vdwg.mxu0
  %v1284 = vadd.f32 %v1221, %v1279
  %v1285 = vxor.u32 %v1284, 2147483648
  %v1286 = vmul.f32 %v1285, 1.442695
  %v1287 = vpow.pop %v1286
  %v1288 = vadd.f32 %v1287, 1.0
  %v1289 = vrcp.pop %v1288
  %v1290 = vmul.f32 1.0, %v1289
  %v1291 = vtanh.pop %v1284
  %1293 = vrot.lane.b32.xlu0 %v1223, 32
  %v1294 = vpop.permute.xlu0 %1293
  %v1296 = vmul.f32 %v1290, %v1294
  %1298 = vrot.lane.b32.xlu0 %v1291, 64
  %v1299 = vpop.permute.xlu0 %1298
  %v1301 = vmul.f32 %v1290, %v1299
  %1303 = vrot.lane.b32.xlu0 %v1301, 32
  %v1304 = vpop.permute.xlu0 %1303
  %v1306 = vadd.f32 %v1296, %v1304
  %v1307 = vtanh.pop %v1306
  %1309 = vrot.lane.b32.xlu0 %v1307, 64
  %v1310 = vpop.permute.xlu0 %1309
  %v1312 = vmul.f32 %v1290, %v1310
  %1314 = vrot.lane.b32.xlu0 %v1312, 32
  %v1315 = vpop.permute.xlu0 %1314
  %1317 = vst.msk [vmem:[#allocation4] sm:$0x3] %vm162, %v1315
  %1319 = vrot.lane.b32.xlu0 %v1306, 96
  %v1320 = vpop.permute.xlu0 %1319
  %1322 = vst.msk [vmem:[#allocation5] sm:$0x3] %vm162, %v1320
  %s1323 = scalar_lea.vmem %s52, 4
  %1324 = vst.msk [vmem:[%s1323] sm:$0x3] %vm162, %v1315
  %s1325 = scalar_lea.vmem %s0, 12
  %v1326 = vld [vmem:[%s1325] sm:$0x3]
  %v1327 = vld [vmem:[#allocation2] sm:$0x3]
  %v1328 = vld [vmem:[#allocation3] sm:$0x3]
  %v1329 = vpack.c.bf16 %v1327, %v1327
  %v1330 = vld [vmem:[%s2] sm:$0xf]
  %v1331 = vld [vmem:[%s2 + $0x4] sm:$0xf]
  %v1332 = vld [vmem:[%s2 + $0x8] sm:$0xf]
  %v1333 = vld [vmem:[%s2 + $0xc] sm:$0xf]
  %v1338 = vunpack.c.l.b16 %v1330
  %v1339 = vunpack.c.l.b16 %v1331
  %v1340 = vunpack.c.l.b16 %v1332
  %v1341 = vunpack.c.l.b16 %v1333
  %v1342 = vpack.c.b16 %v1339, %v1338
  %v1343 = vpack.c.b16 %v1341, %v1340
  %v1347 = vsel %vm85, %v1329, 0
  %1349 = vmatprep.subr.bf16.mxu0 0
  %1350 = vmatpush1.bf16.msra.mxu0 %v1342
  %1351 = vmatprep.subr.bf16.mxu0 0
  %1352 = vmatpush1.bf16.msra.mxu0 %v1343
  %1353 = vmatprep.subr.bf16.mxu0 0
  %1354 = vmatpush1.bf16.msra.mxu0 0
  %1355 = vmatprep.subr.bf16.mxu0 0
  %1356 = vmatpush1.bf16.msra.mxu0 0
  %1357 = vmatprep.subr.bf16.mxu0 0
  %1358 = vmatpush1.bf16.msra.mxu0 0
  %1359 = vmatprep.subr.bf16.mxu0 0
  %1360 = vmatpush1.bf16.msra.mxu0 0
  %1361 = vmatprep.subr.bf16.mxu0 0
  %1362 = vmatpush1.bf16.msra.mxu0 0
  %1363 = vmatprep.subr.bf16.mxu0 0
  %1364 = vmatpush1.bf16.msra.mxu0 0
  %1365 = vmatprep.subr.bf16.mxu0 0
  %1366 = vmatpush1.bf16.msra.mxu0 0
  %1367 = vmatprep.subr.bf16.mxu0 0
  %1368 = vmatpush1.bf16.msra.mxu0 0
  %1369 = vmatprep.subr.bf16.mxu0 0
  %1370 = vmatpush1.bf16.msra.mxu0 0
  %1371 = vmatprep.subr.bf16.mxu0 0
  %1372 = vmatpush1.bf16.msra.mxu0 0
  %1373 = vmatprep.subr.bf16.mxu0 0
  %1374 = vmatpush1.bf16.msra.mxu0 0
  %1375 = vmatprep.subr.bf16.mxu0 0
  %1376 = vmatpush1.bf16.msra.mxu0 0
  %1377 = vmatprep.subr.bf16.mxu0 0
  %1378 = vmatpush1.bf16.msra.mxu0 0
  %1379 = vmatprep.subr.bf16.mxu0 0
  %1380 = vmatpush1.bf16.msra.mxu0 0
  %1381 = vmatprep.mubr.bf16.mxu0 0
  %1382 = vmatmul.mubr.bf16.gmra.mrb[0].mxu0 %v1347
  %v1383 = vpop.f32.mrb[0].mxu0
  %v1384 = vadd.f32 0.0, %v1383
  %v1385 = vpop.f32.mrb[0].mxu0
  %v1386 = vpop.f32.mrb[0].mxu0
  %v1387 = vpop.f32.mrb[0].mxu0
  %1388 = vdwg.mxu0
  %v1389 = vadd.f32 %v1326, %v1384
  %v1390 = vxor.u32 %v1389, 2147483648
  %v1391 = vmul.f32 %v1390, 1.442695
  %v1392 = vpow.pop %v1391
  %v1393 = vadd.f32 %v1392, 1.0
  %v1394 = vrcp.pop %v1393
  %v1395 = vmul.f32 1.0, %v1394
  %v1396 = vtanh.pop %v1389
  %1398 = vrot.lane.b32.xlu0 %v1328, 32
  %v1399 = vpop.permute.xlu0 %1398
  %v1401 = vmul.f32 %v1395, %v1399
  %1403 = vrot.lane.b32.xlu0 %v1396, 64
  %v1404 = vpop.permute.xlu0 %1403
  %v1406 = vmul.f32 %v1395, %v1404
  %1408 = vrot.lane.b32.xlu0 %v1406, 32
  %v1409 = vpop.permute.xlu0 %1408
  %v1411 = vadd.f32 %v1401, %v1409
  %v1412 = vtanh.pop %v1411
  %1414 = vrot.lane.b32.xlu0 %v1412, 64
  %v1415 = vpop.permute.xlu0 %1414
  %v1417 = vmul.f32 %v1395, %v1415
  %1419 = vrot.lane.b32.xlu0 %v1417, 32
  %v1420 = vpop.permute.xlu0 %1419
  %1422 = vst.msk [vmem:[#allocation2] sm:$0x3] %vm162, %v1420
  %1424 = vrot.lane.b32.xlu0 %v1411, 96
  %v1425 = vpop.permute.xlu0 %1424
  %1427 = vst.msk [vmem:[#allocation3] sm:$0x3] %vm162, %v1425
  %s1428 = scalar_lea.vmem %s4, 12
  %1429 = vst.msk [vmem:[%s1428] sm:$0x3] %vm162, %v1420
  %s1430 = scalar_lea.vmem %s44, 2
  %v1431 = vld [vmem:[%s1430] sm:$0x3]
  %v1432 = vld [vmem:[#allocation4] sm:$0x3]
  %v1433 = vld [vmem:[#allocation5] sm:$0x3]
  %v1434 = vpack.c.bf16 %v1432, %v1432
  %v1435 = vld [vmem:[%s3] sm:$0xf]
  %v1436 = vld [vmem:[%s3 + $0x4] sm:$0xf]
  %v1437 = vld [vmem:[%s3 + $0x8] sm:$0xf]
  %v1438 = vld [vmem:[%s3 + $0xc] sm:$0xf]
  %v1443 = vunpack.c.l.b16 %v1435
  %v1444 = vunpack.c.l.b16 %v1436
  %v1445 = vunpack.c.l.b16 %v1437
  %v1446 = vunpack.c.l.b16 %v1438
  %v1447 = vpack.c.b16 %v1444, %v1443
  %v1448 = vpack.c.b16 %v1446, %v1445
  %v1452 = vsel %vm85, %v1434, 0
  %1454 = vmatprep.subr.bf16.mxu0 0
  %1455 = vmatpush1.bf16.msra.mxu0 %v1447
  %1456 = vmatprep.subr.bf16.mxu0 0
  %1457 = vmatpush1.bf16.msra.mxu0 %v1448
  %1458 = vmatprep.subr.bf16.mxu0 0
  %1459 = vmatpush1.bf16.msra.mxu0 0
  %1460 = vmatprep.subr.bf16.mxu0 0
  %1461 = vmatpush1.bf16.msra.mxu0 0
  %1462 = vmatprep.subr.bf16.mxu0 0
  %1463 = vmatpush1.bf16.msra.mxu0 0
  %1464 = vmatprep.subr.bf16.mxu0 0
  %1465 = vmatpush1.bf16.msra.mxu0 0
  %1466 = vmatprep.subr.bf16.mxu0 0
  %1467 = vmatpush1.bf16.msra.mxu0 0
  %1468 = vmatprep.subr.bf16.mxu0 0
  %1469 = vmatpush1.bf16.msra.mxu0 0
  %1470 = vmatprep.subr.bf16.mxu0 0
  %1471 = vmatpush1.bf16.msra.mxu0 0
  %1472 = vmatprep.subr.bf16.mxu0 0
  %1473 = vmatpush1.bf16.msra.mxu0 0
  %1474 = vmatprep.subr.bf16.mxu0 0
  %1475 = vmatpush1.bf16.msra.mxu0 0
  %1476 = vmatprep.subr.bf16.mxu0 0
  %1477 = vmatpush1.bf16.msra.mxu0 0
  %1478 = vmatprep.subr.bf16.mxu0 0
  %1479 = vmatpush1.bf16.msra.mxu0 0
  %1480 = vmatprep.subr.bf16.mxu0 0
  %1481 = vmatpush1.bf16.msra.mxu0 0
  %1482 = vmatprep.subr.bf16.mxu0 0
  %1483 = vmatpush1.bf16.msra.mxu0 0
  %1484 = vmatprep.subr.bf16.mxu0 0
  %1485 = vmatpush1.bf16.msra.mxu0 0
  %1486 = vmatprep.mubr.bf16.mxu0 0
  %1487 = vmatmul.mubr.bf16.gmra.mrb[0].mxu0 %v1452
  %v1488 = vpop.f32.mrb[0].mxu0
  %v1489 = vadd.f32 0.0, %v1488
  %v1490 = vpop.f32.mrb[0].mxu0
  %v1491 = vpop.f32.mrb[0].mxu0
  %v1492 = vpop.f32.mrb[0].mxu0
  %1493 = vdwg.mxu0
  %v1494 = vadd.f32 %v1431, %v1489
  %v1495 = vxor.u32 %v1494, 2147483648
  %v1496 = vmul.f32 %v1495, 1.442695
  %v1497 = vpow.pop %v1496
  %v1498 = vadd.f32 %v1497, 1.0
  %v1499 = vrcp.pop %v1498
  %v1500 = vmul.f32 1.0, %v1499
  %v1501 = vtanh.pop %v1494
  %1503 = vrot.lane.b32.xlu0 %v1433, 32
  %v1504 = vpop.permute.xlu0 %1503
  %v1506 = vmul.f32 %v1500, %v1504
  %1508 = vrot.lane.b32.xlu0 %v1501, 64
  %v1509 = vpop.permute.xlu0 %1508
  %v1511 = vmul.f32 %v1500, %v1509
  %1513 = vrot.lane.b32.xlu0 %v1511, 32
  %v1514 = vpop.permute.xlu0 %1513
  %v1516 = vadd.f32 %v1506, %v1514
  %v1517 = vtanh.pop %v1516
  %1519 = vrot.lane.b32.xlu0 %v1517, 64
  %v1520 = vpop.permute.xlu0 %1519
  %v1522 = vmul.f32 %v1500, %v1520
  %1524 = vrot.lane.b32.xlu0 %v1522, 32
  %v1525 = vpop.permute.xlu0 %1524
  %1527 = vst.msk [vmem:[#allocation4] sm:$0x3] %vm162, %v1525
  %1529 = vrot.lane.b32.xlu0 %v1516, 96
  %v1530 = vpop.permute.xlu0 %1529
  %1532 = vst.msk [vmem:[#allocation5] sm:$0x3] %vm162, %v1530
  %s1533 = scalar_lea.vmem %s52, 2
  %1534 = vst.msk [vmem:[%s1533] sm:$0x3] %vm162, %v1525
  %s1535 = scalar_lea.vmem %s0, 14
  %v1536 = vld [vmem:[%s1535] sm:$0x3]
  %v1537 = vld [vmem:[#allocation2] sm:$0x3]
  %v1538 = vld [vmem:[#allocation3] sm:$0x3]
  %v1539 = vpack.c.bf16 %v1537, %v1537
  %v1540 = vld [vmem:[%s2] sm:$0xf]
  %v1541 = vld [vmem:[%s2 + $0x4] sm:$0xf]
  %v1542 = vld [vmem:[%s2 + $0x8] sm:$0xf]
  %v1543 = vld [vmem:[%s2 + $0xc] sm:$0xf]
  %v1548 = vunpack.c.l.b16 %v1540
  %v1549 = vunpack.c.l.b16 %v1541
  %v1550 = vunpack.c.l.b16 %v1542
  %v1551 = vunpack.c.l.b16 %v1543
  %v1552 = vpack.c.b16 %v1549, %v1548
  %v1553 = vpack.c.b16 %v1551, %v1550
  %v1557 = vsel %vm85, %v1539, 0
  %1559 = vmatprep.subr.bf16.mxu0 0
  %1560 = vmatpush1.bf16.msra.mxu0 %v1552
  %1561 = vmatprep.subr.bf16.mxu0 0
  %1562 = vmatpush1.bf16.msra.mxu0 %v1553
  %1563 = vmatprep.subr.bf16.mxu0 0
  %1564 = vmatpush1.bf16.msra.mxu0 0
  %1565 = vmatprep.subr.bf16.mxu0 0
  %1566 = vmatpush1.bf16.msra.mxu0 0
  %1567 = vmatprep.subr.bf16.mxu0 0
  %1568 = vmatpush1.bf16.msra.mxu0 0
  %1569 = vmatprep.subr.bf16.mxu0 0
  %1570 = vmatpush1.bf16.msra.mxu0 0
  %1571 = vmatprep.subr.bf16.mxu0 0
  %1572 = vmatpush1.bf16.msra.mxu0 0
  %1573 = vmatprep.subr.bf16.mxu0 0
  %1574 = vmatpush1.bf16.msra.mxu0 0
  %1575 = vmatprep.subr.bf16.mxu0 0
  %1576 = vmatpush1.bf16.msra.mxu0 0
  %1577 = vmatprep.subr.bf16.mxu0 0
  %1578 = vmatpush1.bf16.msra.mxu0 0
  %1579 = vmatprep.subr.bf16.mxu0 0
  %1580 = vmatpush1.bf16.msra.mxu0 0
  %1581 = vmatprep.subr.bf16.mxu0 0
  %1582 = vmatpush1.bf16.msra.mxu0 0
  %1583 = vmatprep.subr.bf16.mxu0 0
  %1584 = vmatpush1.bf16.msra.mxu0 0
  %1585 = vmatprep.subr.bf16.mxu0 0
  %1586 = vmatpush1.bf16.msra.mxu0 0
  %1587 = vmatprep.subr.bf16.mxu0 0
  %1588 = vmatpush1.bf16.msra.mxu0 0
  %1589 = vmatprep.subr.bf16.mxu0 0
  %1590 = vmatpush1.bf16.msra.mxu0 0
  %1591 = vmatprep.mubr.bf16.mxu0 0
  %1592 = vmatmul.mubr.bf16.gmra.mrb[0].mxu0 %v1557
  %v1593 = vpop.f32.mrb[0].mxu0
  %v1594 = vadd.f32 0.0, %v1593
  %v1595 = vpop.f32.mrb[0].mxu0
  %v1596 = vpop.f32.mrb[0].mxu0
  %v1597 = vpop.f32.mrb[0].mxu0
  %1598 = vdwg.mxu0
  %v1599 = vadd.f32 %v1536, %v1594
  %v1600 = vxor.u32 %v1599, 2147483648
  %v1601 = vmul.f32 %v1600, 1.442695
  %v1602 = vpow.pop %v1601
  %v1603 = vadd.f32 %v1602, 1.0
  %v1604 = vrcp.pop %v1603
  %v1605 = vmul.f32 1.0, %v1604
  %v1606 = vtanh.pop %v1599
  %1608 = vrot.lane.b32.xlu0 %v1538, 32
  %v1609 = vpop.permute.xlu0 %1608
  %v1611 = vmul.f32 %v1605, %v1609
  %1613 = vrot.lane.b32.xlu0 %v1606, 64
  %v1614 = vpop.permute.xlu0 %1613
  %v1616 = vmul.f32 %v1605, %v1614
  %1618 = vrot.lane.b32.xlu0 %v1616, 32
  %v1619 = vpop.permute.xlu0 %1618
  %v1621 = vadd.f32 %v1611, %v1619
  %v1622 = vtanh.pop %v1621
  %1624 = vrot.lane.b32.xlu0 %v1622, 64
  %v1625 = vpop.permute.xlu0 %1624
  %v1627 = vmul.f32 %v1605, %v1625
  %1629 = vrot.lane.b32.xlu0 %v1627, 32
  %v1630 = vpop.permute.xlu0 %1629
  %1632 = vst.msk [vmem:[#allocation2] sm:$0x3] %vm162, %v1630
  %1634 = vrot.lane.b32.xlu0 %v1621, 96
  %v1635 = vpop.permute.xlu0 %1634
  %1637 = vst.msk [vmem:[#allocation3] sm:$0x3] %vm162, %v1635
  %s1638 = scalar_lea.vmem %s4, 14
  %1639 = vst.msk [vmem:[%s1638] sm:$0x3] %vm162, %v1630
  %v1640 = vld [vmem:[%s44] sm:$0x3]
  %v1641 = vld [vmem:[#allocation4] sm:$0x3]
  %v1642 = vld [vmem:[#allocation5] sm:$0x3]
  %v1643 = vpack.c.bf16 %v1641, %v1641
  %v1644 = vld [vmem:[%s3] sm:$0xf]
  %v1645 = vld [vmem:[%s3 + $0x4] sm:$0xf]
  %v1646 = vld [vmem:[%s3 + $0x8] sm:$0xf]
  %v1647 = vld [vmem:[%s3 + $0xc] sm:$0xf]
  %v1652 = vunpack.c.l.b16 %v1644
  %v1653 = vunpack.c.l.b16 %v1645
  %v1654 = vunpack.c.l.b16 %v1646
  %v1655 = vunpack.c.l.b16 %v1647
  %v1656 = vpack.c.b16 %v1653, %v1652
  %v1657 = vpack.c.b16 %v1655, %v1654
  %v1661 = vsel %vm85, %v1643, 0
  %1663 = vmatprep.subr.bf16.mxu0 0
  %1664 = vmatpush1.bf16.msra.mxu0 %v1656
  %1665 = vmatprep.subr.bf16.mxu0 0
  %1666 = vmatpush1.bf16.msra.mxu0 %v1657
  %1667 = vmatprep.subr.bf16.mxu0 0
  %1668 = vmatpush1.bf16.msra.mxu0 0
  %1669 = vmatprep.subr.bf16.mxu0 0
  %1670 = vmatpush1.bf16.msra.mxu0 0
  %1671 = vmatprep.subr.bf16.mxu0 0
  %1672 = vmatpush1.bf16.msra.mxu0 0
  %1673 = vmatprep.subr.bf16.mxu0 0
  %1674 = vmatpush1.bf16.msra.mxu0 0
  %1675 = vmatprep.subr.bf16.mxu0 0
  %1676 = vmatpush1.bf16.msra.mxu0 0
  %1677 = vmatprep.subr.bf16.mxu0 0
  %1678 = vmatpush1.bf16.msra.mxu0 0
  %1679 = vmatprep.subr.bf16.mxu0 0
  %1680 = vmatpush1.bf16.msra.mxu0 0
  %1681 = vmatprep.subr.bf16.mxu0 0
  %1682 = vmatpush1.bf16.msra.mxu0 0
  %1683 = vmatprep.subr.bf16.mxu0 0
  %1684 = vmatpush1.bf16.msra.mxu0 0
  %1685 = vmatprep.subr.bf16.mxu0 0
  %1686 = vmatpush1.bf16.msra.mxu0 0
  %1687 = vmatprep.subr.bf16.mxu0 0
  %1688 = vmatpush1.bf16.msra.mxu0 0
  %1689 = vmatprep.subr.bf16.mxu0 0
  %1690 = vmatpush1.bf16.msra.mxu0 0
  %1691 = vmatprep.subr.bf16.mxu0 0
  %1692 = vmatpush1.bf16.msra.mxu0 0
  %1693 = vmatprep.subr.bf16.mxu0 0
  %1694 = vmatpush1.bf16.msra.mxu0 0
  %1695 = vmatprep.mubr.bf16.mxu0 0
  %1696 = vmatmul.mubr.bf16.gmra.mrb[0].mxu0 %v1661
  %v1697 = vpop.f32.mrb[0].mxu0
  %v1698 = vadd.f32 0.0, %v1697
  %v1699 = vpop.f32.mrb[0].mxu0
  %v1700 = vpop.f32.mrb[0].mxu0
  %v1701 = vpop.f32.mrb[0].mxu0
  %1702 = vdwg.mxu0
  %v1703 = vadd.f32 %v1640, %v1698
  %v1704 = vxor.u32 %v1703, 2147483648
  %v1705 = vmul.f32 %v1704, 1.442695
  %v1706 = vpow.pop %v1705
  %v1707 = vadd.f32 %v1706, 1.0
  %v1708 = vrcp.pop %v1707
  %v1709 = vmul.f32 1.0, %v1708
  %v1710 = vtanh.pop %v1703
  %1712 = vrot.lane.b32.xlu0 %v1642, 32
  %v1713 = vpop.permute.xlu0 %1712
  %v1715 = vmul.f32 %v1709, %v1713
  %1717 = vrot.lane.b32.xlu0 %v1710, 64
  %v1718 = vpop.permute.xlu0 %1717
  %v1720 = vmul.f32 %v1709, %v1718
  %1722 = vrot.lane.b32.xlu0 %v1720, 32
  %v1723 = vpop.permute.xlu0 %1722
  %v1725 = vadd.f32 %v1715, %v1723
  %v1726 = vtanh.pop %v1725
  %1728 = vrot.lane.b32.xlu0 %v1726, 64
  %v1729 = vpop.permute.xlu0 %1728
  %v1731 = vmul.f32 %v1709, %v1729
  %1733 = vrot.lane.b32.xlu0 %v1731, 32
  %v1734 = vpop.permute.xlu0 %1733
  %1736 = vst.msk [vmem:[#allocation4] sm:$0x3] %vm162, %v1734
  %1738 = vrot.lane.b32.xlu0 %v1725, 96
  %v1739 = vpop.permute.xlu0 %1738
  %1741 = vst.msk [vmem:[#allocation5] sm:$0x3] %vm162, %v1739
  %1742 = vst.msk [vmem:[%s52] sm:$0x3] %vm162, %v1734
  %s1743 = ssub.s32 0, 0
  %s1744 = smul.u32 8, %s1743
  %p1745 = scmp.lt.s32.totalorder %s1744, 7
  %s1746 = scalar_select %p1745, %s1744, 7
  %s1747 = smul.addr %s1746, 2
  %s1748 = scalar_lea.vmem %s5, %s1747
  // Predicated region
  $region22: #{bidirectional_lstm_forward.4} parent=0 // pred_check
    _
  $region23: #{bidirectional_lstm_forward.4} parent=0 // pred_check_branch
    %1750 = sbr.rel (0) target = $region25
  $region24: #{bidirectional_lstm_forward.4} parent=0 // pred_region
    _
  $region25: #{bidirectional_lstm_forward.4} parent=0 // pred_fallthru
    _
  // Predicated region
  $region26: #{bidirectional_lstm_forward.4} parent=0 // pred_check
    _
  $region27: #{bidirectional_lstm_forward.4} parent=0 // pred_check_branch
    %1752 = sbr.rel (0) target = $region29
  $region28: #{bidirectional_lstm_forward.4} parent=0 // pred_region
    %s1753 = ssub.s32 0, 0
    %s1754 = smul.u32 8, %s1753
  $region29: #{bidirectional_lstm_forward.4} parent=0 // pred_fallthru
    _
  // Predicated region
  $region30: #{bidirectional_lstm_forward.4} parent=0 // pred_check
    _
  $region31: #{bidirectional_lstm_forward.4} parent=0 // pred_check_branch
    %1756 = sbr.rel (0) target = $region33
  $region32: #{bidirectional_lstm_forward.4} parent=0 // pred_region
    _
  $region33: #{bidirectional_lstm_forward.4} parent=0 // pred_fallthru
    _
  // Predicated region
  $region34: #{bidirectional_lstm_forward.4} parent=0 // pred_check
    _
  $region35: #{bidirectional_lstm_forward.4} parent=0 // pred_check_branch
    %1758 = sbr.rel (0) target = $region37
  $region36: #{bidirectional_lstm_forward.4} parent=0 // pred_region
    %s1759 = ssub.s32 0, 0
    %s1760 = smul.u32 8, %s1759
    %p1761 = scmp.lt.s32.totalorder %s1760, 7
    %s1762 = scalar_select %p1761, %s1760, 7
    %s1763 = smul.addr %s1762, 2
    %s1764 = scalar_lea.vmem %s5, %s1763
  $region37: #{bidirectional_lstm_forward.4} parent=0 // pred_fallthru
    _

</llo_original>
